<compile_context>
chip_gen: v6e
topology: v6e:2x2x1
jax: 0.10.0
libtpu: 0.0.40
codegen_flags: <defaults>
</compile_context>

<pallas_src>
import functools

import numpy as np
import jax
import jax.numpy as jnp
from jax import lax
from jax.experimental import pallas as pl
from jax.experimental.pallas import tpu as pltpu


def _round_up(x, m):
    return ((x + m - 1) // m) * m


# ------------------------------ fused kernel --------------------------------

def _decoder_kernel(z_ref, w0_ref, b0_ref, u2_ref, wt_ref, bb_ref, o_ref, *,
                    B, K, CP, L1, L2, LP1, LP2, dils1, dils2):
    """Whole decoder forward; activations live as (CP, B*LP), time on lanes."""
    f32 = jnp.float32
    BL1, BL2 = B * LP1, B * LP2

    def seg_mask(L, LP):
        lane = lax.broadcasted_iota(jnp.int32, (1, LP), 1)
        m = (lane < L).astype(f32)
        return m if B == 1 else jnp.concatenate([m] * B, axis=1)

    mask1 = seg_mask(L1, LP1)          # (1, BL1)
    mask2 = seg_mask(L2, LP2)          # (1, BL2)

    def conv_dilated(x, widx, bidx, d, mask, BL):
        # x: (CP, BL).  Zero the pad lanes so values rolled in from the pad
        # region act exactly as the 'same' zero padding (and never leak across
        # batch segments: pad width >= max shift by construction).
        xm = x * mask
        p = d * (K - 1) // 2
        acc = None
        for k in range(K):
            s = k * d - p                                  # out[t] = xm[t + s]
            xs = xm if s == 0 else pltpu.roll(xm, (-s) % BL, axis=1)
            part = jnp.dot(wt_ref[widx + k], xs, preferred_element_type=f32)
            acc = part if acc is None else acc + part
        return acc + bb_ref[bidx]                          # (CP,1) bias over lanes

    def resblock(x, widx, bidx, d, mask, BL):
        h = jnp.maximum(conv_dilated(x, widx, bidx, d, mask, BL), 0.0)
        h = jnp.maximum(conv_dilated(h, widx + K, bidx + 1, d, mask, BL), 0.0)
        res = (jnp.dot(wt_ref[widx + 2 * K], x, preferred_element_type=f32)
               + bb_ref[bidx + 2])                         # 1x1 conv, no shifts
        return h + res

    # fc_in fused with upsample1 (host-side W0 = fc_w.T @ U1, b0 = fc_b @ U1)
    h = (jnp.dot(z_ref[...], w0_ref[...], preferred_element_type=f32)
         + b0_ref[...])                                    # (B, LP1); lanes>=L1 are 0
    # fold batch rows onto 128-aligned lane segments -> (1, B*LP1)
    flat = h if B == 1 else jnp.concatenate(
        [h[b:b + 1, :] for b in range(B)], axis=1)
    # channel dim after the PyTorch reshape is 1; pad channel rows 1..CP-1 with 0
    row = lax.broadcasted_iota(jnp.int32, (CP, BL1), 0)
    x = jnp.where(row == 0, flat, 0.0)

    widx = bidx = 0
    for d in dils1:                                        # TCN1
        x = resblock(x, widx, bidx, d, mask1, BL1)
        widx += 2 * K + 1
        bidx += 3

    # upsample2: batch-shared matrix, applied per 128-aligned batch segment.
    # U2 rows >= L1 and cols >= L2 are zero, so the result is already masked.
    u2 = u2_ref[...]
    segs = [jnp.dot(x[:, b * LP1:(b + 1) * LP1], u2, preferred_element_type=f32)
            for b in range(B)]
    x = segs[0] if B == 1 else jnp.concatenate(segs, axis=1)   # (CP, BL2)

    for d in dils2:                                        # TCN2 (dilation restarts)
        x = resblock(x, widx, bidx, d, mask2, BL2)
        widx += 2 * K + 1
        bidx += 3

    # single lane-dense, full-width store; unfold to (B, cf, L2) in the wrapper
    o_ref[...] = x.astype(o_ref.dtype)


# ------------------------- params: init & one-time prep ----------------------

def _uniform(key, shape, bound):
    return jax.random.uniform(key, shape, jnp.float32, -bound, bound)


def init_conv1d(key, in_c, out_c, k):
    bound = 1.0 / np.sqrt(in_c * k)
    kw, kb = jax.random.split(key)
    return _uniform(kw, (out_c, in_c, k), bound), _uniform(kb, (out_c,), bound)


def init_resblock(key, in_c, out_c, k):
    # weight_norm at init sets g = ||v||, so the effective weight equals v.
    k1, k2, k3 = jax.random.split(key, 3)
    w1, b1 = init_conv1d(k1, in_c, out_c, k)
    w2, b2 = init_conv1d(k2, out_c, out_c, k)
    wr, br = init_conv1d(k3, in_c, out_c, 1)
    return (w1, b1, w2, b2, wr, br)


def init_decoder_params(key, cfg):
    n1, n2 = len(cfg["tcn1_in_dims"]), len(cfg["tcn2_in_dims"])
    keys = jax.random.split(key, 1 + n1 + n2)
    fc_out = cfg["fc_in_out_dim"] * cfg["tcn1_in_dims"][0]
    bound = 1.0 / np.sqrt(cfg["latent_dim"])
    kfw, kfb = jax.random.split(keys[0])
    fc_w = _uniform(kfw, (fc_out, cfg["latent_dim"]), bound)
    fc_b = _uniform(kfb, (fc_out,), bound)
    tcn1 = [init_resblock(keys[1 + i], cfg["tcn1_in_dims"][i],
                          cfg["tcn1_out_dims"][i], cfg["kernel_size"])
            for i in range(n1)]
    tcn2 = [init_resblock(keys[1 + n1 + i], cfg["tcn2_in_dims"][i],
                          cfg["tcn2_out_dims"][i], cfg["kernel_size"])
            for i in range(n2)]
    return {"fc_w": fc_w, "fc_b": fc_b, "tcn1": tcn1, "tcn2": tcn2}


def prepare_decoder_params(params, cfg):
    """One-time host-side repacking (batch-independent)."""
    K = cfg["kernel_size"]
    assert K % 2 == 1, "padding='same' with even kernel_size is asymmetric in PyTorch"
    assert cfg["tcn1_in_dims"][0] == 1, "PyTorch forward reshapes fc output to 1 channel"
    n1, n2 = len(cfg["tcn1_in_dims"]), len(cfg["tcn2_in_dims"])
    L1, L2 = cfg["tcn1_seq_len"], cfg["tcn2_seq_len"]
    F = cfg["fc_in_out_dim"] * cfg["tcn1_in_dims"][0]
    dils1 = tuple(2 ** i for i in range(n1))
    dils2 = tuple(2 ** i for i in range(n2))
    smax1 = max(dils1) * (K - 1) // 2
    smax2 = max(dils2) * (K - 1) // 2
    # Each batch segment is a multiple of 128 lanes with >= smax zero pad lanes,
    # so circular rolls are exactly 'same' zero padding and never cross batches.
    LP1 = _round_up(L1 + smax1, 128)
    LP2 = _round_up(L2 + smax2, 128)
    cdims = (list(cfg["tcn1_in_dims"]) + list(cfg["tcn1_out_dims"])
             + list(cfg["tcn2_in_dims"]) + list(cfg["tcn2_out_dims"]))
    CP = max(8, _round_up(max(cdims), 8))

    def up_mat(l_in, l_out, lp_in, lp_out):
        # nearest: out[..., t] = in[..., (t * l_in) // l_out]
        u = np.zeros((lp_in, lp_out), np.float32)
        src = (np.arange(l_out) * l_in) // l_out
        u[src, np.arange(l_out)] = 1.0
        return u

    # Fuse fc_in with the first nearest-upsample: h_up = z @ (fc_w.T@U1) + fc_b@U1
    U1 = up_mat(F, L1, F, LP1)
    fc_w = np.asarray(params["fc_w"], np.float32)          # (F, D)
    fc_b = np.asarray(params["fc_b"], np.float32)          # (F,)
    W0 = jnp.asarray(fc_w.T @ U1)                          # (D, LP1)
    b0 = jnp.asarray((fc_b @ U1).reshape(1, LP1))
    U2 = jnp.asarray(up_mat(L1, L2, LP1, LP2))             # (LP1, LP2), batch-shared

    # Pack every conv tap weight / bias into two flat stacks (few DMAs, static idx).
    # TODO(synk): if loading trained PyTorch weight_norm weights, fold g/||v||
    # into the packed taps here (at init g == ||v||, so effective weight == v).
    wt, bb = [], []
    for (w1, b1, w2, b2, wr, br) in list(params["tcn1"]) + list(params["tcn2"]):
        for w in (np.asarray(w1, np.float32), np.asarray(w2, np.float32)):
            co, ci, _ = w.shape
            for k in range(K):
                tap = np.zeros((CP, CP), np.float32)
                tap[:co, :ci] = w[:, :, k]
                wt.append(tap)
        wr = np.asarray(wr, np.float32)
        co, ci = wr.shape[:2]
        tap = np.zeros((CP, CP), np.float32)
        tap[:co, :ci] = wr[:, :, 0]
        wt.append(tap)
        for b in (b1, b2, br):
            b = np.asarray(b, np.float32)
            pb = np.zeros((CP, 1), np.float32)
            pb[:b.shape[0], 0] = b
            bb.append(pb)

    arrays = dict(W0=W0, b0=b0, U2=U2,
                  wt=jnp.asarray(np.stack(wt)),            # (nblk*(2K+1), CP, CP)
                  bb=jnp.asarray(np.stack(bb)))            # (nblk*3, CP, 1)
    meta = dict(K=K, CP=CP, L1=L1, L2=L2, LP1=LP1, LP2=LP2,
                dils1=dils1, dils2=dils2, cf=cfg["tcn2_out_dims"][-1])
    return arrays, meta


# ------------------------------ forward --------------------------------------

def decoder_forward(z, arrays, *, meta):
    B = z.shape[0]
    m = meta
    kernel = functools.partial(
        _decoder_kernel, B=B, K=m["K"], CP=m["CP"], L1=m["L1"], L2=m["L2"],
        LP1=m["LP1"], LP2=m["LP2"], dils1=m["dils1"], dils2=m["dils2"])
    # Single fused, gridless pallas_call: every input mapped whole into VMEM.
    # TODO(synk): for large batches on v7x, add a batch grid axis with
    # dimension_semantics=("parallel",) so both TensorCores are used.
    slab = pl.pallas_call(
        kernel,
        out_shape=jax.ShapeDtypeStruct((m["CP"], B * m["LP2"]), jnp.float32),
        compiler_params=pltpu.CompilerParams(vmem_limit_bytes=32 * 1024 * 1024),
    )(z.astype(jnp.float32), arrays["W0"], arrays["b0"], arrays["U2"],
      arrays["wt"], arrays["bb"])
    # lane-dense slab -> (B, cf, L2): layout plumbing on the XLA side (free).
    out = slab.reshape(m["CP"], B, m["LP2"])[:m["cf"], :, :m["L2"]]
    return jnp.transpose(out, (1, 0, 2)).astype(z.dtype)


# --------------------------- pure-JAX reference ------------------------------

def upsample_nearest(x, size):
    L_in = x.shape[-1]
    idx = (jnp.arange(size) * L_in) // size
    return x[:, :, idx]


def _conv1d_ref(x, w, b, dilation):
    k = w.shape[-1]
    p = dilation * (k - 1) // 2
    y = lax.conv_general_dilated(x, w, window_strides=(1,), padding=[(p, p)],
                                 rhs_dilation=(dilation,),
                                 dimension_numbers=("NCH", "OIH", "NCH"))
    return y + b[None, :, None]


def _resblock_ref(x, prm, dilation):
    w1, b1, w2, b2, wr, br = prm
    h = jax.nn.relu(_conv1d_ref(x, w1, b1, dilation))
    h = jax.nn.relu(_conv1d_ref(h, w2, b2, dilation))
    return h + _conv1d_ref(x, wr, br, 1)


def decoder_ref(z, params, cfg):
    B = z.shape[0]
    out = z @ params["fc_w"].T + params["fc_b"]
    out = out.reshape(B, 1, -1)
    out = upsample_nearest(out, cfg["tcn1_seq_len"])
    for i, blk in enumerate(params["tcn1"]):
        out = _resblock_ref(out, blk, 2 ** i)
    out = upsample_nearest(out, cfg["tcn2_seq_len"])
    for i, blk in enumerate(params["tcn2"]):
        out = _resblock_ref(out, blk, 2 ** i)
    return out


# ------------------------------ main -----------------------------------------

if __name__ == "__main__":
    # Small, self-consistent config.  The PyTorch forward reshapes the fc output
    # to channels=1, so tcn1_in_dims[0] must be 1 for the module to run.
    cfg = dict(
        tcn1_in_dims=[1, 8], tcn1_out_dims=[8, 8],
        tcn2_in_dims=[8, 8], tcn2_out_dims=[8, 4],
        kernel_size=5, latent_dim=3, fc_in_out_dim=10,
        tcn1_seq_len=32, tcn2_seq_len=48,
    )

    key = jax.random.PRNGKey(0)
    kp, kz = jax.random.split(key)
    params = init_decoder_params(kp, cfg)
    z = jax.random.normal(kz, (2, cfg["latent_dim"]), jnp.float32)

    arrays, meta = prepare_decoder_params(params, cfg)
    fwd = jax.jit(functools.partial(decoder_forward, meta=meta))
    out = jax.block_until_ready(fwd(z, arrays))

    ref = jax.block_until_ready(decoder_ref(z, params, cfg))
    assert out.shape == (2, cfg["tcn2_out_dims"][-1], cfg["tcn2_seq_len"]), out.shape
    np.testing.assert_allclose(np.asarray(out), np.asarray(ref),
                               rtol=1e-4, atol=1e-4)
    print("KERNEL_OK")
</pallas_src>

<mosaic_0001>
module attributes {stable_mosaic.version = 11 : i64} {
  func.func @_decoder_kernel(%arg0: memref<2x3xf32, #tpu.memory_space<vmem>>, %arg1: memref<3x128xf32, #tpu.memory_space<vmem>>, %arg2: memref<1x128xf32, #tpu.memory_space<vmem>>, %arg3: memref<128x128xf32, #tpu.memory_space<vmem>>, %arg4: memref<44x8x8xf32, #tpu.memory_space<vmem>>, %arg5: memref<12x8x1xf32, #tpu.memory_space<vmem>>, %arg6: memref<8x256xf32, #tpu.memory_space<vmem>>) attributes {dimension_semantics = [], scalar_prefetch = 0 : i64, scratch_operands = 0 : i64, tpu.core_type = #tpu.core_type<tc>} {
    %0 = tpu.iota {dimensions = array<i32: 1>} : vector<1x128xi32>
    %c32_i32 = arith.constant 32 : i32
    %1 = vector.broadcast %c32_i32 : i32 to vector<1x128xi32>
    %2 = arith.cmpi slt, %0, %1 : vector<1x128xi32>
    %3 = arith.extui %2 : vector<1x128xi1> to vector<1x128xi32>
    %4 = arith.sitofp %3 : vector<1x128xi32> to vector<1x128xf32>
    %5 = tpu.concatenate %4, %4 in 1 : vector<1x128xf32>, vector<1x128xf32> -> vector<1x256xf32>
    %6 = tpu.iota {dimensions = array<i32: 1>} : vector<1x128xi32>
    %c48_i32 = arith.constant 48 : i32
    %7 = vector.broadcast %c48_i32 : i32 to vector<1x128xi32>
    %8 = arith.cmpi slt, %6, %7 : vector<1x128xi32>
    %9 = arith.extui %8 : vector<1x128xi1> to vector<1x128xi32>
    %10 = arith.sitofp %9 : vector<1x128xi32> to vector<1x128xf32>
    %11 = tpu.concatenate %10, %10 in 1 : vector<1x128xf32>, vector<1x128xf32> -> vector<1x256xf32>
    %c0 = arith.constant 0 : index
    %c0_0 = arith.constant 0 : index
    %12 = vector.load %arg0[%c0, %c0_0] : memref<2x3xf32, #tpu.memory_space<vmem>>, vector<2x3xf32>
    %c0_1 = arith.constant 0 : index
    %c0_2 = arith.constant 0 : index
    %13 = vector.load %arg1[%c0_1, %c0_2] : memref<3x128xf32, #tpu.memory_space<vmem>>, vector<3x128xf32>
    %cst = arith.constant dense<0.000000e+00> : vector<2x128xf32>
    %14 = tpu.matmul %12, %13, %cst {dimension_numbers = #tpu.dot_dimension_numbers<[1], [0], [0], [1], [0, 0, 1, 1], [], []>} : vector<2x3xf32>, vector<3x128xf32>, vector<2x128xf32> -> vector<2x128xf32>
    %c0_3 = arith.constant 0 : index
    %c0_4 = arith.constant 0 : index
    %15 = vector.load %arg2[%c0_3, %c0_4] : memref<1x128xf32, #tpu.memory_space<vmem>>, vector<1x128xf32>
    %16 = vector.broadcast %15 : vector<1x128xf32> to vector<2x128xf32>
    %17 = arith.addf %14, %16 : vector<2x128xf32>
    %18 = vector.extract_strided_slice %17 {offsets = [0, 0], sizes = [1, 128], strides = [1, 1]} : vector<2x128xf32> to vector<1x128xf32>
    %19 = vector.extract_strided_slice %17 {offsets = [1, 0], sizes = [1, 128], strides = [1, 1]} : vector<2x128xf32> to vector<1x128xf32>
    %20 = tpu.concatenate %18, %19 in 1 : vector<1x128xf32>, vector<1x128xf32> -> vector<1x256xf32>
    %21 = tpu.iota {dimensions = array<i32: 0>} : vector<8x256xi32>
    %c0_i32 = arith.constant 0 : i32
    %22 = vector.broadcast %c0_i32 : i32 to vector<8x256xi32>
    %23 = arith.cmpi eq, %21, %22 : vector<8x256xi32>
    %cst_5 = arith.constant 0.000000e+00 : f32
    %24 = vector.shape_cast %20 : vector<1x256xf32> to vector<1x256xf32>
    %25 = vector.broadcast %24 : vector<1x256xf32> to vector<8x256xf32>
    %26 = vector.broadcast %cst_5 : f32 to vector<8x256xf32>
    %27 = arith.select %23, %25, %26 : vector<8x256xi1>, vector<8x256xf32>
    %28 = vector.broadcast %5 : vector<1x256xf32> to vector<8x256xf32>
    %29 = arith.mulf %27, %28 : vector<8x256xf32>
    %c2_i32 = arith.constant 2 : i32
    %30 = tpu.dynamic_rotate %29 by %c2_i32 dim 1 : vector<8x256xf32>, i32 -> vector<8x256xf32>
    %c0_6 = arith.constant 0 : index
    %c0_7 = arith.constant 0 : index
    %c0_8 = arith.constant 0 : index
    %31 = vector.load %arg4[%c0_6, %c0_7, %c0_8] : memref<44x8x8xf32, #tpu.memory_space<vmem>>, vector<1x8x8xf32>
    %32 = vector.shape_cast %31 : vector<1x8x8xf32> to vector<8x8xf32>
    %cst_9 = arith.constant dense<0.000000e+00> : vector<8x256xf32>
    %33 = tpu.matmul %32, %30, %cst_9 {dimension_numbers = #tpu.dot_dimension_numbers<[1], [0], [0], [1], [0, 0, 1, 1], [], []>} : vector<8x8xf32>, vector<8x256xf32>, vector<8x256xf32> -> vector<8x256xf32>
    %c1_i32 = arith.constant 1 : i32
    %34 = tpu.dynamic_rotate %29 by %c1_i32 dim 1 : vector<8x256xf32>, i32 -> vector<8x256xf32>
    %c1 = arith.constant 1 : index
    %c0_10 = arith.constant 0 : index
    %c0_11 = arith.constant 0 : index
    %35 = vector.load %arg4[%c1, %c0_10, %c0_11] : memref<44x8x8xf32, #tpu.memory_space<vmem>>, vector<1x8x8xf32>
    %36 = vector.shape_cast %35 : vector<1x8x8xf32> to vector<8x8xf32>
    %cst_12 = arith.constant dense<0.000000e+00> : vector<8x256xf32>
    %37 = tpu.matmul %36, %34, %cst_12 {dimension_numbers = #tpu.dot_dimension_numbers<[1], [0], [0], [1], [0, 0, 1, 1], [], []>} : vector<8x8xf32>, vector<8x256xf32>, vector<8x256xf32> -> vector<8x256xf32>
    %38 = arith.addf %33, %37 : vector<8x256xf32>
    %c2 = arith.constant 2 : index
    %c0_13 = arith.constant 0 : index
    %c0_14 = arith.constant 0 : index
    %39 = vector.load %arg4[%c2, %c0_13, %c0_14] : memref<44x8x8xf32, #tpu.memory_space<vmem>>, vector<1x8x8xf32>
    %40 = vector.shape_cast %39 : vector<1x8x8xf32> to vector<8x8xf32>
    %cst_15 = arith.constant dense<0.000000e+00> : vector<8x256xf32>
    %41 = tpu.matmul %40, %29, %cst_15 {dimension_numbers = #tpu.dot_dimension_numbers<[1], [0], [0], [1], [0, 0, 1, 1], [], []>} : vector<8x8xf32>, vector<8x256xf32>, vector<8x256xf32> -> vector<8x256xf32>
    %42 = arith.addf %38, %41 : vector<8x256xf32>
    %c255_i32 = arith.constant 255 : i32
    %43 = tpu.dynamic_rotate %29 by %c255_i32 dim 1 : vector<8x256xf32>, i32 -> vector<8x256xf32>
    %c3 = arith.constant 3 : index
    %c0_16 = arith.constant 0 : index
    %c0_17 = arith.constant 0 : index
    %44 = vector.load %arg4[%c3, %c0_16, %c0_17] : memref<44x8x8xf32, #tpu.memory_space<vmem>>, vector<1x8x8xf32>
    %45 = vector.shape_cast %44 : vector<1x8x8xf32> to vector<8x8xf32>
    %cst_18 = arith.constant dense<0.000000e+00> : vector<8x256xf32>
    %46 = tpu.matmul %45, %43, %cst_18 {dimension_numbers = #tpu.dot_dimension_numbers<[1], [0], [0], [1], [0, 0, 1, 1], [], []>} : vector<8x8xf32>, vector<8x256xf32>, vector<8x256xf32> -> vector<8x256xf32>
    %47 = arith.addf %42, %46 : vector<8x256xf32>
    %c254_i32 = arith.constant 254 : i32
    %48 = tpu.dynamic_rotate %29 by %c254_i32 dim 1 : vector<8x256xf32>, i32 -> vector<8x256xf32>
    %c4 = arith.constant 4 : index
    %c0_19 = arith.constant 0 : index
    %c0_20 = arith.constant 0 : index
    %49 = vector.load %arg4[%c4, %c0_19, %c0_20] : memref<44x8x8xf32, #tpu.memory_space<vmem>>, vector<1x8x8xf32>
    %50 = vector.shape_cast %49 : vector<1x8x8xf32> to vector<8x8xf32>
    %cst_21 = arith.constant dense<0.000000e+00> : vector<8x256xf32>
    %51 = tpu.matmul %50, %48, %cst_21 {dimension_numbers = #tpu.dot_dimension_numbers<[1], [0], [0], [1], [0, 0, 1, 1], [], []>} : vector<8x8xf32>, vector<8x256xf32>, vector<8x256xf32> -> vector<8x256xf32>
    %52 = arith.addf %47, %51 : vector<8x256xf32>
    %c0_22 = arith.constant 0 : index
    %c0_23 = arith.constant 0 : index
    %c0_24 = arith.constant 0 : index
    %53 = vector.load %arg5[%c0_22, %c0_23, %c0_24] : memref<12x8x1xf32, #tpu.memory_space<vmem>>, vector<1x8x1xf32>
    %54 = vector.shape_cast %53 : vector<1x8x1xf32> to vector<8x1xf32>
    %55 = vector.broadcast %54 : vector<8x1xf32> to vector<8x256xf32>
    %56 = arith.addf %52, %55 : vector<8x256xf32>
    %cst_25 = arith.constant 0.000000e+00 : f32
    %57 = vector.broadcast %cst_25 : f32 to vector<8x256xf32>
    %58 = arith.maximumf %56, %57 : vector<8x256xf32>
    %59 = vector.broadcast %5 : vector<1x256xf32> to vector<8x256xf32>
    %60 = arith.mulf %58, %59 : vector<8x256xf32>
    %c2_i32_26 = arith.constant 2 : i32
    %61 = tpu.dynamic_rotate %60 by %c2_i32_26 dim 1 : vector<8x256xf32>, i32 -> vector<8x256xf32>
    %c5 = arith.constant 5 : index
    %c0_27 = arith.constant 0 : index
    %c0_28 = arith.constant 0 : index
    %62 = vector.load %arg4[%c5, %c0_27, %c0_28] : memref<44x8x8xf32, #tpu.memory_space<vmem>>, vector<1x8x8xf32>
    %63 = vector.shape_cast %62 : vector<1x8x8xf32> to vector<8x8xf32>
    %cst_29 = arith.constant dense<0.000000e+00> : vector<8x256xf32>
    %64 = tpu.matmul %63, %61, %cst_29 {dimension_numbers = #tpu.dot_dimension_numbers<[1], [0], [0], [1], [0, 0, 1, 1], [], []>} : vector<8x8xf32>, vector<8x256xf32>, vector<8x256xf32> -> vector<8x256xf32>
    %c1_i32_30 = arith.constant 1 : i32
    %65 = tpu.dynamic_rotate %60 by %c1_i32_30 dim 1 : vector<8x256xf32>, i32 -> vector<8x256xf32>
    %c6 = arith.constant 6 : index
    %c0_31 = arith.constant 0 : index
    %c0_32 = arith.constant 0 : index
    %66 = vector.load %arg4[%c6, %c0_31, %c0_32] : memref<44x8x8xf32, #tpu.memory_space<vmem>>, vector<1x8x8xf32>
    %67 = vector.shape_cast %66 : vector<1x8x8xf32> to vector<8x8xf32>
    %cst_33 = arith.constant dense<0.000000e+00> : vector<8x256xf32>
    %68 = tpu.matmul %67, %65, %cst_33 {dimension_numbers = #tpu.dot_dimension_numbers<[1], [0], [0], [1], [0, 0, 1, 1], [], []>} : vector<8x8xf32>, vector<8x256xf32>, vector<8x256xf32> -> vector<8x256xf32>
    %69 = arith.addf %64, %68 : vector<8x256xf32>
    %c7 = arith.constant 7 : index
    %c0_34 = arith.constant 0 : index
    %c0_35 = arith.constant 0 : index
    %70 = vector.load %arg4[%c7, %c0_34, %c0_35] : memref<44x8x8xf32, #tpu.memory_space<vmem>>, vector<1x8x8xf32>
    %71 = vector.shape_cast %70 : vector<1x8x8xf32> to vector<8x8xf32>
    %cst_36 = arith.constant dense<0.000000e+00> : vector<8x256xf32>
    %72 = tpu.matmul %71, %60, %cst_36 {dimension_numbers = #tpu.dot_dimension_numbers<[1], [0], [0], [1], [0, 0, 1, 1], [], []>} : vector<8x8xf32>, vector<8x256xf32>, vector<8x256xf32> -> vector<8x256xf32>
    %73 = arith.addf %69, %72 : vector<8x256xf32>
    %c255_i32_37 = arith.constant 255 : i32
    %74 = tpu.dynamic_rotate %60 by %c255_i32_37 dim 1 : vector<8x256xf32>, i32 -> vector<8x256xf32>
    %c8 = arith.constant 8 : index
    %c0_38 = arith.constant 0 : index
    %c0_39 = arith.constant 0 : index
    %75 = vector.load %arg4[%c8, %c0_38, %c0_39] : memref<44x8x8xf32, #tpu.memory_space<vmem>>, vector<1x8x8xf32>
    %76 = vector.shape_cast %75 : vector<1x8x8xf32> to vector<8x8xf32>
    %cst_40 = arith.constant dense<0.000000e+00> : vector<8x256xf32>
    %77 = tpu.matmul %76, %74, %cst_40 {dimension_numbers = #tpu.dot_dimension_numbers<[1], [0], [0], [1], [0, 0, 1, 1], [], []>} : vector<8x8xf32>, vector<8x256xf32>, vector<8x256xf32> -> vector<8x256xf32>
    %78 = arith.addf %73, %77 : vector<8x256xf32>
    %c254_i32_41 = arith.constant 254 : i32
    %79 = tpu.dynamic_rotate %60 by %c254_i32_41 dim 1 : vector<8x256xf32>, i32 -> vector<8x256xf32>
    %c9 = arith.constant 9 : index
    %c0_42 = arith.constant 0 : index
    %c0_43 = arith.constant 0 : index
    %80 = vector.load %arg4[%c9, %c0_42, %c0_43] : memref<44x8x8xf32, #tpu.memory_space<vmem>>, vector<1x8x8xf32>
    %81 = vector.shape_cast %80 : vector<1x8x8xf32> to vector<8x8xf32>
    %cst_44 = arith.constant dense<0.000000e+00> : vector<8x256xf32>
    %82 = tpu.matmul %81, %79, %cst_44 {dimension_numbers = #tpu.dot_dimension_numbers<[1], [0], [0], [1], [0, 0, 1, 1], [], []>} : vector<8x8xf32>, vector<8x256xf32>, vector<8x256xf32> -> vector<8x256xf32>
    %83 = arith.addf %78, %82 : vector<8x256xf32>
    %c1_45 = arith.constant 1 : index
    %c0_46 = arith.constant 0 : index
    %c0_47 = arith.constant 0 : index
    %84 = vector.load %arg5[%c1_45, %c0_46, %c0_47] : memref<12x8x1xf32, #tpu.memory_space<vmem>>, vector<1x8x1xf32>
    %85 = vector.shape_cast %84 : vector<1x8x1xf32> to vector<8x1xf32>
    %86 = vector.broadcast %85 : vector<8x1xf32> to vector<8x256xf32>
    %87 = arith.addf %83, %86 : vector<8x256xf32>
    %cst_48 = arith.constant 0.000000e+00 : f32
    %88 = vector.broadcast %cst_48 : f32 to vector<8x256xf32>
    %89 = arith.maximumf %87, %88 : vector<8x256xf32>
    %c10 = arith.constant 10 : index
    %c0_49 = arith.constant 0 : index
    %c0_50 = arith.constant 0 : index
    %90 = vector.load %arg4[%c10, %c0_49, %c0_50] : memref<44x8x8xf32, #tpu.memory_space<vmem>>, vector<1x8x8xf32>
    %91 = vector.shape_cast %90 : vector<1x8x8xf32> to vector<8x8xf32>
    %cst_51 = arith.constant dense<0.000000e+00> : vector<8x256xf32>
    %92 = tpu.matmul %91, %27, %cst_51 {dimension_numbers = #tpu.dot_dimension_numbers<[1], [0], [0], [1], [0, 0, 1, 1], [], []>} : vector<8x8xf32>, vector<8x256xf32>, vector<8x256xf32> -> vector<8x256xf32>
    %c2_52 = arith.constant 2 : index
    %c0_53 = arith.constant 0 : index
    %c0_54 = arith.constant 0 : index
    %93 = vector.load %arg5[%c2_52, %c0_53, %c0_54] : memref<12x8x1xf32, #tpu.memory_space<vmem>>, vector<1x8x1xf32>
    %94 = vector.shape_cast %93 : vector<1x8x1xf32> to vector<8x1xf32>
    %95 = vector.broadcast %94 : vector<8x1xf32> to vector<8x256xf32>
    %96 = arith.addf %92, %95 : vector<8x256xf32>
    %97 = arith.addf %89, %96 : vector<8x256xf32>
    %98 = vector.broadcast %5 : vector<1x256xf32> to vector<8x256xf32>
    %99 = arith.mulf %97, %98 : vector<8x256xf32>
    %c4_i32 = arith.constant 4 : i32
    %100 = tpu.dynamic_rotate %99 by %c4_i32 dim 1 : vector<8x256xf32>, i32 -> vector<8x256xf32>
    %c11 = arith.constant 11 : index
    %c0_55 = arith.constant 0 : index
    %c0_56 = arith.constant 0 : index
    %101 = vector.load %arg4[%c11, %c0_55, %c0_56] : memref<44x8x8xf32, #tpu.memory_space<vmem>>, vector<1x8x8xf32>
    %102 = vector.shape_cast %101 : vector<1x8x8xf32> to vector<8x8xf32>
    %cst_57 = arith.constant dense<0.000000e+00> : vector<8x256xf32>
    %103 = tpu.matmul %102, %100, %cst_57 {dimension_numbers = #tpu.dot_dimension_numbers<[1], [0], [0], [1], [0, 0, 1, 1], [], []>} : vector<8x8xf32>, vector<8x256xf32>, vector<8x256xf32> -> vector<8x256xf32>
    %c2_i32_58 = arith.constant 2 : i32
    %104 = tpu.dynamic_rotate %99 by %c2_i32_58 dim 1 : vector<8x256xf32>, i32 -> vector<8x256xf32>
    %c12 = arith.constant 12 : index
    %c0_59 = arith.constant 0 : index
    %c0_60 = arith.constant 0 : index
    %105 = vector.load %arg4[%c12, %c0_59, %c0_60] : memref<44x8x8xf32, #tpu.memory_space<vmem>>, vector<1x8x8xf32>
    %106 = vector.shape_cast %105 : vector<1x8x8xf32> to vector<8x8xf32>
    %cst_61 = arith.constant dense<0.000000e+00> : vector<8x256xf32>
    %107 = tpu.matmul %106, %104, %cst_61 {dimension_numbers = #tpu.dot_dimension_numbers<[1], [0], [0], [1], [0, 0, 1, 1], [], []>} : vector<8x8xf32>, vector<8x256xf32>, vector<8x256xf32> -> vector<8x256xf32>
    %108 = arith.addf %103, %107 : vector<8x256xf32>
    %c13 = arith.constant 13 : index
    %c0_62 = arith.constant 0 : index
    %c0_63 = arith.constant 0 : index
    %109 = vector.load %arg4[%c13, %c0_62, %c0_63] : memref<44x8x8xf32, #tpu.memory_space<vmem>>, vector<1x8x8xf32>
    %110 = vector.shape_cast %109 : vector<1x8x8xf32> to vector<8x8xf32>
    %cst_64 = arith.constant dense<0.000000e+00> : vector<8x256xf32>
    %111 = tpu.matmul %110, %99, %cst_64 {dimension_numbers = #tpu.dot_dimension_numbers<[1], [0], [0], [1], [0, 0, 1, 1], [], []>} : vector<8x8xf32>, vector<8x256xf32>, vector<8x256xf32> -> vector<8x256xf32>
    %112 = arith.addf %108, %111 : vector<8x256xf32>
    %c254_i32_65 = arith.constant 254 : i32
    %113 = tpu.dynamic_rotate %99 by %c254_i32_65 dim 1 : vector<8x256xf32>, i32 -> vector<8x256xf32>
    %c14 = arith.constant 14 : index
    %c0_66 = arith.constant 0 : index
    %c0_67 = arith.constant 0 : index
    %114 = vector.load %arg4[%c14, %c0_66, %c0_67] : memref<44x8x8xf32, #tpu.memory_space<vmem>>, vector<1x8x8xf32>
    %115 = vector.shape_cast %114 : vector<1x8x8xf32> to vector<8x8xf32>
    %cst_68 = arith.constant dense<0.000000e+00> : vector<8x256xf32>
    %116 = tpu.matmul %115, %113, %cst_68 {dimension_numbers = #tpu.dot_dimension_numbers<[1], [0], [0], [1], [0, 0, 1, 1], [], []>} : vector<8x8xf32>, vector<8x256xf32>, vector<8x256xf32> -> vector<8x256xf32>
    %117 = arith.addf %112, %116 : vector<8x256xf32>
    %c252_i32 = arith.constant 252 : i32
    %118 = tpu.dynamic_rotate %99 by %c252_i32 dim 1 : vector<8x256xf32>, i32 -> vector<8x256xf32>
    %c15 = arith.constant 15 : index
    %c0_69 = arith.constant 0 : index
    %c0_70 = arith.constant 0 : index
    %119 = vector.load %arg4[%c15, %c0_69, %c0_70] : memref<44x8x8xf32, #tpu.memory_space<vmem>>, vector<1x8x8xf32>
    %120 = vector.shape_cast %119 : vector<1x8x8xf32> to vector<8x8xf32>
    %cst_71 = arith.constant dense<0.000000e+00> : vector<8x256xf32>
    %121 = tpu.matmul %120, %118, %cst_71 {dimension_numbers = #tpu.dot_dimension_numbers<[1], [0], [0], [1], [0, 0, 1, 1], [], []>} : vector<8x8xf32>, vector<8x256xf32>, vector<8x256xf32> -> vector<8x256xf32>
    %122 = arith.addf %117, %121 : vector<8x256xf32>
    %c3_72 = arith.constant 3 : index
    %c0_73 = arith.constant 0 : index
    %c0_74 = arith.constant 0 : index
    %123 = vector.load %arg5[%c3_72, %c0_73, %c0_74] : memref<12x8x1xf32, #tpu.memory_space<vmem>>, vector<1x8x1xf32>
    %124 = vector.shape_cast %123 : vector<1x8x1xf32> to vector<8x1xf32>
    %125 = vector.broadcast %124 : vector<8x1xf32> to vector<8x256xf32>
    %126 = arith.addf %122, %125 : vector<8x256xf32>
    %cst_75 = arith.constant 0.000000e+00 : f32
    %127 = vector.broadcast %cst_75 : f32 to vector<8x256xf32>
    %128 = arith.maximumf %126, %127 : vector<8x256xf32>
    %129 = vector.broadcast %5 : vector<1x256xf32> to vector<8x256xf32>
    %130 = arith.mulf %128, %129 : vector<8x256xf32>
    %c4_i32_76 = arith.constant 4 : i32
    %131 = tpu.dynamic_rotate %130 by %c4_i32_76 dim 1 : vector<8x256xf32>, i32 -> vector<8x256xf32>
    %c16 = arith.constant 16 : index
    %c0_77 = arith.constant 0 : index
    %c0_78 = arith.constant 0 : index
    %132 = vector.load %arg4[%c16, %c0_77, %c0_78] : memref<44x8x8xf32, #tpu.memory_space<vmem>>, vector<1x8x8xf32>
    %133 = vector.shape_cast %132 : vector<1x8x8xf32> to vector<8x8xf32>
    %cst_79 = arith.constant dense<0.000000e+00> : vector<8x256xf32>
    %134 = tpu.matmul %133, %131, %cst_79 {dimension_numbers = #tpu.dot_dimension_numbers<[1], [0], [0], [1], [0, 0, 1, 1], [], []>} : vector<8x8xf32>, vector<8x256xf32>, vector<8x256xf32> -> vector<8x256xf32>
    %c2_i32_80 = arith.constant 2 : i32
    %135 = tpu.dynamic_rotate %130 by %c2_i32_80 dim 1 : vector<8x256xf32>, i32 -> vector<8x256xf32>
    %c17 = arith.constant 17 : index
    %c0_81 = arith.constant 0 : index
    %c0_82 = arith.constant 0 : index
    %136 = vector.load %arg4[%c17, %c0_81, %c0_82] : memref<44x8x8xf32, #tpu.memory_space<vmem>>, vector<1x8x8xf32>
    %137 = vector.shape_cast %136 : vector<1x8x8xf32> to vector<8x8xf32>
    %cst_83 = arith.constant dense<0.000000e+00> : vector<8x256xf32>
    %138 = tpu.matmul %137, %135, %cst_83 {dimension_numbers = #tpu.dot_dimension_numbers<[1], [0], [0], [1], [0, 0, 1, 1], [], []>} : vector<8x8xf32>, vector<8x256xf32>, vector<8x256xf32> -> vector<8x256xf32>
    %139 = arith.addf %134, %138 : vector<8x256xf32>
    %c18 = arith.constant 18 : index
    %c0_84 = arith.constant 0 : index
    %c0_85 = arith.constant 0 : index
    %140 = vector.load %arg4[%c18, %c0_84, %c0_85] : memref<44x8x8xf32, #tpu.memory_space<vmem>>, vector<1x8x8xf32>
    %141 = vector.shape_cast %140 : vector<1x8x8xf32> to vector<8x8xf32>
    %cst_86 = arith.constant dense<0.000000e+00> : vector<8x256xf32>
    %142 = tpu.matmul %141, %130, %cst_86 {dimension_numbers = #tpu.dot_dimension_numbers<[1], [0], [0], [1], [0, 0, 1, 1], [], []>} : vector<8x8xf32>, vector<8x256xf32>, vector<8x256xf32> -> vector<8x256xf32>
    %143 = arith.addf %139, %142 : vector<8x256xf32>
    %c254_i32_87 = arith.constant 254 : i32
    %144 = tpu.dynamic_rotate %130 by %c254_i32_87 dim 1 : vector<8x256xf32>, i32 -> vector<8x256xf32>
    %c19 = arith.constant 19 : index
    %c0_88 = arith.constant 0 : index
    %c0_89 = arith.constant 0 : index
    %145 = vector.load %arg4[%c19, %c0_88, %c0_89] : memref<44x8x8xf32, #tpu.memory_space<vmem>>, vector<1x8x8xf32>
    %146 = vector.shape_cast %145 : vector<1x8x8xf32> to vector<8x8xf32>
    %cst_90 = arith.constant dense<0.000000e+00> : vector<8x256xf32>
    %147 = tpu.matmul %146, %144, %cst_90 {dimension_numbers = #tpu.dot_dimension_numbers<[1], [0], [0], [1], [0, 0, 1, 1], [], []>} : vector<8x8xf32>, vector<8x256xf32>, vector<8x256xf32> -> vector<8x256xf32>
    %148 = arith.addf %143, %147 : vector<8x256xf32>
    %c252_i32_91 = arith.constant 252 : i32
    %149 = tpu.dynamic_rotate %130 by %c252_i32_91 dim 1 : vector<8x256xf32>, i32 -> vector<8x256xf32>
    %c20 = arith.constant 20 : index
    %c0_92 = arith.constant 0 : index
    %c0_93 = arith.constant 0 : index
    %150 = vector.load %arg4[%c20, %c0_92, %c0_93] : memref<44x8x8xf32, #tpu.memory_space<vmem>>, vector<1x8x8xf32>
    %151 = vector.shape_cast %150 : vector<1x8x8xf32> to vector<8x8xf32>
    %cst_94 = arith.constant dense<0.000000e+00> : vector<8x256xf32>
    %152 = tpu.matmul %151, %149, %cst_94 {dimension_numbers = #tpu.dot_dimension_numbers<[1], [0], [0], [1], [0, 0, 1, 1], [], []>} : vector<8x8xf32>, vector<8x256xf32>, vector<8x256xf32> -> vector<8x256xf32>
    %153 = arith.addf %148, %152 : vector<8x256xf32>
    %c4_95 = arith.constant 4 : index
    %c0_96 = arith.constant 0 : index
    %c0_97 = arith.constant 0 : index
    %154 = vector.load %arg5[%c4_95, %c0_96, %c0_97] : memref<12x8x1xf32, #tpu.memory_space<vmem>>, vector<1x8x1xf32>
    %155 = vector.shape_cast %154 : vector<1x8x1xf32> to vector<8x1xf32>
    %156 = vector.broadcast %155 : vector<8x1xf32> to vector<8x256xf32>
    %157 = arith.addf %153, %156 : vector<8x256xf32>
    %cst_98 = arith.constant 0.000000e+00 : f32
    %158 = vector.broadcast %cst_98 : f32 to vector<8x256xf32>
    %159 = arith.maximumf %157, %158 : vector<8x256xf32>
    %c21 = arith.constant 21 : index
    %c0_99 = arith.constant 0 : index
    %c0_100 = arith.constant 0 : index
    %160 = vector.load %arg4[%c21, %c0_99, %c0_100] : memref<44x8x8xf32, #tpu.memory_space<vmem>>, vector<1x8x8xf32>
    %161 = vector.shape_cast %160 : vector<1x8x8xf32> to vector<8x8xf32>
    %cst_101 = arith.constant dense<0.000000e+00> : vector<8x256xf32>
    %162 = tpu.matmul %161, %97, %cst_101 {dimension_numbers = #tpu.dot_dimension_numbers<[1], [0], [0], [1], [0, 0, 1, 1], [], []>} : vector<8x8xf32>, vector<8x256xf32>, vector<8x256xf32> -> vector<8x256xf32>
    %c5_102 = arith.constant 5 : index
    %c0_103 = arith.constant 0 : index
    %c0_104 = arith.constant 0 : index
    %163 = vector.load %arg5[%c5_102, %c0_103, %c0_104] : memref<12x8x1xf32, #tpu.memory_space<vmem>>, vector<1x8x1xf32>
    %164 = vector.shape_cast %163 : vector<1x8x1xf32> to vector<8x1xf32>
    %165 = vector.broadcast %164 : vector<8x1xf32> to vector<8x256xf32>
    %166 = arith.addf %162, %165 : vector<8x256xf32>
    %167 = arith.addf %159, %166 : vector<8x256xf32>
    %c0_105 = arith.constant 0 : index
    %c0_106 = arith.constant 0 : index
    %168 = vector.load %arg3[%c0_105, %c0_106] : memref<128x128xf32, #tpu.memory_space<vmem>>, vector<128x128xf32>
    %169 = vector.extract_strided_slice %167 {offsets = [0, 0], sizes = [8, 128], strides = [1, 1]} : vector<8x256xf32> to vector<8x128xf32>
    %cst_107 = arith.constant dense<0.000000e+00> : vector<8x128xf32>
    %170 = tpu.matmul %169, %168, %cst_107 {dimension_numbers = #tpu.dot_dimension_numbers<[1], [0], [0], [1], [0, 0, 1, 1], [], []>} : vector<8x128xf32>, vector<128x128xf32>, vector<8x128xf32> -> vector<8x128xf32>
    %171 = vector.extract_strided_slice %167 {offsets = [0, 128], sizes = [8, 128], strides = [1, 1]} : vector<8x256xf32> to vector<8x128xf32>
    %cst_108 = arith.constant dense<0.000000e+00> : vector<8x128xf32>
    %172 = tpu.matmul %171, %168, %cst_108 {dimension_numbers = #tpu.dot_dimension_numbers<[1], [0], [0], [1], [0, 0, 1, 1], [], []>} : vector<8x128xf32>, vector<128x128xf32>, vector<8x128xf32> -> vector<8x128xf32>
    %173 = tpu.concatenate %170, %172 in 1 : vector<8x128xf32>, vector<8x128xf32> -> vector<8x256xf32>
    %174 = vector.broadcast %11 : vector<1x256xf32> to vector<8x256xf32>
    %175 = arith.mulf %173, %174 : vector<8x256xf32>
    %c2_i32_109 = arith.constant 2 : i32
    %176 = tpu.dynamic_rotate %175 by %c2_i32_109 dim 1 : vector<8x256xf32>, i32 -> vector<8x256xf32>
    %c22 = arith.constant 22 : index
    %c0_110 = arith.constant 0 : index
    %c0_111 = arith.constant 0 : index
    %177 = vector.load %arg4[%c22, %c0_110, %c0_111] : memref<44x8x8xf32, #tpu.memory_space<vmem>>, vector<1x8x8xf32>
    %178 = vector.shape_cast %177 : vector<1x8x8xf32> to vector<8x8xf32>
    %cst_112 = arith.constant dense<0.000000e+00> : vector<8x256xf32>
    %179 = tpu.matmul %178, %176, %cst_112 {dimension_numbers = #tpu.dot_dimension_numbers<[1], [0], [0], [1], [0, 0, 1, 1], [], []>} : vector<8x8xf32>, vector<8x256xf32>, vector<8x256xf32> -> vector<8x256xf32>
    %c1_i32_113 = arith.constant 1 : i32
    %180 = tpu.dynamic_rotate %175 by %c1_i32_113 dim 1 : vector<8x256xf32>, i32 -> vector<8x256xf32>
    %c23 = arith.constant 23 : index
    %c0_114 = arith.constant 0 : index
    %c0_115 = arith.constant 0 : index
    %181 = vector.load %arg4[%c23, %c0_114, %c0_115] : memref<44x8x8xf32, #tpu.memory_space<vmem>>, vector<1x8x8xf32>
    %182 = vector.shape_cast %181 : vector<1x8x8xf32> to vector<8x8xf32>
    %cst_116 = arith.constant dense<0.000000e+00> : vector<8x256xf32>
    %183 = tpu.matmul %182, %180, %cst_116 {dimension_numbers = #tpu.dot_dimension_numbers<[1], [0], [0], [1], [0, 0, 1, 1], [], []>} : vector<8x8xf32>, vector<8x256xf32>, vector<8x256xf32> -> vector<8x256xf32>
    %184 = arith.addf %179, %183 : vector<8x256xf32>
    %c24 = arith.constant 24 : index
    %c0_117 = arith.constant 0 : index
    %c0_118 = arith.constant 0 : index
    %185 = vector.load %arg4[%c24, %c0_117, %c0_118] : memref<44x8x8xf32, #tpu.memory_space<vmem>>, vector<1x8x8xf32>
    %186 = vector.shape_cast %185 : vector<1x8x8xf32> to vector<8x8xf32>
    %cst_119 = arith.constant dense<0.000000e+00> : vector<8x256xf32>
    %187 = tpu.matmul %186, %175, %cst_119 {dimension_numbers = #tpu.dot_dimension_numbers<[1], [0], [0], [1], [0, 0, 1, 1], [], []>} : vector<8x8xf32>, vector<8x256xf32>, vector<8x256xf32> -> vector<8x256xf32>
    %188 = arith.addf %184, %187 : vector<8x256xf32>
    %c255_i32_120 = arith.constant 255 : i32
    %189 = tpu.dynamic_rotate %175 by %c255_i32_120 dim 1 : vector<8x256xf32>, i32 -> vector<8x256xf32>
    %c25 = arith.constant 25 : index
    %c0_121 = arith.constant 0 : index
    %c0_122 = arith.constant 0 : index
    %190 = vector.load %arg4[%c25, %c0_121, %c0_122] : memref<44x8x8xf32, #tpu.memory_space<vmem>>, vector<1x8x8xf32>
    %191 = vector.shape_cast %190 : vector<1x8x8xf32> to vector<8x8xf32>
    %cst_123 = arith.constant dense<0.000000e+00> : vector<8x256xf32>
    %192 = tpu.matmul %191, %189, %cst_123 {dimension_numbers = #tpu.dot_dimension_numbers<[1], [0], [0], [1], [0, 0, 1, 1], [], []>} : vector<8x8xf32>, vector<8x256xf32>, vector<8x256xf32> -> vector<8x256xf32>
    %193 = arith.addf %188, %192 : vector<8x256xf32>
    %c254_i32_124 = arith.constant 254 : i32
    %194 = tpu.dynamic_rotate %175 by %c254_i32_124 dim 1 : vector<8x256xf32>, i32 -> vector<8x256xf32>
    %c26 = arith.constant 26 : index
    %c0_125 = arith.constant 0 : index
    %c0_126 = arith.constant 0 : index
    %195 = vector.load %arg4[%c26, %c0_125, %c0_126] : memref<44x8x8xf32, #tpu.memory_space<vmem>>, vector<1x8x8xf32>
    %196 = vector.shape_cast %195 : vector<1x8x8xf32> to vector<8x8xf32>
    %cst_127 = arith.constant dense<0.000000e+00> : vector<8x256xf32>
    %197 = tpu.matmul %196, %194, %cst_127 {dimension_numbers = #tpu.dot_dimension_numbers<[1], [0], [0], [1], [0, 0, 1, 1], [], []>} : vector<8x8xf32>, vector<8x256xf32>, vector<8x256xf32> -> vector<8x256xf32>
    %198 = arith.addf %193, %197 : vector<8x256xf32>
    %c6_128 = arith.constant 6 : index
    %c0_129 = arith.constant 0 : index
    %c0_130 = arith.constant 0 : index
    %199 = vector.load %arg5[%c6_128, %c0_129, %c0_130] : memref<12x8x1xf32, #tpu.memory_space<vmem>>, vector<1x8x1xf32>
    %200 = vector.shape_cast %199 : vector<1x8x1xf32> to vector<8x1xf32>
    %201 = vector.broadcast %200 : vector<8x1xf32> to vector<8x256xf32>
    %202 = arith.addf %198, %201 : vector<8x256xf32>
    %cst_131 = arith.constant 0.000000e+00 : f32
    %203 = vector.broadcast %cst_131 : f32 to vector<8x256xf32>
    %204 = arith.maximumf %202, %203 : vector<8x256xf32>
    %205 = vector.broadcast %11 : vector<1x256xf32> to vector<8x256xf32>
    %206 = arith.mulf %204, %205 : vector<8x256xf32>
    %c2_i32_132 = arith.constant 2 : i32
    %207 = tpu.dynamic_rotate %206 by %c2_i32_132 dim 1 : vector<8x256xf32>, i32 -> vector<8x256xf32>
    %c27 = arith.constant 27 : index
    %c0_133 = arith.constant 0 : index
    %c0_134 = arith.constant 0 : index
    %208 = vector.load %arg4[%c27, %c0_133, %c0_134] : memref<44x8x8xf32, #tpu.memory_space<vmem>>, vector<1x8x8xf32>
    %209 = vector.shape_cast %208 : vector<1x8x8xf32> to vector<8x8xf32>
    %cst_135 = arith.constant dense<0.000000e+00> : vector<8x256xf32>
    %210 = tpu.matmul %209, %207, %cst_135 {dimension_numbers = #tpu.dot_dimension_numbers<[1], [0], [0], [1], [0, 0, 1, 1], [], []>} : vector<8x8xf32>, vector<8x256xf32>, vector<8x256xf32> -> vector<8x256xf32>
    %c1_i32_136 = arith.constant 1 : i32
    %211 = tpu.dynamic_rotate %206 by %c1_i32_136 dim 1 : vector<8x256xf32>, i32 -> vector<8x256xf32>
    %c28 = arith.constant 28 : index
    %c0_137 = arith.constant 0 : index
    %c0_138 = arith.constant 0 : index
    %212 = vector.load %arg4[%c28, %c0_137, %c0_138] : memref<44x8x8xf32, #tpu.memory_space<vmem>>, vector<1x8x8xf32>
    %213 = vector.shape_cast %212 : vector<1x8x8xf32> to vector<8x8xf32>
    %cst_139 = arith.constant dense<0.000000e+00> : vector<8x256xf32>
    %214 = tpu.matmul %213, %211, %cst_139 {dimension_numbers = #tpu.dot_dimension_numbers<[1], [0], [0], [1], [0, 0, 1, 1], [], []>} : vector<8x8xf32>, vector<8x256xf32>, vector<8x256xf32> -> vector<8x256xf32>
    %215 = arith.addf %210, %214 : vector<8x256xf32>
    %c29 = arith.constant 29 : index
    %c0_140 = arith.constant 0 : index
    %c0_141 = arith.constant 0 : index
    %216 = vector.load %arg4[%c29, %c0_140, %c0_141] : memref<44x8x8xf32, #tpu.memory_space<vmem>>, vector<1x8x8xf32>
    %217 = vector.shape_cast %216 : vector<1x8x8xf32> to vector<8x8xf32>
    %cst_142 = arith.constant dense<0.000000e+00> : vector<8x256xf32>
    %218 = tpu.matmul %217, %206, %cst_142 {dimension_numbers = #tpu.dot_dimension_numbers<[1], [0], [0], [1], [0, 0, 1, 1], [], []>} : vector<8x8xf32>, vector<8x256xf32>, vector<8x256xf32> -> vector<8x256xf32>
    %219 = arith.addf %215, %218 : vector<8x256xf32>
    %c255_i32_143 = arith.constant 255 : i32
    %220 = tpu.dynamic_rotate %206 by %c255_i32_143 dim 1 : vector<8x256xf32>, i32 -> vector<8x256xf32>
    %c30 = arith.constant 30 : index
    %c0_144 = arith.constant 0 : index
    %c0_145 = arith.constant 0 : index
    %221 = vector.load %arg4[%c30, %c0_144, %c0_145] : memref<44x8x8xf32, #tpu.memory_space<vmem>>, vector<1x8x8xf32>
    %222 = vector.shape_cast %221 : vector<1x8x8xf32> to vector<8x8xf32>
    %cst_146 = arith.constant dense<0.000000e+00> : vector<8x256xf32>
    %223 = tpu.matmul %222, %220, %cst_146 {dimension_numbers = #tpu.dot_dimension_numbers<[1], [0], [0], [1], [0, 0, 1, 1], [], []>} : vector<8x8xf32>, vector<8x256xf32>, vector<8x256xf32> -> vector<8x256xf32>
    %224 = arith.addf %219, %223 : vector<8x256xf32>
    %c254_i32_147 = arith.constant 254 : i32
    %225 = tpu.dynamic_rotate %206 by %c254_i32_147 dim 1 : vector<8x256xf32>, i32 -> vector<8x256xf32>
    %c31 = arith.constant 31 : index
    %c0_148 = arith.constant 0 : index
    %c0_149 = arith.constant 0 : index
    %226 = vector.load %arg4[%c31, %c0_148, %c0_149] : memref<44x8x8xf32, #tpu.memory_space<vmem>>, vector<1x8x8xf32>
    %227 = vector.shape_cast %226 : vector<1x8x8xf32> to vector<8x8xf32>
    %cst_150 = arith.constant dense<0.000000e+00> : vector<8x256xf32>
    %228 = tpu.matmul %227, %225, %cst_150 {dimension_numbers = #tpu.dot_dimension_numbers<[1], [0], [0], [1], [0, 0, 1, 1], [], []>} : vector<8x8xf32>, vector<8x256xf32>, vector<8x256xf32> -> vector<8x256xf32>
    %229 = arith.addf %224, %228 : vector<8x256xf32>
    %c7_151 = arith.constant 7 : index
    %c0_152 = arith.constant 0 : index
    %c0_153 = arith.constant 0 : index
    %230 = vector.load %arg5[%c7_151, %c0_152, %c0_153] : memref<12x8x1xf32, #tpu.memory_space<vmem>>, vector<1x8x1xf32>
    %231 = vector.shape_cast %230 : vector<1x8x1xf32> to vector<8x1xf32>
    %232 = vector.broadcast %231 : vector<8x1xf32> to vector<8x256xf32>
    %233 = arith.addf %229, %232 : vector<8x256xf32>
    %cst_154 = arith.constant 0.000000e+00 : f32
    %234 = vector.broadcast %cst_154 : f32 to vector<8x256xf32>
    %235 = arith.maximumf %233, %234 : vector<8x256xf32>
    %c32 = arith.constant 32 : index
    %c0_155 = arith.constant 0 : index
    %c0_156 = arith.constant 0 : index
    %236 = vector.load %arg4[%c32, %c0_155, %c0_156] : memref<44x8x8xf32, #tpu.memory_space<vmem>>, vector<1x8x8xf32>
    %237 = vector.shape_cast %236 : vector<1x8x8xf32> to vector<8x8xf32>
    %cst_157 = arith.constant dense<0.000000e+00> : vector<8x256xf32>
    %238 = tpu.matmul %237, %173, %cst_157 {dimension_numbers = #tpu.dot_dimension_numbers<[1], [0], [0], [1], [0, 0, 1, 1], [], []>} : vector<8x8xf32>, vector<8x256xf32>, vector<8x256xf32> -> vector<8x256xf32>
    %c8_158 = arith.constant 8 : index
    %c0_159 = arith.constant 0 : index
    %c0_160 = arith.constant 0 : index
    %239 = vector.load %arg5[%c8_158, %c0_159, %c0_160] : memref<12x8x1xf32, #tpu.memory_space<vmem>>, vector<1x8x1xf32>
    %240 = vector.shape_cast %239 : vector<1x8x1xf32> to vector<8x1xf32>
    %241 = vector.broadcast %240 : vector<8x1xf32> to vector<8x256xf32>
    %242 = arith.addf %238, %241 : vector<8x256xf32>
    %243 = arith.addf %235, %242 : vector<8x256xf32>
    %244 = vector.broadcast %11 : vector<1x256xf32> to vector<8x256xf32>
    %245 = arith.mulf %243, %244 : vector<8x256xf32>
    %c4_i32_161 = arith.constant 4 : i32
    %246 = tpu.dynamic_rotate %245 by %c4_i32_161 dim 1 : vector<8x256xf32>, i32 -> vector<8x256xf32>
    %c33 = arith.constant 33 : index
    %c0_162 = arith.constant 0 : index
    %c0_163 = arith.constant 0 : index
    %247 = vector.load %arg4[%c33, %c0_162, %c0_163] : memref<44x8x8xf32, #tpu.memory_space<vmem>>, vector<1x8x8xf32>
    %248 = vector.shape_cast %247 : vector<1x8x8xf32> to vector<8x8xf32>
    %cst_164 = arith.constant dense<0.000000e+00> : vector<8x256xf32>
    %249 = tpu.matmul %248, %246, %cst_164 {dimension_numbers = #tpu.dot_dimension_numbers<[1], [0], [0], [1], [0, 0, 1, 1], [], []>} : vector<8x8xf32>, vector<8x256xf32>, vector<8x256xf32> -> vector<8x256xf32>
    %c2_i32_165 = arith.constant 2 : i32
    %250 = tpu.dynamic_rotate %245 by %c2_i32_165 dim 1 : vector<8x256xf32>, i32 -> vector<8x256xf32>
    %c34 = arith.constant 34 : index
    %c0_166 = arith.constant 0 : index
    %c0_167 = arith.constant 0 : index
    %251 = vector.load %arg4[%c34, %c0_166, %c0_167] : memref<44x8x8xf32, #tpu.memory_space<vmem>>, vector<1x8x8xf32>
    %252 = vector.shape_cast %251 : vector<1x8x8xf32> to vector<8x8xf32>
    %cst_168 = arith.constant dense<0.000000e+00> : vector<8x256xf32>
    %253 = tpu.matmul %252, %250, %cst_168 {dimension_numbers = #tpu.dot_dimension_numbers<[1], [0], [0], [1], [0, 0, 1, 1], [], []>} : vector<8x8xf32>, vector<8x256xf32>, vector<8x256xf32> -> vector<8x256xf32>
    %254 = arith.addf %249, %253 : vector<8x256xf32>
    %c35 = arith.constant 35 : index
    %c0_169 = arith.constant 0 : index
    %c0_170 = arith.constant 0 : index
    %255 = vector.load %arg4[%c35, %c0_169, %c0_170] : memref<44x8x8xf32, #tpu.memory_space<vmem>>, vector<1x8x8xf32>
    %256 = vector.shape_cast %255 : vector<1x8x8xf32> to vector<8x8xf32>
    %cst_171 = arith.constant dense<0.000000e+00> : vector<8x256xf32>
    %257 = tpu.matmul %256, %245, %cst_171 {dimension_numbers = #tpu.dot_dimension_numbers<[1], [0], [0], [1], [0, 0, 1, 1], [], []>} : vector<8x8xf32>, vector<8x256xf32>, vector<8x256xf32> -> vector<8x256xf32>
    %258 = arith.addf %254, %257 : vector<8x256xf32>
    %c254_i32_172 = arith.constant 254 : i32
    %259 = tpu.dynamic_rotate %245 by %c254_i32_172 dim 1 : vector<8x256xf32>, i32 -> vector<8x256xf32>
    %c36 = arith.constant 36 : index
    %c0_173 = arith.constant 0 : index
    %c0_174 = arith.constant 0 : index
    %260 = vector.load %arg4[%c36, %c0_173, %c0_174] : memref<44x8x8xf32, #tpu.memory_space<vmem>>, vector<1x8x8xf32>
    %261 = vector.shape_cast %260 : vector<1x8x8xf32> to vector<8x8xf32>
    %cst_175 = arith.constant dense<0.000000e+00> : vector<8x256xf32>
    %262 = tpu.matmul %261, %259, %cst_175 {dimension_numbers = #tpu.dot_dimension_numbers<[1], [0], [0], [1], [0, 0, 1, 1], [], []>} : vector<8x8xf32>, vector<8x256xf32>, vector<8x256xf32> -> vector<8x256xf32>
    %263 = arith.addf %258, %262 : vector<8x256xf32>
    %c252_i32_176 = arith.constant 252 : i32
    %264 = tpu.dynamic_rotate %245 by %c252_i32_176 dim 1 : vector<8x256xf32>, i32 -> vector<8x256xf32>
    %c37 = arith.constant 37 : index
    %c0_177 = arith.constant 0 : index
    %c0_178 = arith.constant 0 : index
    %265 = vector.load %arg4[%c37, %c0_177, %c0_178] : memref<44x8x8xf32, #tpu.memory_space<vmem>>, vector<1x8x8xf32>
    %266 = vector.shape_cast %265 : vector<1x8x8xf32> to vector<8x8xf32>
    %cst_179 = arith.constant dense<0.000000e+00> : vector<8x256xf32>
    %267 = tpu.matmul %266, %264, %cst_179 {dimension_numbers = #tpu.dot_dimension_numbers<[1], [0], [0], [1], [0, 0, 1, 1], [], []>} : vector<8x8xf32>, vector<8x256xf32>, vector<8x256xf32> -> vector<8x256xf32>
    %268 = arith.addf %263, %267 : vector<8x256xf32>
    %c9_180 = arith.constant 9 : index
    %c0_181 = arith.constant 0 : index
    %c0_182 = arith.constant 0 : index
    %269 = vector.load %arg5[%c9_180, %c0_181, %c0_182] : memref<12x8x1xf32, #tpu.memory_space<vmem>>, vector<1x8x1xf32>
    %270 = vector.shape_cast %269 : vector<1x8x1xf32> to vector<8x1xf32>
    %271 = vector.broadcast %270 : vector<8x1xf32> to vector<8x256xf32>
    %272 = arith.addf %268, %271 : vector<8x256xf32>
    %cst_183 = arith.constant 0.000000e+00 : f32
    %273 = vector.broadcast %cst_183 : f32 to vector<8x256xf32>
    %274 = arith.maximumf %272, %273 : vector<8x256xf32>
    %275 = vector.broadcast %11 : vector<1x256xf32> to vector<8x256xf32>
    %276 = arith.mulf %274, %275 : vector<8x256xf32>
    %c4_i32_184 = arith.constant 4 : i32
    %277 = tpu.dynamic_rotate %276 by %c4_i32_184 dim 1 : vector<8x256xf32>, i32 -> vector<8x256xf32>
    %c38 = arith.constant 38 : index
    %c0_185 = arith.constant 0 : index
    %c0_186 = arith.constant 0 : index
    %278 = vector.load %arg4[%c38, %c0_185, %c0_186] : memref<44x8x8xf32, #tpu.memory_space<vmem>>, vector<1x8x8xf32>
    %279 = vector.shape_cast %278 : vector<1x8x8xf32> to vector<8x8xf32>
    %cst_187 = arith.constant dense<0.000000e+00> : vector<8x256xf32>
    %280 = tpu.matmul %279, %277, %cst_187 {dimension_numbers = #tpu.dot_dimension_numbers<[1], [0], [0], [1], [0, 0, 1, 1], [], []>} : vector<8x8xf32>, vector<8x256xf32>, vector<8x256xf32> -> vector<8x256xf32>
    %c2_i32_188 = arith.constant 2 : i32
    %281 = tpu.dynamic_rotate %276 by %c2_i32_188 dim 1 : vector<8x256xf32>, i32 -> vector<8x256xf32>
    %c39 = arith.constant 39 : index
    %c0_189 = arith.constant 0 : index
    %c0_190 = arith.constant 0 : index
    %282 = vector.load %arg4[%c39, %c0_189, %c0_190] : memref<44x8x8xf32, #tpu.memory_space<vmem>>, vector<1x8x8xf32>
    %283 = vector.shape_cast %282 : vector<1x8x8xf32> to vector<8x8xf32>
    %cst_191 = arith.constant dense<0.000000e+00> : vector<8x256xf32>
    %284 = tpu.matmul %283, %281, %cst_191 {dimension_numbers = #tpu.dot_dimension_numbers<[1], [0], [0], [1], [0, 0, 1, 1], [], []>} : vector<8x8xf32>, vector<8x256xf32>, vector<8x256xf32> -> vector<8x256xf32>
    %285 = arith.addf %280, %284 : vector<8x256xf32>
    %c40 = arith.constant 40 : index
    %c0_192 = arith.constant 0 : index
    %c0_193 = arith.constant 0 : index
    %286 = vector.load %arg4[%c40, %c0_192, %c0_193] : memref<44x8x8xf32, #tpu.memory_space<vmem>>, vector<1x8x8xf32>
    %287 = vector.shape_cast %286 : vector<1x8x8xf32> to vector<8x8xf32>
    %cst_194 = arith.constant dense<0.000000e+00> : vector<8x256xf32>
    %288 = tpu.matmul %287, %276, %cst_194 {dimension_numbers = #tpu.dot_dimension_numbers<[1], [0], [0], [1], [0, 0, 1, 1], [], []>} : vector<8x8xf32>, vector<8x256xf32>, vector<8x256xf32> -> vector<8x256xf32>
    %289 = arith.addf %285, %288 : vector<8x256xf32>
    %c254_i32_195 = arith.constant 254 : i32
    %290 = tpu.dynamic_rotate %276 by %c254_i32_195 dim 1 : vector<8x256xf32>, i32 -> vector<8x256xf32>
    %c41 = arith.constant 41 : index
    %c0_196 = arith.constant 0 : index
    %c0_197 = arith.constant 0 : index
    %291 = vector.load %arg4[%c41, %c0_196, %c0_197] : memref<44x8x8xf32, #tpu.memory_space<vmem>>, vector<1x8x8xf32>
    %292 = vector.shape_cast %291 : vector<1x8x8xf32> to vector<8x8xf32>
    %cst_198 = arith.constant dense<0.000000e+00> : vector<8x256xf32>
    %293 = tpu.matmul %292, %290, %cst_198 {dimension_numbers = #tpu.dot_dimension_numbers<[1], [0], [0], [1], [0, 0, 1, 1], [], []>} : vector<8x8xf32>, vector<8x256xf32>, vector<8x256xf32> -> vector<8x256xf32>
    %294 = arith.addf %289, %293 : vector<8x256xf32>
    %c252_i32_199 = arith.constant 252 : i32
    %295 = tpu.dynamic_rotate %276 by %c252_i32_199 dim 1 : vector<8x256xf32>, i32 -> vector<8x256xf32>
    %c42 = arith.constant 42 : index
    %c0_200 = arith.constant 0 : index
    %c0_201 = arith.constant 0 : index
    %296 = vector.load %arg4[%c42, %c0_200, %c0_201] : memref<44x8x8xf32, #tpu.memory_space<vmem>>, vector<1x8x8xf32>
    %297 = vector.shape_cast %296 : vector<1x8x8xf32> to vector<8x8xf32>
    %cst_202 = arith.constant dense<0.000000e+00> : vector<8x256xf32>
    %298 = tpu.matmul %297, %295, %cst_202 {dimension_numbers = #tpu.dot_dimension_numbers<[1], [0], [0], [1], [0, 0, 1, 1], [], []>} : vector<8x8xf32>, vector<8x256xf32>, vector<8x256xf32> -> vector<8x256xf32>
    %299 = arith.addf %294, %298 : vector<8x256xf32>
    %c10_203 = arith.constant 10 : index
    %c0_204 = arith.constant 0 : index
    %c0_205 = arith.constant 0 : index
    %300 = vector.load %arg5[%c10_203, %c0_204, %c0_205] : memref<12x8x1xf32, #tpu.memory_space<vmem>>, vector<1x8x1xf32>
    %301 = vector.shape_cast %300 : vector<1x8x1xf32> to vector<8x1xf32>
    %302 = vector.broadcast %301 : vector<8x1xf32> to vector<8x256xf32>
    %303 = arith.addf %299, %302 : vector<8x256xf32>
    %cst_206 = arith.constant 0.000000e+00 : f32
    %304 = vector.broadcast %cst_206 : f32 to vector<8x256xf32>
    %305 = arith.maximumf %303, %304 : vector<8x256xf32>
    %c43 = arith.constant 43 : index
    %c0_207 = arith.constant 0 : index
    %c0_208 = arith.constant 0 : index
    %306 = vector.load %arg4[%c43, %c0_207, %c0_208] : memref<44x8x8xf32, #tpu.memory_space<vmem>>, vector<1x8x8xf32>
    %307 = vector.shape_cast %306 : vector<1x8x8xf32> to vector<8x8xf32>
    %cst_209 = arith.constant dense<0.000000e+00> : vector<8x256xf32>
    %308 = tpu.matmul %307, %243, %cst_209 {dimension_numbers = #tpu.dot_dimension_numbers<[1], [0], [0], [1], [0, 0, 1, 1], [], []>} : vector<8x8xf32>, vector<8x256xf32>, vector<8x256xf32> -> vector<8x256xf32>
    %c11_210 = arith.constant 11 : index
    %c0_211 = arith.constant 0 : index
    %c0_212 = arith.constant 0 : index
    %309 = vector.load %arg5[%c11_210, %c0_211, %c0_212] : memref<12x8x1xf32, #tpu.memory_space<vmem>>, vector<1x8x1xf32>
    %310 = vector.shape_cast %309 : vector<1x8x1xf32> to vector<8x1xf32>
    %311 = vector.broadcast %310 : vector<8x1xf32> to vector<8x256xf32>
    %312 = arith.addf %308, %311 : vector<8x256xf32>
    %313 = arith.addf %305, %312 : vector<8x256xf32>
    %c0_213 = arith.constant 0 : index
    %c0_214 = arith.constant 0 : index
    %314 = vector.load %arg6[%c0_213, %c0_214] : memref<8x256xf32, #tpu.memory_space<vmem>>, vector<8x256xf32>
    tpu.vector_store %arg6[%c0_213, %c0_214], %313 {strides = array<i32>} : memref<8x256xf32, #tpu.memory_space<vmem>>, vector<8x256xf32>,
    return
  }
}

</mosaic_0001>

<llo_original>
// kernel: decoder_forward.1
$region0: #{decoder_forward.1}
  #allocation0 [shape = 'u32[]', space=smem, size = 0x4, offset = 0x4, fixed_abs, tag = 'smem constant byte address 0x4 - core index']
  #allocation1 [shape = 'u32[144,128]{1,0:T(1,128)}', space=vmem, size = 0x12000, scoped, tag = 'internal scratch']
  %s0 = inlined_call_operand.vmem [shape: f32[2,3], index: 0, kind: input, shape index: {}]
  %s1 = inlined_call_operand.vmem [shape: f32[3,128], index: 1, kind: input, shape index: {}]
  %s2 = inlined_call_operand.vmem [shape: f32[1,128], index: 2, kind: input, shape index: {}]
  %s3 = inlined_call_operand.vmem [shape: f32[128,128], index: 3, kind: input, shape index: {}]
  %s4 = inlined_call_operand.vmem [shape: f32[44,8,8], index: 4, kind: input, shape index: {}]
  %s5 = inlined_call_operand.vmem [shape: f32[12,8,1], index: 5, kind: input, shape index: {}]
  %s6 = inlined_call_operand.vmem [shape: f32[8,256], index: 6, kind: output, shape index: {}]
  %s7 = sld [smem:[#allocation0]]
  $region34: #{decoder_forward.1} parent=0
    _
  %s9 = ssub.s32 1, %s7
  %s10 = scalar_select 0, %s9, %s7
  // Predicated region
  $region2: #{decoder_forward.1} parent=0 // pred_check
    _
  $region3: #{decoder_forward.1} parent=0 // pred_check_branch
    %12 = sbr.rel (0) target = $region5
  $region4: #{decoder_forward.1} parent=0 // pred_region
    _
  $region5: #{decoder_forward.1} parent=0 // pred_fallthru
    _
  // Predicated region
  $region6: #{decoder_forward.1} parent=0 // pred_check
    _
  $region7: #{decoder_forward.1} parent=0 // pred_check_branch
    %14 = sbr.rel (0) target = $region9
  $region8: #{decoder_forward.1} parent=0 // pred_region
    _
  $region9: #{decoder_forward.1} parent=0 // pred_fallthru
    _
  // Predicated region
  $region10: #{decoder_forward.1} parent=0 // pred_check
    _
  $region11: #{decoder_forward.1} parent=0 // pred_check_branch
    %16 = sbr.rel (0) target = $region13
  $region12: #{decoder_forward.1} parent=0 // pred_region
    _
  $region13: #{decoder_forward.1} parent=0 // pred_fallthru
    _
  // Predicated region
  $region14: #{decoder_forward.1} parent=0 // pred_check
    _
  $region15: #{decoder_forward.1} parent=0 // pred_check_branch
    %18 = sbr.rel (0) target = $region17
  $region16: #{decoder_forward.1} parent=0 // pred_region
    _
  $region17: #{decoder_forward.1} parent=0 // pred_fallthru
    _
  // Predicated region
  $region18: #{decoder_forward.1} parent=0 // pred_check
    _
  $region19: #{decoder_forward.1} parent=0 // pred_check_branch
    %20 = sbr.rel (0) target = $region21
  $region20: #{decoder_forward.1} parent=0 // pred_region
    _
  $region21: #{decoder_forward.1} parent=0 // pred_fallthru
    _
  // Predicated region
  $region22: #{decoder_forward.1} parent=0 // pred_check
    _
  $region23: #{decoder_forward.1} parent=0 // pred_check_branch
    %22 = sbr.rel (0) target = $region25
  $region24: #{decoder_forward.1} parent=0 // pred_region
    _
  $region25: #{decoder_forward.1} parent=0 // pred_fallthru
    _
  %v23 = vlaneseq
  %v24 = vand.u32 %v23, 127
  %vm25 = vcmp.lt.s32.totalorder %v24, 32
  %v26 = vsel %vm25, 1, 0
  %v27 = vcvt.s32.f32 %v26
  %vm28 = vcmp.lt.s32.totalorder %v24, 48
  %v29 = vsel %vm28, 1, 0
  %v30 = vcvt.s32.f32 %v29
  %v31 = vld [vmem:[%s0] sm:$0x3]
  %v32 = vld [vmem:[%s1] sm:$0x7]
  %v33 = vld [vmem:[%s2] sm:$0x1]
  %v35 = vlaneseq
  %v36 = vshrl.u32 %v35, 7
  %v37 = vsub.s32 0, %v36
  %v38 = vrot.slane %v33, %v37
  %vm40 = vcmask 23552
  %v42 = vsel %vm40, %v31, 0
  %vm44 = vcmask 1042432
  %v46 = vsel %vm44, %v32, 0
  %48 = vmatprep.subr.mxu0 0.0
  %49 = vmatpush1.msra.mxu0 0.0
  %50 = vmatprep.subr.mxu0 0.0
  %51 = vmatpush1.msra.mxu0 0.0
  %52 = vmatprep.subr.mxu0 0.0
  %53 = vmatpush1.msra.mxu0 0.0
  %54 = vmatprep.subr.mxu0 0.0
  %55 = vmatpush1.msra.mxu0 0.0
  %56 = vmatprep.subr.mxu0 0.0
  %57 = vmatpush1.msra.mxu0 0.0
  %58 = vmatprep.subr.mxu0 0.0
  %59 = vmatpush1.msra.mxu0 0.0
  %60 = vmatprep.subr.mxu0 0.0
  %61 = vmatpush1.msra.mxu0 0.0
  %62 = vmatprep.subr.mxu0 0.0
  %63 = vmatpush1.msra.mxu0 0.0
  %64 = vmatprep.subr.mxu0 0.0
  %65 = vmatpush1.msra.mxu0 0.0
  %66 = vmatprep.subr.mxu0 0.0
  %67 = vmatpush1.msra.mxu0 0.0
  %68 = vmatprep.subr.mxu0 0.0
  %69 = vmatpush1.msra.mxu0 0.0
  %70 = vmatprep.subr.mxu0 0.0
  %71 = vmatpush1.msra.mxu0 0.0
  %72 = vmatprep.subr.mxu0 0.0
  %73 = vmatpush1.msra.mxu0 0.0
  %74 = vmatprep.subr.mxu0 0.0
  %75 = vmatpush1.msra.mxu0 0.0
  %76 = vmatprep.subr.mxu0 0.0
  %77 = vmatpush1.msra.mxu0 0.0
  %78 = vmatprep.subr.mxu0 0.0
  %79 = vmatpush1.msra.mxu0 %v46
  %80 = vmatprep.subr.mxu0 0.0
  %81 = vmatpush2.msra.mxu0 0.0
  %82 = vmatprep.subr.mxu0 0.0
  %83 = vmatpush2.msra.mxu0 0.0
  %84 = vmatprep.subr.mxu0 0.0
  %85 = vmatpush2.msra.mxu0 0.0
  %86 = vmatprep.subr.mxu0 0.0
  %87 = vmatpush2.msra.mxu0 0.0
  %88 = vmatprep.subr.mxu0 0.0
  %89 = vmatpush2.msra.mxu0 0.0
  %90 = vmatprep.subr.mxu0 0.0
  %91 = vmatpush2.msra.mxu0 0.0
  %92 = vmatprep.subr.mxu0 0.0
  %93 = vmatpush2.msra.mxu0 0.0
  %94 = vmatprep.subr.mxu0 0.0
  %95 = vmatpush2.msra.mxu0 0.0
  %96 = vmatprep.subr.mxu0 0.0
  %97 = vmatpush2.msra.mxu0 0.0
  %98 = vmatprep.subr.mxu0 0.0
  %99 = vmatpush2.msra.mxu0 0.0
  %100 = vmatprep.subr.mxu0 0.0
  %101 = vmatpush2.msra.mxu0 0.0
  %102 = vmatprep.subr.mxu0 0.0
  %103 = vmatpush2.msra.mxu0 0.0
  %104 = vmatprep.subr.mxu0 0.0
  %105 = vmatpush2.msra.mxu0 0.0
  %106 = vmatprep.subr.mxu0 0.0
  %107 = vmatpush2.msra.mxu0 0.0
  %108 = vmatprep.subr.mxu0 0.0
  %109 = vmatpush2.msra.mxu0 0.0
  %110 = vmatprep.subr.mxu0 0.0
  %111 = vmatpush2.msra.mxu0 0.0
  %112 = vmatprep.mubr.f32.mxu0 0.0
  %113 = vmatmul.mubr.f32.gmra.mxu0 %v42
  %v114 = vpop.f32.mrf.mxu0
  %v115 = vadd.f32 %v38, %v114
  %v116 = vpop.f32.mrf.mxu0
  %117 = vdwg.mxu0
  %v119 = vrot.slane %v115, 1
  %v121 = vlaneseq
  %v122 = vshrl.u32 %v121, 7
  %vm123 = vcmp.eq.s32.totalorder %v122, 0
  %v124 = vlaneseq
  %v125 = vshrl.u32 %v124, 7
  %v126 = vsub.s32 0, %v125
  %v127 = vrot.slane %v115, %v126
  %v128 = vlaneseq
  %v129 = vshrl.u32 %v128, 7
  %v130 = vsub.s32 0, %v129
  %v131 = vrot.slane %v119, %v130
  %v132 = vsel %vm123, %v127, 0.0
  %v133 = vsel %vm123, %v131, 0.0
  %v134 = vlaneseq
  %v135 = vshrl.u32 %v134, 7
  %v136 = vsub.s32 0, %v135
  %v137 = vrot.slane %v27, %v136
  %v138 = vmul.f32 %v132, %v137
  %v139 = vmul.f32 %v133, %v137
  %140 = vrot.lane.b32.xlu0 %v138, 2
  %v141 = vpop.permute.xlu0 %140
  %142 = vrot.lane.b32.xlu0 %v139, 2
  %v143 = vpop.permute.xlu0 %142
  %vm144 = vcmp.lt.s32.totalorder %v24, 2
  %v145 = vsel %vm144, %v141, %v143
  %v146 = vsel %vm144, %v143, %v141
  %v147 = vld [vmem:[%s4] sm:$0xff]
  %148 = vrot.lane.b32.xlu0 %v138, 1
  %v149 = vpop.permute.xlu0 %148
  %150 = vrot.lane.b32.xlu0 %v139, 1
  %v151 = vpop.permute.xlu0 %150
  %vm152 = vcmp.lt.s32.totalorder %v24, 1
  %v153 = vsel %vm152, %v149, %v151
  %v154 = vsel %vm152, %v151, %v149
  %s155 = scalar_lea.vmem %s4, 8
  %v156 = vld [vmem:[%s155] sm:$0xff]
  %vm157 = vcmask 64512
  %v159 = vsel %vm157, %v156, 0
  %161 = vmatprep.subr.mxu0 0.0
  %162 = vmatpush1.msra.mxu0 0.0
  %163 = vmatprep.subr.mxu0 0.0
  %164 = vmatpush1.msra.mxu0 0.0
  %165 = vmatprep.subr.mxu0 0.0
  %166 = vmatpush1.msra.mxu0 0.0
  %167 = vmatprep.subr.mxu0 0.0
  %168 = vmatpush1.msra.mxu0 0.0
  %169 = vmatprep.subr.mxu0 0.0
  %170 = vmatpush1.msra.mxu0 0.0
  %171 = vmatprep.subr.mxu0 0.0
  %172 = vmatpush1.msra.mxu0 0.0
  %173 = vmatprep.subr.mxu0 0.0
  %174 = vmatpush1.msra.mxu0 0.0
  %175 = vmatprep.subr.mxu0 0.0
  %176 = vmatpush1.msra.mxu0 0.0
  %177 = vmatprep.subr.mxu0 0.0
  %178 = vmatpush1.msra.mxu0 0.0
  %179 = vmatprep.subr.mxu0 0.0
  %180 = vmatpush1.msra.mxu0 0.0
  %181 = vmatprep.subr.mxu0 0.0
  %182 = vmatpush1.msra.mxu0 0.0
  %183 = vmatprep.subr.mxu0 0.0
  %184 = vmatpush1.msra.mxu0 0.0
  %185 = vmatprep.subr.mxu0 0.0
  %186 = vmatpush1.msra.mxu0 0.0
  %187 = vmatprep.subr.mxu0 0.0
  %188 = vmatpush1.msra.mxu0 0.0
  %189 = vmatprep.subr.mxu0 0.0
  %190 = vmatpush1.msra.mxu0 0.0
  %191 = vmatprep.subr.mxu0 %v153
  %192 = vmatpush1.msra.mxu0 %v154
  %193 = vmatprep.subr.mxu0 0.0
  %194 = vmatpush2.msra.mxu0 0.0
  %195 = vmatprep.subr.mxu0 0.0
  %196 = vmatpush2.msra.mxu0 0.0
  %197 = vmatprep.subr.mxu0 0.0
  %198 = vmatpush2.msra.mxu0 0.0
  %199 = vmatprep.subr.mxu0 0.0
  %200 = vmatpush2.msra.mxu0 0.0
  %201 = vmatprep.subr.mxu0 0.0
  %202 = vmatpush2.msra.mxu0 0.0
  %203 = vmatprep.subr.mxu0 0.0
  %204 = vmatpush2.msra.mxu0 0.0
  %205 = vmatprep.subr.mxu0 0.0
  %206 = vmatpush2.msra.mxu0 0.0
  %207 = vmatprep.subr.mxu0 0.0
  %208 = vmatpush2.msra.mxu0 0.0
  %209 = vmatprep.subr.mxu0 0.0
  %210 = vmatpush2.msra.mxu0 0.0
  %211 = vmatprep.subr.mxu0 0.0
  %212 = vmatpush2.msra.mxu0 0.0
  %213 = vmatprep.subr.mxu0 0.0
  %214 = vmatpush2.msra.mxu0 0.0
  %215 = vmatprep.subr.mxu0 0.0
  %216 = vmatpush2.msra.mxu0 0.0
  %217 = vmatprep.subr.mxu0 0.0
  %218 = vmatpush2.msra.mxu0 0.0
  %219 = vmatprep.subr.mxu0 0.0
  %220 = vmatpush2.msra.mxu0 0.0
  %221 = vmatprep.subr.mxu0 0.0
  %222 = vmatpush2.msra.mxu0 0.0
  %223 = vmatprep.subr.mxu0 0.0
  %224 = vmatpush2.msra.mxu0 0.0
  %225 = vmatprep.mubr.f32.mxu0 0.0
  %226 = vmatmul.mubr.f32.gmra.mxu0 %v159
  %v227 = vpop.f32.mrf.mxu0
  %v228 = vadd.f32 0.0, %v227
  %v229 = vpop.f32.mrf.mxu0
  %v230 = vadd.f32 0.0, %v229
  %231 = vdwg.mxu0
  %v233 = vsel %vm157, %v147, 0
  %235 = vmatprep.subr.mxu0 0.0
  %236 = vmatpush1.msra.mxu0 0.0
  %237 = vmatprep.subr.mxu0 0.0
  %238 = vmatpush1.msra.mxu0 0.0
  %239 = vmatprep.subr.mxu0 0.0
  %240 = vmatpush1.msra.mxu0 0.0
  %241 = vmatprep.subr.mxu0 0.0
  %242 = vmatpush1.msra.mxu0 0.0
  %243 = vmatprep.subr.mxu0 0.0
  %244 = vmatpush1.msra.mxu0 0.0
  %245 = vmatprep.subr.mxu0 0.0
  %246 = vmatpush1.msra.mxu0 0.0
  %247 = vmatprep.subr.mxu0 0.0
  %248 = vmatpush1.msra.mxu0 0.0
  %249 = vmatprep.subr.mxu0 0.0
  %250 = vmatpush1.msra.mxu0 0.0
  %251 = vmatprep.subr.mxu0 0.0
  %252 = vmatpush1.msra.mxu0 0.0
  %253 = vmatprep.subr.mxu0 0.0
  %254 = vmatpush1.msra.mxu0 0.0
  %255 = vmatprep.subr.mxu0 0.0
  %256 = vmatpush1.msra.mxu0 0.0
  %257 = vmatprep.subr.mxu0 0.0
  %258 = vmatpush1.msra.mxu0 0.0
  %259 = vmatprep.subr.mxu0 0.0
  %260 = vmatpush1.msra.mxu0 0.0
  %261 = vmatprep.subr.mxu0 0.0
  %262 = vmatpush1.msra.mxu0 0.0
  %263 = vmatprep.subr.mxu0 0.0
  %264 = vmatpush1.msra.mxu0 0.0
  %265 = vmatprep.subr.mxu0 %v145
  %266 = vmatpush1.msra.mxu0 %v146
  %267 = vmatprep.subr.mxu0 0.0
  %268 = vmatpush2.msra.mxu0 0.0
  %269 = vmatprep.subr.mxu0 0.0
  %270 = vmatpush2.msra.mxu0 0.0
  %271 = vmatprep.subr.mxu0 0.0
  %272 = vmatpush2.msra.mxu0 0.0
  %273 = vmatprep.subr.mxu0 0.0
  %274 = vmatpush2.msra.mxu0 0.0
  %275 = vmatprep.subr.mxu0 0.0
  %276 = vmatpush2.msra.mxu0 0.0
  %277 = vmatprep.subr.mxu0 0.0
  %278 = vmatpush2.msra.mxu0 0.0
  %279 = vmatprep.subr.mxu0 0.0
  %280 = vmatpush2.msra.mxu0 0.0
  %281 = vmatprep.subr.mxu0 0.0
  %282 = vmatpush2.msra.mxu0 0.0
  %283 = vmatprep.subr.mxu0 0.0
  %284 = vmatpush2.msra.mxu0 0.0
  %285 = vmatprep.subr.mxu0 0.0
  %286 = vmatpush2.msra.mxu0 0.0
  %287 = vmatprep.subr.mxu0 0.0
  %288 = vmatpush2.msra.mxu0 0.0
  %289 = vmatprep.subr.mxu0 0.0
  %290 = vmatpush2.msra.mxu0 0.0
  %291 = vmatprep.subr.mxu0 0.0
  %292 = vmatpush2.msra.mxu0 0.0
  %293 = vmatprep.subr.mxu0 0.0
  %294 = vmatpush2.msra.mxu0 0.0
  %295 = vmatprep.subr.mxu0 0.0
  %296 = vmatpush2.msra.mxu0 0.0
  %297 = vmatprep.subr.mxu0 0.0
  %298 = vmatpush2.msra.mxu0 0.0
  %299 = vmatprep.mubr.f32.mxu0 0.0
  %300 = vmatmul.mubr.f32.gmra.mxu0 %v233
  %v301 = vpop.f32.mrf.mxu0
  %v302 = vadd.f32 %v228, %v301
  %v303 = vpop.f32.mrf.mxu0
  %v304 = vadd.f32 %v230, %v303
  %305 = vdwg.mxu0
  %s306 = scalar_lea.vmem %s4, 16
  %v307 = vld [vmem:[%s306] sm:$0xff]
  %v309 = vsel %vm157, %v307, 0
  %311 = vmatprep.subr.mxu0 0.0
  %312 = vmatpush1.msra.mxu0 0.0
  %313 = vmatprep.subr.mxu0 0.0
  %314 = vmatpush1.msra.mxu0 0.0
  %315 = vmatprep.subr.mxu0 0.0
  %316 = vmatpush1.msra.mxu0 0.0
  %317 = vmatprep.subr.mxu0 0.0
  %318 = vmatpush1.msra.mxu0 0.0
  %319 = vmatprep.subr.mxu0 0.0
  %320 = vmatpush1.msra.mxu0 0.0
  %321 = vmatprep.subr.mxu0 0.0
  %322 = vmatpush1.msra.mxu0 0.0
  %323 = vmatprep.subr.mxu0 0.0
  %324 = vmatpush1.msra.mxu0 0.0
  %325 = vmatprep.subr.mxu0 0.0
  %326 = vmatpush1.msra.mxu0 0.0
  %327 = vmatprep.subr.mxu0 0.0
  %328 = vmatpush1.msra.mxu0 0.0
  %329 = vmatprep.subr.mxu0 0.0
  %330 = vmatpush1.msra.mxu0 0.0
  %331 = vmatprep.subr.mxu0 0.0
  %332 = vmatpush1.msra.mxu0 0.0
  %333 = vmatprep.subr.mxu0 0.0
  %334 = vmatpush1.msra.mxu0 0.0
  %335 = vmatprep.subr.mxu0 0.0
  %336 = vmatpush1.msra.mxu0 0.0
  %337 = vmatprep.subr.mxu0 0.0
  %338 = vmatpush1.msra.mxu0 0.0
  %339 = vmatprep.subr.mxu0 0.0
  %340 = vmatpush1.msra.mxu0 0.0
  %341 = vmatprep.subr.mxu0 %v139
  %342 = vmatpush1.msra.mxu0 %v138
  %343 = vmatprep.subr.mxu0 0.0
  %344 = vmatpush2.msra.mxu0 0.0
  %345 = vmatprep.subr.mxu0 0.0
  %346 = vmatpush2.msra.mxu0 0.0
  %347 = vmatprep.subr.mxu0 0.0
  %348 = vmatpush2.msra.mxu0 0.0
  %349 = vmatprep.subr.mxu0 0.0
  %350 = vmatpush2.msra.mxu0 0.0
  %351 = vmatprep.subr.mxu0 0.0
  %352 = vmatpush2.msra.mxu0 0.0
  %353 = vmatprep.subr.mxu0 0.0
  %354 = vmatpush2.msra.mxu0 0.0
  %355 = vmatprep.subr.mxu0 0.0
  %356 = vmatpush2.msra.mxu0 0.0
  %357 = vmatprep.subr.mxu0 0.0
  %358 = vmatpush2.msra.mxu0 0.0
  %359 = vmatprep.subr.mxu0 0.0
  %360 = vmatpush2.msra.mxu0 0.0
  %361 = vmatprep.subr.mxu0 0.0
  %362 = vmatpush2.msra.mxu0 0.0
  %363 = vmatprep.subr.mxu0 0.0
  %364 = vmatpush2.msra.mxu0 0.0
  %365 = vmatprep.subr.mxu0 0.0
  %366 = vmatpush2.msra.mxu0 0.0
  %367 = vmatprep.subr.mxu0 0.0
  %368 = vmatpush2.msra.mxu0 0.0
  %369 = vmatprep.subr.mxu0 0.0
  %370 = vmatpush2.msra.mxu0 0.0
  %371 = vmatprep.subr.mxu0 0.0
  %372 = vmatpush2.msra.mxu0 0.0
  %373 = vmatprep.subr.mxu0 0.0
  %374 = vmatpush2.msra.mxu0 0.0
  %375 = vmatprep.mubr.f32.mxu0 0.0
  %376 = vmatmul.mubr.f32.gmra.mxu0 %v309
  %v377 = vpop.f32.mrf.mxu0
  %v378 = vadd.f32 0.0, %v377
  %v379 = vpop.f32.mrf.mxu0
  %v380 = vadd.f32 0.0, %v379
  %381 = vdwg.mxu0
  %v382 = vadd.f32 %v302, %v378
  %v383 = vadd.f32 %v304, %v380
  %384 = vrot.lane.b32.xlu0 %v138, 127
  %v385 = vpop.permute.xlu0 %384
  %386 = vrot.lane.b32.xlu0 %v139, 127
  %v387 = vpop.permute.xlu0 %386
  %vm388 = vcmp.lt.s32.totalorder %v24, 127
  %v389 = vsel %vm388, %v385, %v387
  %v390 = vsel %vm388, %v387, %v385
  %s391 = scalar_lea.vmem %s4, 24
  %v392 = vld [vmem:[%s391] sm:$0xff]
  %v394 = vsel %vm157, %v392, 0
  %396 = vmatprep.subr.mxu0 0.0
  %397 = vmatpush1.msra.mxu0 0.0
  %398 = vmatprep.subr.mxu0 0.0
  %399 = vmatpush1.msra.mxu0 0.0
  %400 = vmatprep.subr.mxu0 0.0
  %401 = vmatpush1.msra.mxu0 0.0
  %402 = vmatprep.subr.mxu0 0.0
  %403 = vmatpush1.msra.mxu0 0.0
  %404 = vmatprep.subr.mxu0 0.0
  %405 = vmatpush1.msra.mxu0 0.0
  %406 = vmatprep.subr.mxu0 0.0
  %407 = vmatpush1.msra.mxu0 0.0
  %408 = vmatprep.subr.mxu0 0.0
  %409 = vmatpush1.msra.mxu0 0.0
  %410 = vmatprep.subr.mxu0 0.0
  %411 = vmatpush1.msra.mxu0 0.0
  %412 = vmatprep.subr.mxu0 0.0
  %413 = vmatpush1.msra.mxu0 0.0
  %414 = vmatprep.subr.mxu0 0.0
  %415 = vmatpush1.msra.mxu0 0.0
  %416 = vmatprep.subr.mxu0 0.0
  %417 = vmatpush1.msra.mxu0 0.0
  %418 = vmatprep.subr.mxu0 0.0
  %419 = vmatpush1.msra.mxu0 0.0
  %420 = vmatprep.subr.mxu0 0.0
  %421 = vmatpush1.msra.mxu0 0.0
  %422 = vmatprep.subr.mxu0 0.0
  %423 = vmatpush1.msra.mxu0 0.0
  %424 = vmatprep.subr.mxu0 0.0
  %425 = vmatpush1.msra.mxu0 0.0
  %426 = vmatprep.subr.mxu0 %v390
  %427 = vmatpush1.msra.mxu0 %v389
  %428 = vmatprep.subr.mxu0 0.0
  %429 = vmatpush2.msra.mxu0 0.0
  %430 = vmatprep.subr.mxu0 0.0
  %431 = vmatpush2.msra.mxu0 0.0
  %432 = vmatprep.subr.mxu0 0.0
  %433 = vmatpush2.msra.mxu0 0.0
  %434 = vmatprep.subr.mxu0 0.0
  %435 = vmatpush2.msra.mxu0 0.0
  %436 = vmatprep.subr.mxu0 0.0
  %437 = vmatpush2.msra.mxu0 0.0
  %438 = vmatprep.subr.mxu0 0.0
  %439 = vmatpush2.msra.mxu0 0.0
  %440 = vmatprep.subr.mxu0 0.0
  %441 = vmatpush2.msra.mxu0 0.0
  %442 = vmatprep.subr.mxu0 0.0
  %443 = vmatpush2.msra.mxu0 0.0
  %444 = vmatprep.subr.mxu0 0.0
  %445 = vmatpush2.msra.mxu0 0.0
  %446 = vmatprep.subr.mxu0 0.0
  %447 = vmatpush2.msra.mxu0 0.0
  %448 = vmatprep.subr.mxu0 0.0
  %449 = vmatpush2.msra.mxu0 0.0
  %450 = vmatprep.subr.mxu0 0.0
  %451 = vmatpush2.msra.mxu0 0.0
  %452 = vmatprep.subr.mxu0 0.0
  %453 = vmatpush2.msra.mxu0 0.0
  %454 = vmatprep.subr.mxu0 0.0
  %455 = vmatpush2.msra.mxu0 0.0
  %456 = vmatprep.subr.mxu0 0.0
  %457 = vmatpush2.msra.mxu0 0.0
  %458 = vmatprep.subr.mxu0 0.0
  %459 = vmatpush2.msra.mxu0 0.0
  %460 = vmatprep.mubr.f32.mxu0 0.0
  %461 = vmatmul.mubr.f32.gmra.mxu0 %v394
  %v462 = vpop.f32.mrf.mxu0
  %v463 = vadd.f32 0.0, %v462
  %v464 = vpop.f32.mrf.mxu0
  %v465 = vadd.f32 0.0, %v464
  %466 = vdwg.mxu0
  %v467 = vadd.f32 %v382, %v463
  %v468 = vadd.f32 %v383, %v465
  %469 = vrot.lane.b32.xlu0 %v138, 126
  %v470 = vpop.permute.xlu0 %469
  %471 = vrot.lane.b32.xlu0 %v139, 126
  %v472 = vpop.permute.xlu0 %471
  %vm473 = vcmp.lt.s32.totalorder %v24, 126
  %v474 = vsel %vm473, %v470, %v472
  %v475 = vsel %vm473, %v472, %v470
  %s476 = scalar_lea.vmem %s4, 32
  %v477 = vld [vmem:[%s476] sm:$0xff]
  %v479 = vsel %vm157, %v477, 0
  %481 = vmatprep.subr.mxu0 0.0
  %482 = vmatpush1.msra.mxu0 0.0
  %483 = vmatprep.subr.mxu0 0.0
  %484 = vmatpush1.msra.mxu0 0.0
  %485 = vmatprep.subr.mxu0 0.0
  %486 = vmatpush1.msra.mxu0 0.0
  %487 = vmatprep.subr.mxu0 0.0
  %488 = vmatpush1.msra.mxu0 0.0
  %489 = vmatprep.subr.mxu0 0.0
  %490 = vmatpush1.msra.mxu0 0.0
  %491 = vmatprep.subr.mxu0 0.0
  %492 = vmatpush1.msra.mxu0 0.0
  %493 = vmatprep.subr.mxu0 0.0
  %494 = vmatpush1.msra.mxu0 0.0
  %495 = vmatprep.subr.mxu0 0.0
  %496 = vmatpush1.msra.mxu0 0.0
  %497 = vmatprep.subr.mxu0 0.0
  %498 = vmatpush1.msra.mxu0 0.0
  %499 = vmatprep.subr.mxu0 0.0
  %500 = vmatpush1.msra.mxu0 0.0
  %501 = vmatprep.subr.mxu0 0.0
  %502 = vmatpush1.msra.mxu0 0.0
  %503 = vmatprep.subr.mxu0 0.0
  %504 = vmatpush1.msra.mxu0 0.0
  %505 = vmatprep.subr.mxu0 0.0
  %506 = vmatpush1.msra.mxu0 0.0
  %507 = vmatprep.subr.mxu0 0.0
  %508 = vmatpush1.msra.mxu0 0.0
  %509 = vmatprep.subr.mxu0 0.0
  %510 = vmatpush1.msra.mxu0 0.0
  %511 = vmatprep.subr.mxu0 %v475
  %512 = vmatpush1.msra.mxu0 %v474
  %513 = vmatprep.subr.mxu0 0.0
  %514 = vmatpush2.msra.mxu0 0.0
  %515 = vmatprep.subr.mxu0 0.0
  %516 = vmatpush2.msra.mxu0 0.0
  %517 = vmatprep.subr.mxu0 0.0
  %518 = vmatpush2.msra.mxu0 0.0
  %519 = vmatprep.subr.mxu0 0.0
  %520 = vmatpush2.msra.mxu0 0.0
  %521 = vmatprep.subr.mxu0 0.0
  %522 = vmatpush2.msra.mxu0 0.0
  %523 = vmatprep.subr.mxu0 0.0
  %524 = vmatpush2.msra.mxu0 0.0
  %525 = vmatprep.subr.mxu0 0.0
  %526 = vmatpush2.msra.mxu0 0.0
  %527 = vmatprep.subr.mxu0 0.0
  %528 = vmatpush2.msra.mxu0 0.0
  %529 = vmatprep.subr.mxu0 0.0
  %530 = vmatpush2.msra.mxu0 0.0
  %531 = vmatprep.subr.mxu0 0.0
  %532 = vmatpush2.msra.mxu0 0.0
  %533 = vmatprep.subr.mxu0 0.0
  %534 = vmatpush2.msra.mxu0 0.0
  %535 = vmatprep.subr.mxu0 0.0
  %536 = vmatpush2.msra.mxu0 0.0
  %537 = vmatprep.subr.mxu0 0.0
  %538 = vmatpush2.msra.mxu0 0.0
  %539 = vmatprep.subr.mxu0 0.0
  %540 = vmatpush2.msra.mxu0 0.0
  %541 = vmatprep.subr.mxu0 0.0
  %542 = vmatpush2.msra.mxu0 0.0
  %543 = vmatprep.subr.mxu0 0.0
  %544 = vmatpush2.msra.mxu0 0.0
  %545 = vmatprep.mubr.f32.mxu0 0.0
  %546 = vmatmul.mubr.f32.gmra.mxu0 %v479
  %v547 = vpop.f32.mrf.mxu0
  %v548 = vadd.f32 0.0, %v547
  %v549 = vpop.f32.mrf.mxu0
  %v550 = vadd.f32 0.0, %v549
  %551 = vdwg.mxu0
  %v552 = vadd.f32 %v467, %v548
  %v553 = vadd.f32 %v468, %v550
  %v554 = vld [vmem:[%s5] sm:$0xff]
  %556 = vset.pattern.permute.xlu0 0
  %557 = vperm.xlu0 %556, %v554
  %v558 = vpop.permute.xlu0 %557
  %v560 = vadd.f32 %v552, %v558
  %v561 = vadd.f32 %v553, %v558
  %v562 = vmax.f32 %v560, 0.0
  %v563 = vmax.f32 %v561, 0.0
  %v564 = vmul.f32 %v562, %v137
  %v565 = vmul.f32 %v563, %v137
  %566 = vrot.lane.b32.xlu0 %v564, 2
  %v567 = vpop.permute.xlu0 %566
  %568 = vrot.lane.b32.xlu0 %v565, 2
  %v569 = vpop.permute.xlu0 %568
  %v570 = vsel %vm144, %v567, %v569
  %v571 = vsel %vm144, %v569, %v567
  %s572 = scalar_lea.vmem %s4, 40
  %v573 = vld [vmem:[%s572] sm:$0xff]
  %574 = vrot.lane.b32.xlu0 %v564, 1
  %v575 = vpop.permute.xlu0 %574
  %576 = vrot.lane.b32.xlu0 %v565, 1
  %v577 = vpop.permute.xlu0 %576
  %v578 = vsel %vm152, %v575, %v577
  %v579 = vsel %vm152, %v577, %v575
  %s580 = scalar_lea.vmem %s4, 48
  %v581 = vld [vmem:[%s580] sm:$0xff]
  %v583 = vsel %vm157, %v581, 0
  %585 = vmatprep.subr.mxu0 0.0
  %586 = vmatpush1.msra.mxu0 0.0
  %587 = vmatprep.subr.mxu0 0.0
  %588 = vmatpush1.msra.mxu0 0.0
  %589 = vmatprep.subr.mxu0 0.0
  %590 = vmatpush1.msra.mxu0 0.0
  %591 = vmatprep.subr.mxu0 0.0
  %592 = vmatpush1.msra.mxu0 0.0
  %593 = vmatprep.subr.mxu0 0.0
  %594 = vmatpush1.msra.mxu0 0.0
  %595 = vmatprep.subr.mxu0 0.0
  %596 = vmatpush1.msra.mxu0 0.0
  %597 = vmatprep.subr.mxu0 0.0
  %598 = vmatpush1.msra.mxu0 0.0
  %599 = vmatprep.subr.mxu0 0.0
  %600 = vmatpush1.msra.mxu0 0.0
  %601 = vmatprep.subr.mxu0 0.0
  %602 = vmatpush1.msra.mxu0 0.0
  %603 = vmatprep.subr.mxu0 0.0
  %604 = vmatpush1.msra.mxu0 0.0
  %605 = vmatprep.subr.mxu0 0.0
  %606 = vmatpush1.msra.mxu0 0.0
  %607 = vmatprep.subr.mxu0 0.0
  %608 = vmatpush1.msra.mxu0 0.0
  %609 = vmatprep.subr.mxu0 0.0
  %610 = vmatpush1.msra.mxu0 0.0
  %611 = vmatprep.subr.mxu0 0.0
  %612 = vmatpush1.msra.mxu0 0.0
  %613 = vmatprep.subr.mxu0 0.0
  %614 = vmatpush1.msra.mxu0 0.0
  %615 = vmatprep.subr.mxu0 %v578
  %616 = vmatpush1.msra.mxu0 %v579
  %617 = vmatprep.subr.mxu0 0.0
  %618 = vmatpush2.msra.mxu0 0.0
  %619 = vmatprep.subr.mxu0 0.0
  %620 = vmatpush2.msra.mxu0 0.0
  %621 = vmatprep.subr.mxu0 0.0
  %622 = vmatpush2.msra.mxu0 0.0
  %623 = vmatprep.subr.mxu0 0.0
  %624 = vmatpush2.msra.mxu0 0.0
  %625 = vmatprep.subr.mxu0 0.0
  %626 = vmatpush2.msra.mxu0 0.0
  %627 = vmatprep.subr.mxu0 0.0
  %628 = vmatpush2.msra.mxu0 0.0
  %629 = vmatprep.subr.mxu0 0.0
  %630 = vmatpush2.msra.mxu0 0.0
  %631 = vmatprep.subr.mxu0 0.0
  %632 = vmatpush2.msra.mxu0 0.0
  %633 = vmatprep.subr.mxu0 0.0
  %634 = vmatpush2.msra.mxu0 0.0
  %635 = vmatprep.subr.mxu0 0.0
  %636 = vmatpush2.msra.mxu0 0.0
  %637 = vmatprep.subr.mxu0 0.0
  %638 = vmatpush2.msra.mxu0 0.0
  %639 = vmatprep.subr.mxu0 0.0
  %640 = vmatpush2.msra.mxu0 0.0
  %641 = vmatprep.subr.mxu0 0.0
  %642 = vmatpush2.msra.mxu0 0.0
  %643 = vmatprep.subr.mxu0 0.0
  %644 = vmatpush2.msra.mxu0 0.0
  %645 = vmatprep.subr.mxu0 0.0
  %646 = vmatpush2.msra.mxu0 0.0
  %647 = vmatprep.subr.mxu0 0.0
  %648 = vmatpush2.msra.mxu0 0.0
  %649 = vmatprep.mubr.f32.mxu0 0.0
  %650 = vmatmul.mubr.f32.gmra.mxu0 %v583
  %v651 = vpop.f32.mrf.mxu0
  %v652 = vadd.f32 0.0, %v651
  %v653 = vpop.f32.mrf.mxu0
  %v654 = vadd.f32 0.0, %v653
  %655 = vdwg.mxu0
  %v657 = vsel %vm157, %v573, 0
  %659 = vmatprep.subr.mxu0 0.0
  %660 = vmatpush1.msra.mxu0 0.0
  %661 = vmatprep.subr.mxu0 0.0
  %662 = vmatpush1.msra.mxu0 0.0
  %663 = vmatprep.subr.mxu0 0.0
  %664 = vmatpush1.msra.mxu0 0.0
  %665 = vmatprep.subr.mxu0 0.0
  %666 = vmatpush1.msra.mxu0 0.0
  %667 = vmatprep.subr.mxu0 0.0
  %668 = vmatpush1.msra.mxu0 0.0
  %669 = vmatprep.subr.mxu0 0.0
  %670 = vmatpush1.msra.mxu0 0.0
  %671 = vmatprep.subr.mxu0 0.0
  %672 = vmatpush1.msra.mxu0 0.0
  %673 = vmatprep.subr.mxu0 0.0
  %674 = vmatpush1.msra.mxu0 0.0
  %675 = vmatprep.subr.mxu0 0.0
  %676 = vmatpush1.msra.mxu0 0.0
  %677 = vmatprep.subr.mxu0 0.0
  %678 = vmatpush1.msra.mxu0 0.0
  %679 = vmatprep.subr.mxu0 0.0
  %680 = vmatpush1.msra.mxu0 0.0
  %681 = vmatprep.subr.mxu0 0.0
  %682 = vmatpush1.msra.mxu0 0.0
  %683 = vmatprep.subr.mxu0 0.0
  %684 = vmatpush1.msra.mxu0 0.0
  %685 = vmatprep.subr.mxu0 0.0
  %686 = vmatpush1.msra.mxu0 0.0
  %687 = vmatprep.subr.mxu0 0.0
  %688 = vmatpush1.msra.mxu0 0.0
  %689 = vmatprep.subr.mxu0 %v570
  %690 = vmatpush1.msra.mxu0 %v571
  %691 = vmatprep.subr.mxu0 0.0
  %692 = vmatpush2.msra.mxu0 0.0
  %693 = vmatprep.subr.mxu0 0.0
  %694 = vmatpush2.msra.mxu0 0.0
  %695 = vmatprep.subr.mxu0 0.0
  %696 = vmatpush2.msra.mxu0 0.0
  %697 = vmatprep.subr.mxu0 0.0
  %698 = vmatpush2.msra.mxu0 0.0
  %699 = vmatprep.subr.mxu0 0.0
  %700 = vmatpush2.msra.mxu0 0.0
  %701 = vmatprep.subr.mxu0 0.0
  %702 = vmatpush2.msra.mxu0 0.0
  %703 = vmatprep.subr.mxu0 0.0
  %704 = vmatpush2.msra.mxu0 0.0
  %705 = vmatprep.subr.mxu0 0.0
  %706 = vmatpush2.msra.mxu0 0.0
  %707 = vmatprep.subr.mxu0 0.0
  %708 = vmatpush2.msra.mxu0 0.0
  %709 = vmatprep.subr.mxu0 0.0
  %710 = vmatpush2.msra.mxu0 0.0
  %711 = vmatprep.subr.mxu0 0.0
  %712 = vmatpush2.msra.mxu0 0.0
  %713 = vmatprep.subr.mxu0 0.0
  %714 = vmatpush2.msra.mxu0 0.0
  %715 = vmatprep.subr.mxu0 0.0
  %716 = vmatpush2.msra.mxu0 0.0
  %717 = vmatprep.subr.mxu0 0.0
  %718 = vmatpush2.msra.mxu0 0.0
  %719 = vmatprep.subr.mxu0 0.0
  %720 = vmatpush2.msra.mxu0 0.0
  %721 = vmatprep.subr.mxu0 0.0
  %722 = vmatpush2.msra.mxu0 0.0
  %723 = vmatprep.mubr.f32.mxu0 0.0
  %724 = vmatmul.mubr.f32.gmra.mxu0 %v657
  %v725 = vpop.f32.mrf.mxu0
  %v726 = vadd.f32 %v652, %v725
  %v727 = vpop.f32.mrf.mxu0
  %v728 = vadd.f32 %v654, %v727
  %729 = vdwg.mxu0
  %s730 = scalar_lea.vmem %s4, 56
  %v731 = vld [vmem:[%s730] sm:$0xff]
  %v733 = vsel %vm157, %v731, 0
  %735 = vmatprep.subr.mxu0 0.0
  %736 = vmatpush1.msra.mxu0 0.0
  %737 = vmatprep.subr.mxu0 0.0
  %738 = vmatpush1.msra.mxu0 0.0
  %739 = vmatprep.subr.mxu0 0.0
  %740 = vmatpush1.msra.mxu0 0.0
  %741 = vmatprep.subr.mxu0 0.0
  %742 = vmatpush1.msra.mxu0 0.0
  %743 = vmatprep.subr.mxu0 0.0
  %744 = vmatpush1.msra.mxu0 0.0
  %745 = vmatprep.subr.mxu0 0.0
  %746 = vmatpush1.msra.mxu0 0.0
  %747 = vmatprep.subr.mxu0 0.0
  %748 = vmatpush1.msra.mxu0 0.0
  %749 = vmatprep.subr.mxu0 0.0
  %750 = vmatpush1.msra.mxu0 0.0
  %751 = vmatprep.subr.mxu0 0.0
  %752 = vmatpush1.msra.mxu0 0.0
  %753 = vmatprep.subr.mxu0 0.0
  %754 = vmatpush1.msra.mxu0 0.0
  %755 = vmatprep.subr.mxu0 0.0
  %756 = vmatpush1.msra.mxu0 0.0
  %757 = vmatprep.subr.mxu0 0.0
  %758 = vmatpush1.msra.mxu0 0.0
  %759 = vmatprep.subr.mxu0 0.0
  %760 = vmatpush1.msra.mxu0 0.0
  %761 = vmatprep.subr.mxu0 0.0
  %762 = vmatpush1.msra.mxu0 0.0
  %763 = vmatprep.subr.mxu0 0.0
  %764 = vmatpush1.msra.mxu0 0.0
  %765 = vmatprep.subr.mxu0 %v565
  %766 = vmatpush1.msra.mxu0 %v564
  %767 = vmatprep.subr.mxu0 0.0
  %768 = vmatpush2.msra.mxu0 0.0
  %769 = vmatprep.subr.mxu0 0.0
  %770 = vmatpush2.msra.mxu0 0.0
  %771 = vmatprep.subr.mxu0 0.0
  %772 = vmatpush2.msra.mxu0 0.0
  %773 = vmatprep.subr.mxu0 0.0
  %774 = vmatpush2.msra.mxu0 0.0
  %775 = vmatprep.subr.mxu0 0.0
  %776 = vmatpush2.msra.mxu0 0.0
  %777 = vmatprep.subr.mxu0 0.0
  %778 = vmatpush2.msra.mxu0 0.0
  %779 = vmatprep.subr.mxu0 0.0
  %780 = vmatpush2.msra.mxu0 0.0
  %781 = vmatprep.subr.mxu0 0.0
  %782 = vmatpush2.msra.mxu0 0.0
  %783 = vmatprep.subr.mxu0 0.0
  %784 = vmatpush2.msra.mxu0 0.0
  %785 = vmatprep.subr.mxu0 0.0
  %786 = vmatpush2.msra.mxu0 0.0
  %787 = vmatprep.subr.mxu0 0.0
  %788 = vmatpush2.msra.mxu0 0.0
  %789 = vmatprep.subr.mxu0 0.0
  %790 = vmatpush2.msra.mxu0 0.0
  %791 = vmatprep.subr.mxu0 0.0
  %792 = vmatpush2.msra.mxu0 0.0
  %793 = vmatprep.subr.mxu0 0.0
  %794 = vmatpush2.msra.mxu0 0.0
  %795 = vmatprep.subr.mxu0 0.0
  %796 = vmatpush2.msra.mxu0 0.0
  %797 = vmatprep.subr.mxu0 0.0
  %798 = vmatpush2.msra.mxu0 0.0
  %799 = vmatprep.mubr.f32.mxu0 0.0
  %800 = vmatmul.mubr.f32.gmra.mxu0 %v733
  %v801 = vpop.f32.mrf.mxu0
  %v802 = vadd.f32 0.0, %v801
  %v803 = vpop.f32.mrf.mxu0
  %v804 = vadd.f32 0.0, %v803
  %805 = vdwg.mxu0
  %v806 = vadd.f32 %v726, %v802
  %v807 = vadd.f32 %v728, %v804
  %808 = vrot.lane.b32.xlu0 %v564, 127
  %v809 = vpop.permute.xlu0 %808
  %810 = vrot.lane.b32.xlu0 %v565, 127
  %v811 = vpop.permute.xlu0 %810
  %v812 = vsel %vm388, %v809, %v811
  %v813 = vsel %vm388, %v811, %v809
  %s814 = scalar_lea.vmem %s4, 64
  %v815 = vld [vmem:[%s814] sm:$0xff]
  %v817 = vsel %vm157, %v815, 0
  %819 = vmatprep.subr.mxu0 0.0
  %820 = vmatpush1.msra.mxu0 0.0
  %821 = vmatprep.subr.mxu0 0.0
  %822 = vmatpush1.msra.mxu0 0.0
  %823 = vmatprep.subr.mxu0 0.0
  %824 = vmatpush1.msra.mxu0 0.0
  %825 = vmatprep.subr.mxu0 0.0
  %826 = vmatpush1.msra.mxu0 0.0
  %827 = vmatprep.subr.mxu0 0.0
  %828 = vmatpush1.msra.mxu0 0.0
  %829 = vmatprep.subr.mxu0 0.0
  %830 = vmatpush1.msra.mxu0 0.0
  %831 = vmatprep.subr.mxu0 0.0
  %832 = vmatpush1.msra.mxu0 0.0
  %833 = vmatprep.subr.mxu0 0.0
  %834 = vmatpush1.msra.mxu0 0.0
  %835 = vmatprep.subr.mxu0 0.0
  %836 = vmatpush1.msra.mxu0 0.0
  %837 = vmatprep.subr.mxu0 0.0
  %838 = vmatpush1.msra.mxu0 0.0
  %839 = vmatprep.subr.mxu0 0.0
  %840 = vmatpush1.msra.mxu0 0.0
  %841 = vmatprep.subr.mxu0 0.0
  %842 = vmatpush1.msra.mxu0 0.0
  %843 = vmatprep.subr.mxu0 0.0
  %844 = vmatpush1.msra.mxu0 0.0
  %845 = vmatprep.subr.mxu0 0.0
  %846 = vmatpush1.msra.mxu0 0.0
  %847 = vmatprep.subr.mxu0 0.0
  %848 = vmatpush1.msra.mxu0 0.0
  %849 = vmatprep.subr.mxu0 %v813
  %850 = vmatpush1.msra.mxu0 %v812
  %851 = vmatprep.subr.mxu0 0.0
  %852 = vmatpush2.msra.mxu0 0.0
  %853 = vmatprep.subr.mxu0 0.0
  %854 = vmatpush2.msra.mxu0 0.0
  %855 = vmatprep.subr.mxu0 0.0
  %856 = vmatpush2.msra.mxu0 0.0
  %857 = vmatprep.subr.mxu0 0.0
  %858 = vmatpush2.msra.mxu0 0.0
  %859 = vmatprep.subr.mxu0 0.0
  %860 = vmatpush2.msra.mxu0 0.0
  %861 = vmatprep.subr.mxu0 0.0
  %862 = vmatpush2.msra.mxu0 0.0
  %863 = vmatprep.subr.mxu0 0.0
  %864 = vmatpush2.msra.mxu0 0.0
  %865 = vmatprep.subr.mxu0 0.0
  %866 = vmatpush2.msra.mxu0 0.0
  %867 = vmatprep.subr.mxu0 0.0
  %868 = vmatpush2.msra.mxu0 0.0
  %869 = vmatprep.subr.mxu0 0.0
  %870 = vmatpush2.msra.mxu0 0.0
  %871 = vmatprep.subr.mxu0 0.0
  %872 = vmatpush2.msra.mxu0 0.0
  %873 = vmatprep.subr.mxu0 0.0
  %874 = vmatpush2.msra.mxu0 0.0
  %875 = vmatprep.subr.mxu0 0.0
  %876 = vmatpush2.msra.mxu0 0.0
  %877 = vmatprep.subr.mxu0 0.0
  %878 = vmatpush2.msra.mxu0 0.0
  %879 = vmatprep.subr.mxu0 0.0
  %880 = vmatpush2.msra.mxu0 0.0
  %881 = vmatprep.subr.mxu0 0.0
  %882 = vmatpush2.msra.mxu0 0.0
  %883 = vmatprep.mubr.f32.mxu0 0.0
  %884 = vmatmul.mubr.f32.gmra.mxu0 %v817
  %v885 = vpop.f32.mrf.mxu0
  %v886 = vadd.f32 0.0, %v885
  %v887 = vpop.f32.mrf.mxu0
  %v888 = vadd.f32 0.0, %v887
  %889 = vdwg.mxu0
  %v890 = vadd.f32 %v806, %v886
  %v891 = vadd.f32 %v807, %v888
  %892 = vrot.lane.b32.xlu0 %v564, 126
  %v893 = vpop.permute.xlu0 %892
  %894 = vrot.lane.b32.xlu0 %v565, 126
  %v895 = vpop.permute.xlu0 %894
  %v896 = vsel %vm473, %v893, %v895
  %v897 = vsel %vm473, %v895, %v893
  %s898 = scalar_lea.vmem %s4, 72
  %v899 = vld [vmem:[%s898] sm:$0xff]
  %v901 = vsel %vm157, %v899, 0
  %903 = vmatprep.subr.mxu0 0.0
  %904 = vmatpush1.msra.mxu0 0.0
  %905 = vmatprep.subr.mxu0 0.0
  %906 = vmatpush1.msra.mxu0 0.0
  %907 = vmatprep.subr.mxu0 0.0
  %908 = vmatpush1.msra.mxu0 0.0
  %909 = vmatprep.subr.mxu0 0.0
  %910 = vmatpush1.msra.mxu0 0.0
  %911 = vmatprep.subr.mxu0 0.0
  %912 = vmatpush1.msra.mxu0 0.0
  %913 = vmatprep.subr.mxu0 0.0
  %914 = vmatpush1.msra.mxu0 0.0
  %915 = vmatprep.subr.mxu0 0.0
  %916 = vmatpush1.msra.mxu0 0.0
  %917 = vmatprep.subr.mxu0 0.0
  %918 = vmatpush1.msra.mxu0 0.0
  %919 = vmatprep.subr.mxu0 0.0
  %920 = vmatpush1.msra.mxu0 0.0
  %921 = vmatprep.subr.mxu0 0.0
  %922 = vmatpush1.msra.mxu0 0.0
  %923 = vmatprep.subr.mxu0 0.0
  %924 = vmatpush1.msra.mxu0 0.0
  %925 = vmatprep.subr.mxu0 0.0
  %926 = vmatpush1.msra.mxu0 0.0
  %927 = vmatprep.subr.mxu0 0.0
  %928 = vmatpush1.msra.mxu0 0.0
  %929 = vmatprep.subr.mxu0 0.0
  %930 = vmatpush1.msra.mxu0 0.0
  %931 = vmatprep.subr.mxu0 0.0
  %932 = vmatpush1.msra.mxu0 0.0
  %933 = vmatprep.subr.mxu0 %v897
  %934 = vmatpush1.msra.mxu0 %v896
  %935 = vmatprep.subr.mxu0 0.0
  %936 = vmatpush2.msra.mxu0 0.0
  %937 = vmatprep.subr.mxu0 0.0
  %938 = vmatpush2.msra.mxu0 0.0
  %939 = vmatprep.subr.mxu0 0.0
  %940 = vmatpush2.msra.mxu0 0.0
  %941 = vmatprep.subr.mxu0 0.0
  %942 = vmatpush2.msra.mxu0 0.0
  %943 = vmatprep.subr.mxu0 0.0
  %944 = vmatpush2.msra.mxu0 0.0
  %945 = vmatprep.subr.mxu0 0.0
  %946 = vmatpush2.msra.mxu0 0.0
  %947 = vmatprep.subr.mxu0 0.0
  %948 = vmatpush2.msra.mxu0 0.0
  %949 = vmatprep.subr.mxu0 0.0
  %950 = vmatpush2.msra.mxu0 0.0
  %951 = vmatprep.subr.mxu0 0.0
  %952 = vmatpush2.msra.mxu0 0.0
  %953 = vmatprep.subr.mxu0 0.0
  %954 = vmatpush2.msra.mxu0 0.0
  %955 = vmatprep.subr.mxu0 0.0
  %956 = vmatpush2.msra.mxu0 0.0
  %957 = vmatprep.subr.mxu0 0.0
  %958 = vmatpush2.msra.mxu0 0.0
  %959 = vmatprep.subr.mxu0 0.0
  %960 = vmatpush2.msra.mxu0 0.0
  %961 = vmatprep.subr.mxu0 0.0
  %962 = vmatpush2.msra.mxu0 0.0
  %963 = vmatprep.subr.mxu0 0.0
  %964 = vmatpush2.msra.mxu0 0.0
  %965 = vmatprep.subr.mxu0 0.0
  %966 = vmatpush2.msra.mxu0 0.0
  %967 = vmatprep.mubr.f32.mxu0 0.0
  %968 = vmatmul.mubr.f32.gmra.mxu0 %v901
  %v969 = vpop.f32.mrf.mxu0
  %v970 = vadd.f32 0.0, %v969
  %v971 = vpop.f32.mrf.mxu0
  %v972 = vadd.f32 0.0, %v971
  %973 = vdwg.mxu0
  %v974 = vadd.f32 %v890, %v970
  %v975 = vadd.f32 %v891, %v972
  %s976 = scalar_lea.vmem %s5, 8
  %v977 = vld [vmem:[%s976] sm:$0xff]
  %979 = vset.pattern.permute.xlu0 0
  %980 = vperm.xlu0 %979, %v977
  %v981 = vpop.permute.xlu0 %980
  %v983 = vadd.f32 %v974, %v981
  %v984 = vadd.f32 %v975, %v981
  %v985 = vmax.f32 %v983, 0.0
  %v986 = vmax.f32 %v984, 0.0
  %s987 = scalar_lea.vmem %s4, 80
  %v988 = vld [vmem:[%s987] sm:$0xff]
  %s989 = scalar_lea.vmem %s5, 16
  %v990 = vld [vmem:[%s989] sm:$0xff]
  %992 = vset.pattern.permute.xlu0 0
  %993 = vperm.xlu0 %992, %v990
  %v994 = vpop.permute.xlu0 %993
  %v997 = vsel %vm157, %v988, 0
  %999 = vmatprep.subr.mxu0 0.0
  %1000 = vmatpush1.msra.mxu0 0.0
  %1001 = vmatprep.subr.mxu0 0.0
  %1002 = vmatpush1.msra.mxu0 0.0
  %1003 = vmatprep.subr.mxu0 0.0
  %1004 = vmatpush1.msra.mxu0 0.0
  %1005 = vmatprep.subr.mxu0 0.0
  %1006 = vmatpush1.msra.mxu0 0.0
  %1007 = vmatprep.subr.mxu0 0.0
  %1008 = vmatpush1.msra.mxu0 0.0
  %1009 = vmatprep.subr.mxu0 0.0
  %1010 = vmatpush1.msra.mxu0 0.0
  %1011 = vmatprep.subr.mxu0 0.0
  %1012 = vmatpush1.msra.mxu0 0.0
  %1013 = vmatprep.subr.mxu0 0.0
  %1014 = vmatpush1.msra.mxu0 0.0
  %1015 = vmatprep.subr.mxu0 0.0
  %1016 = vmatpush1.msra.mxu0 0.0
  %1017 = vmatprep.subr.mxu0 0.0
  %1018 = vmatpush1.msra.mxu0 0.0
  %1019 = vmatprep.subr.mxu0 0.0
  %1020 = vmatpush1.msra.mxu0 0.0
  %1021 = vmatprep.subr.mxu0 0.0
  %1022 = vmatpush1.msra.mxu0 0.0
  %1023 = vmatprep.subr.mxu0 0.0
  %1024 = vmatpush1.msra.mxu0 0.0
  %1025 = vmatprep.subr.mxu0 0.0
  %1026 = vmatpush1.msra.mxu0 0.0
  %1027 = vmatprep.subr.mxu0 0.0
  %1028 = vmatpush1.msra.mxu0 0.0
  %1029 = vmatprep.subr.mxu0 %v133
  %1030 = vmatpush1.msra.mxu0 %v132
  %1031 = vmatprep.subr.mxu0 0.0
  %1032 = vmatpush2.msra.mxu0 0.0
  %1033 = vmatprep.subr.mxu0 0.0
  %1034 = vmatpush2.msra.mxu0 0.0
  %1035 = vmatprep.subr.mxu0 0.0
  %1036 = vmatpush2.msra.mxu0 0.0
  %1037 = vmatprep.subr.mxu0 0.0
  %1038 = vmatpush2.msra.mxu0 0.0
  %1039 = vmatprep.subr.mxu0 0.0
  %1040 = vmatpush2.msra.mxu0 0.0
  %1041 = vmatprep.subr.mxu0 0.0
  %1042 = vmatpush2.msra.mxu0 0.0
  %1043 = vmatprep.subr.mxu0 0.0
  %1044 = vmatpush2.msra.mxu0 0.0
  %1045 = vmatprep.subr.mxu0 0.0
  %1046 = vmatpush2.msra.mxu0 0.0
  %1047 = vmatprep.subr.mxu0 0.0
  %1048 = vmatpush2.msra.mxu0 0.0
  %1049 = vmatprep.subr.mxu0 0.0
  %1050 = vmatpush2.msra.mxu0 0.0
  %1051 = vmatprep.subr.mxu0 0.0
  %1052 = vmatpush2.msra.mxu0 0.0
  %1053 = vmatprep.subr.mxu0 0.0
  %1054 = vmatpush2.msra.mxu0 0.0
  %1055 = vmatprep.subr.mxu0 0.0
  %1056 = vmatpush2.msra.mxu0 0.0
  %1057 = vmatprep.subr.mxu0 0.0
  %1058 = vmatpush2.msra.mxu0 0.0
  %1059 = vmatprep.subr.mxu0 0.0
  %1060 = vmatpush2.msra.mxu0 0.0
  %1061 = vmatprep.subr.mxu0 0.0
  %1062 = vmatpush2.msra.mxu0 0.0
  %1063 = vmatprep.mubr.f32.mxu0 0.0
  %1064 = vmatmul.mubr.f32.gmra.mxu0 %v997
  %v1065 = vpop.f32.mrf.mxu0
  %v1066 = vadd.f32 %v994, %v1065
  %v1067 = vpop.f32.mrf.mxu0
  %v1068 = vadd.f32 %v994, %v1067
  %1069 = vdwg.mxu0
  %v1070 = vadd.f32 %v985, %v1066
  %v1071 = vadd.f32 %v986, %v1068
  %v1072 = vmul.f32 %v1070, %v137
  %v1073 = vmul.f32 %v1071, %v137
  %1074 = vrot.lane.b32.xlu0 %v1072, 4
  %v1075 = vpop.permute.xlu0 %1074
  %1076 = vrot.lane.b32.xlu0 %v1073, 4
  %v1077 = vpop.permute.xlu0 %1076
  %vm1078 = vcmp.lt.s32.totalorder %v24, 4
  %v1079 = vsel %vm1078, %v1075, %v1077
  %v1080 = vsel %vm1078, %v1077, %v1075
  %s1081 = scalar_lea.vmem %s4, 88
  %v1082 = vld [vmem:[%s1081] sm:$0xff]
  %1083 = vrot.lane.b32.xlu0 %v1072, 2
  %v1084 = vpop.permute.xlu0 %1083
  %1085 = vrot.lane.b32.xlu0 %v1073, 2
  %v1086 = vpop.permute.xlu0 %1085
  %v1087 = vsel %vm144, %v1084, %v1086
  %v1088 = vsel %vm144, %v1086, %v1084
  %s1089 = scalar_lea.vmem %s4, 96
  %v1090 = vld [vmem:[%s1089] sm:$0xff]
  %v1092 = vsel %vm157, %v1090, 0
  %1094 = vmatprep.subr.mxu0 0.0
  %1095 = vmatpush1.msra.mxu0 0.0
  %1096 = vmatprep.subr.mxu0 0.0
  %1097 = vmatpush1.msra.mxu0 0.0
  %1098 = vmatprep.subr.mxu0 0.0
  %1099 = vmatpush1.msra.mxu0 0.0
  %1100 = vmatprep.subr.mxu0 0.0
  %1101 = vmatpush1.msra.mxu0 0.0
  %1102 = vmatprep.subr.mxu0 0.0
  %1103 = vmatpush1.msra.mxu0 0.0
  %1104 = vmatprep.subr.mxu0 0.0
  %1105 = vmatpush1.msra.mxu0 0.0
  %1106 = vmatprep.subr.mxu0 0.0
  %1107 = vmatpush1.msra.mxu0 0.0
  %1108 = vmatprep.subr.mxu0 0.0
  %1109 = vmatpush1.msra.mxu0 0.0
  %1110 = vmatprep.subr.mxu0 0.0
  %1111 = vmatpush1.msra.mxu0 0.0
  %1112 = vmatprep.subr.mxu0 0.0
  %1113 = vmatpush1.msra.mxu0 0.0
  %1114 = vmatprep.subr.mxu0 0.0
  %1115 = vmatpush1.msra.mxu0 0.0
  %1116 = vmatprep.subr.mxu0 0.0
  %1117 = vmatpush1.msra.mxu0 0.0
  %1118 = vmatprep.subr.mxu0 0.0
  %1119 = vmatpush1.msra.mxu0 0.0
  %1120 = vmatprep.subr.mxu0 0.0
  %1121 = vmatpush1.msra.mxu0 0.0
  %1122 = vmatprep.subr.mxu0 0.0
  %1123 = vmatpush1.msra.mxu0 0.0
  %1124 = vmatprep.subr.mxu0 %v1087
  %1125 = vmatpush1.msra.mxu0 %v1088
  %1126 = vmatprep.subr.mxu0 0.0
  %1127 = vmatpush2.msra.mxu0 0.0
  %1128 = vmatprep.subr.mxu0 0.0
  %1129 = vmatpush2.msra.mxu0 0.0
  %1130 = vmatprep.subr.mxu0 0.0
  %1131 = vmatpush2.msra.mxu0 0.0
  %1132 = vmatprep.subr.mxu0 0.0
  %1133 = vmatpush2.msra.mxu0 0.0
  %1134 = vmatprep.subr.mxu0 0.0
  %1135 = vmatpush2.msra.mxu0 0.0
  %1136 = vmatprep.subr.mxu0 0.0
  %1137 = vmatpush2.msra.mxu0 0.0
  %1138 = vmatprep.subr.mxu0 0.0
  %1139 = vmatpush2.msra.mxu0 0.0
  %1140 = vmatprep.subr.mxu0 0.0
  %1141 = vmatpush2.msra.mxu0 0.0
  %1142 = vmatprep.subr.mxu0 0.0
  %1143 = vmatpush2.msra.mxu0 0.0
  %1144 = vmatprep.subr.mxu0 0.0
  %1145 = vmatpush2.msra.mxu0 0.0
  %1146 = vmatprep.subr.mxu0 0.0
  %1147 = vmatpush2.msra.mxu0 0.0
  %1148 = vmatprep.subr.mxu0 0.0
  %1149 = vmatpush2.msra.mxu0 0.0
  %1150 = vmatprep.subr.mxu0 0.0
  %1151 = vmatpush2.msra.mxu0 0.0
  %1152 = vmatprep.subr.mxu0 0.0
  %1153 = vmatpush2.msra.mxu0 0.0
  %1154 = vmatprep.subr.mxu0 0.0
  %1155 = vmatpush2.msra.mxu0 0.0
  %1156 = vmatprep.subr.mxu0 0.0
  %1157 = vmatpush2.msra.mxu0 0.0
  %1158 = vmatprep.mubr.f32.mxu0 0.0
  %1159 = vmatmul.mubr.f32.gmra.mxu0 %v1092
  %v1160 = vpop.f32.mrf.mxu0
  %v1161 = vadd.f32 0.0, %v1160
  %v1162 = vpop.f32.mrf.mxu0
  %v1163 = vadd.f32 0.0, %v1162
  %1164 = vdwg.mxu0
  %v1166 = vsel %vm157, %v1082, 0
  %1168 = vmatprep.subr.mxu0 0.0
  %1169 = vmatpush1.msra.mxu0 0.0
  %1170 = vmatprep.subr.mxu0 0.0
  %1171 = vmatpush1.msra.mxu0 0.0
  %1172 = vmatprep.subr.mxu0 0.0
  %1173 = vmatpush1.msra.mxu0 0.0
  %1174 = vmatprep.subr.mxu0 0.0
  %1175 = vmatpush1.msra.mxu0 0.0
  %1176 = vmatprep.subr.mxu0 0.0
  %1177 = vmatpush1.msra.mxu0 0.0
  %1178 = vmatprep.subr.mxu0 0.0
  %1179 = vmatpush1.msra.mxu0 0.0
  %1180 = vmatprep.subr.mxu0 0.0
  %1181 = vmatpush1.msra.mxu0 0.0
  %1182 = vmatprep.subr.mxu0 0.0
  %1183 = vmatpush1.msra.mxu0 0.0
  %1184 = vmatprep.subr.mxu0 0.0
  %1185 = vmatpush1.msra.mxu0 0.0
  %1186 = vmatprep.subr.mxu0 0.0
  %1187 = vmatpush1.msra.mxu0 0.0
  %1188 = vmatprep.subr.mxu0 0.0
  %1189 = vmatpush1.msra.mxu0 0.0
  %1190 = vmatprep.subr.mxu0 0.0
  %1191 = vmatpush1.msra.mxu0 0.0
  %1192 = vmatprep.subr.mxu0 0.0
  %1193 = vmatpush1.msra.mxu0 0.0
  %1194 = vmatprep.subr.mxu0 0.0
  %1195 = vmatpush1.msra.mxu0 0.0
  %1196 = vmatprep.subr.mxu0 0.0
  %1197 = vmatpush1.msra.mxu0 0.0
  %1198 = vmatprep.subr.mxu0 %v1079
  %1199 = vmatpush1.msra.mxu0 %v1080
  %1200 = vmatprep.subr.mxu0 0.0
  %1201 = vmatpush2.msra.mxu0 0.0
  %1202 = vmatprep.subr.mxu0 0.0
  %1203 = vmatpush2.msra.mxu0 0.0
  %1204 = vmatprep.subr.mxu0 0.0
  %1205 = vmatpush2.msra.mxu0 0.0
  %1206 = vmatprep.subr.mxu0 0.0
  %1207 = vmatpush2.msra.mxu0 0.0
  %1208 = vmatprep.subr.mxu0 0.0
  %1209 = vmatpush2.msra.mxu0 0.0
  %1210 = vmatprep.subr.mxu0 0.0
  %1211 = vmatpush2.msra.mxu0 0.0
  %1212 = vmatprep.subr.mxu0 0.0
  %1213 = vmatpush2.msra.mxu0 0.0
  %1214 = vmatprep.subr.mxu0 0.0
  %1215 = vmatpush2.msra.mxu0 0.0
  %1216 = vmatprep.subr.mxu0 0.0
  %1217 = vmatpush2.msra.mxu0 0.0
  %1218 = vmatprep.subr.mxu0 0.0
  %1219 = vmatpush2.msra.mxu0 0.0
  %1220 = vmatprep.subr.mxu0 0.0
  %1221 = vmatpush2.msra.mxu0 0.0
  %1222 = vmatprep.subr.mxu0 0.0
  %1223 = vmatpush2.msra.mxu0 0.0
  %1224 = vmatprep.subr.mxu0 0.0
  %1225 = vmatpush2.msra.mxu0 0.0
  %1226 = vmatprep.subr.mxu0 0.0
  %1227 = vmatpush2.msra.mxu0 0.0
  %1228 = vmatprep.subr.mxu0 0.0
  %1229 = vmatpush2.msra.mxu0 0.0
  %1230 = vmatprep.subr.mxu0 0.0
  %1231 = vmatpush2.msra.mxu0 0.0
  %1232 = vmatprep.mubr.f32.mxu0 0.0
  %1233 = vmatmul.mubr.f32.gmra.mxu0 %v1166
  %v1234 = vpop.f32.mrf.mxu0
  %v1235 = vadd.f32 %v1161, %v1234
  %v1236 = vpop.f32.mrf.mxu0
  %v1237 = vadd.f32 %v1163, %v1236
  %1238 = vdwg.mxu0
  %s1239 = scalar_lea.vmem %s4, 104
  %v1240 = vld [vmem:[%s1239] sm:$0xff]
  %v1242 = vsel %vm157, %v1240, 0
  %1244 = vmatprep.subr.mxu0 0.0
  %1245 = vmatpush1.msra.mxu0 0.0
  %1246 = vmatprep.subr.mxu0 0.0
  %1247 = vmatpush1.msra.mxu0 0.0
  %1248 = vmatprep.subr.mxu0 0.0
  %1249 = vmatpush1.msra.mxu0 0.0
  %1250 = vmatprep.subr.mxu0 0.0
  %1251 = vmatpush1.msra.mxu0 0.0
  %1252 = vmatprep.subr.mxu0 0.0
  %1253 = vmatpush1.msra.mxu0 0.0
  %1254 = vmatprep.subr.mxu0 0.0
  %1255 = vmatpush1.msra.mxu0 0.0
  %1256 = vmatprep.subr.mxu0 0.0
  %1257 = vmatpush1.msra.mxu0 0.0
  %1258 = vmatprep.subr.mxu0 0.0
  %1259 = vmatpush1.msra.mxu0 0.0
  %1260 = vmatprep.subr.mxu0 0.0
  %1261 = vmatpush1.msra.mxu0 0.0
  %1262 = vmatprep.subr.mxu0 0.0
  %1263 = vmatpush1.msra.mxu0 0.0
  %1264 = vmatprep.subr.mxu0 0.0
  %1265 = vmatpush1.msra.mxu0 0.0
  %1266 = vmatprep.subr.mxu0 0.0
  %1267 = vmatpush1.msra.mxu0 0.0
  %1268 = vmatprep.subr.mxu0 0.0
  %1269 = vmatpush1.msra.mxu0 0.0
  %1270 = vmatprep.subr.mxu0 0.0
  %1271 = vmatpush1.msra.mxu0 0.0
  %1272 = vmatprep.subr.mxu0 0.0
  %1273 = vmatpush1.msra.mxu0 0.0
  %1274 = vmatprep.subr.mxu0 %v1073
  %1275 = vmatpush1.msra.mxu0 %v1072
  %1276 = vmatprep.subr.mxu0 0.0
  %1277 = vmatpush2.msra.mxu0 0.0
  %1278 = vmatprep.subr.mxu0 0.0
  %1279 = vmatpush2.msra.mxu0 0.0
  %1280 = vmatprep.subr.mxu0 0.0
  %1281 = vmatpush2.msra.mxu0 0.0
  %1282 = vmatprep.subr.mxu0 0.0
  %1283 = vmatpush2.msra.mxu0 0.0
  %1284 = vmatprep.subr.mxu0 0.0
  %1285 = vmatpush2.msra.mxu0 0.0
  %1286 = vmatprep.subr.mxu0 0.0
  %1287 = vmatpush2.msra.mxu0 0.0
  %1288 = vmatprep.subr.mxu0 0.0
  %1289 = vmatpush2.msra.mxu0 0.0
  %1290 = vmatprep.subr.mxu0 0.0
  %1291 = vmatpush2.msra.mxu0 0.0
  %1292 = vmatprep.subr.mxu0 0.0
  %1293 = vmatpush2.msra.mxu0 0.0
  %1294 = vmatprep.subr.mxu0 0.0
  %1295 = vmatpush2.msra.mxu0 0.0
  %1296 = vmatprep.subr.mxu0 0.0
  %1297 = vmatpush2.msra.mxu0 0.0
  %1298 = vmatprep.subr.mxu0 0.0
  %1299 = vmatpush2.msra.mxu0 0.0
  %1300 = vmatprep.subr.mxu0 0.0
  %1301 = vmatpush2.msra.mxu0 0.0
  %1302 = vmatprep.subr.mxu0 0.0
  %1303 = vmatpush2.msra.mxu0 0.0
  %1304 = vmatprep.subr.mxu0 0.0
  %1305 = vmatpush2.msra.mxu0 0.0
  %1306 = vmatprep.subr.mxu0 0.0
  %1307 = vmatpush2.msra.mxu0 0.0
  %1308 = vmatprep.mubr.f32.mxu0 0.0
  %1309 = vmatmul.mubr.f32.gmra.mxu0 %v1242
  %v1310 = vpop.f32.mrf.mxu0
  %v1311 = vadd.f32 0.0, %v1310
  %v1312 = vpop.f32.mrf.mxu0
  %v1313 = vadd.f32 0.0, %v1312
  %1314 = vdwg.mxu0
  %v1315 = vadd.f32 %v1235, %v1311
  %v1316 = vadd.f32 %v1237, %v1313
  %1317 = vrot.lane.b32.xlu0 %v1072, 126
  %v1318 = vpop.permute.xlu0 %1317
  %1319 = vrot.lane.b32.xlu0 %v1073, 126
  %v1320 = vpop.permute.xlu0 %1319
  %v1321 = vsel %vm473, %v1318, %v1320
  %v1322 = vsel %vm473, %v1320, %v1318
  %s1323 = scalar_lea.vmem %s4, 112
  %v1324 = vld [vmem:[%s1323] sm:$0xff]
  %v1326 = vsel %vm157, %v1324, 0
  %1328 = vmatprep.subr.mxu0 0.0
  %1329 = vmatpush1.msra.mxu0 0.0
  %1330 = vmatprep.subr.mxu0 0.0
  %1331 = vmatpush1.msra.mxu0 0.0
  %1332 = vmatprep.subr.mxu0 0.0
  %1333 = vmatpush1.msra.mxu0 0.0
  %1334 = vmatprep.subr.mxu0 0.0
  %1335 = vmatpush1.msra.mxu0 0.0
  %1336 = vmatprep.subr.mxu0 0.0
  %1337 = vmatpush1.msra.mxu0 0.0
  %1338 = vmatprep.subr.mxu0 0.0
  %1339 = vmatpush1.msra.mxu0 0.0
  %1340 = vmatprep.subr.mxu0 0.0
  %1341 = vmatpush1.msra.mxu0 0.0
  %1342 = vmatprep.subr.mxu0 0.0
  %1343 = vmatpush1.msra.mxu0 0.0
  %1344 = vmatprep.subr.mxu0 0.0
  %1345 = vmatpush1.msra.mxu0 0.0
  %1346 = vmatprep.subr.mxu0 0.0
  %1347 = vmatpush1.msra.mxu0 0.0
  %1348 = vmatprep.subr.mxu0 0.0
  %1349 = vmatpush1.msra.mxu0 0.0
  %1350 = vmatprep.subr.mxu0 0.0
  %1351 = vmatpush1.msra.mxu0 0.0
  %1352 = vmatprep.subr.mxu0 0.0
  %1353 = vmatpush1.msra.mxu0 0.0
  %1354 = vmatprep.subr.mxu0 0.0
  %1355 = vmatpush1.msra.mxu0 0.0
  %1356 = vmatprep.subr.mxu0 0.0
  %1357 = vmatpush1.msra.mxu0 0.0
  %1358 = vmatprep.subr.mxu0 %v1322
  %1359 = vmatpush1.msra.mxu0 %v1321
  %1360 = vmatprep.subr.mxu0 0.0
  %1361 = vmatpush2.msra.mxu0 0.0
  %1362 = vmatprep.subr.mxu0 0.0
  %1363 = vmatpush2.msra.mxu0 0.0
  %1364 = vmatprep.subr.mxu0 0.0
  %1365 = vmatpush2.msra.mxu0 0.0
  %1366 = vmatprep.subr.mxu0 0.0
  %1367 = vmatpush2.msra.mxu0 0.0
  %1368 = vmatprep.subr.mxu0 0.0
  %1369 = vmatpush2.msra.mxu0 0.0
  %1370 = vmatprep.subr.mxu0 0.0
  %1371 = vmatpush2.msra.mxu0 0.0
  %1372 = vmatprep.subr.mxu0 0.0
  %1373 = vmatpush2.msra.mxu0 0.0
  %1374 = vmatprep.subr.mxu0 0.0
  %1375 = vmatpush2.msra.mxu0 0.0
  %1376 = vmatprep.subr.mxu0 0.0
  %1377 = vmatpush2.msra.mxu0 0.0
  %1378 = vmatprep.subr.mxu0 0.0
  %1379 = vmatpush2.msra.mxu0 0.0
  %1380 = vmatprep.subr.mxu0 0.0
  %1381 = vmatpush2.msra.mxu0 0.0
  %1382 = vmatprep.subr.mxu0 0.0
  %1383 = vmatpush2.msra.mxu0 0.0
  %1384 = vmatprep.subr.mxu0 0.0
  %1385 = vmatpush2.msra.mxu0 0.0
  %1386 = vmatprep.subr.mxu0 0.0
  %1387 = vmatpush2.msra.mxu0 0.0
  %1388 = vmatprep.subr.mxu0 0.0
  %1389 = vmatpush2.msra.mxu0 0.0
  %1390 = vmatprep.subr.mxu0 0.0
  %1391 = vmatpush2.msra.mxu0 0.0
  %1392 = vmatprep.mubr.f32.mxu0 0.0
  %1393 = vmatmul.mubr.f32.gmra.mxu0 %v1326
  %v1394 = vpop.f32.mrf.mxu0
  %v1395 = vadd.f32 0.0, %v1394
  %v1396 = vpop.f32.mrf.mxu0
  %v1397 = vadd.f32 0.0, %v1396
  %1398 = vdwg.mxu0
  %v1399 = vadd.f32 %v1315, %v1395
  %v1400 = vadd.f32 %v1316, %v1397
  %1401 = vrot.lane.b32.xlu0 %v1072, 124
  %v1402 = vpop.permute.xlu0 %1401
  %1403 = vrot.lane.b32.xlu0 %v1073, 124
  %v1404 = vpop.permute.xlu0 %1403
  %vm1405 = vcmp.lt.s32.totalorder %v24, 124
  %v1406 = vsel %vm1405, %v1402, %v1404
  %v1407 = vsel %vm1405, %v1404, %v1402
  %s1408 = scalar_lea.vmem %s4, 120
  %v1409 = vld [vmem:[%s1408] sm:$0xff]
  %v1411 = vsel %vm157, %v1409, 0
  %1413 = vmatprep.subr.mxu0 0.0
  %1414 = vmatpush1.msra.mxu0 0.0
  %1415 = vmatprep.subr.mxu0 0.0
  %1416 = vmatpush1.msra.mxu0 0.0
  %1417 = vmatprep.subr.mxu0 0.0
  %1418 = vmatpush1.msra.mxu0 0.0
  %1419 = vmatprep.subr.mxu0 0.0
  %1420 = vmatpush1.msra.mxu0 0.0
  %1421 = vmatprep.subr.mxu0 0.0
  %1422 = vmatpush1.msra.mxu0 0.0
  %1423 = vmatprep.subr.mxu0 0.0
  %1424 = vmatpush1.msra.mxu0 0.0
  %1425 = vmatprep.subr.mxu0 0.0
  %1426 = vmatpush1.msra.mxu0 0.0
  %1427 = vmatprep.subr.mxu0 0.0
  %1428 = vmatpush1.msra.mxu0 0.0
  %1429 = vmatprep.subr.mxu0 0.0
  %1430 = vmatpush1.msra.mxu0 0.0
  %1431 = vmatprep.subr.mxu0 0.0
  %1432 = vmatpush1.msra.mxu0 0.0
  %1433 = vmatprep.subr.mxu0 0.0
  %1434 = vmatpush1.msra.mxu0 0.0
  %1435 = vmatprep.subr.mxu0 0.0
  %1436 = vmatpush1.msra.mxu0 0.0
  %1437 = vmatprep.subr.mxu0 0.0
  %1438 = vmatpush1.msra.mxu0 0.0
  %1439 = vmatprep.subr.mxu0 0.0
  %1440 = vmatpush1.msra.mxu0 0.0
  %1441 = vmatprep.subr.mxu0 0.0
  %1442 = vmatpush1.msra.mxu0 0.0
  %1443 = vmatprep.subr.mxu0 %v1407
  %1444 = vmatpush1.msra.mxu0 %v1406
  %1445 = vmatprep.subr.mxu0 0.0
  %1446 = vmatpush2.msra.mxu0 0.0
  %1447 = vmatprep.subr.mxu0 0.0
  %1448 = vmatpush2.msra.mxu0 0.0
  %1449 = vmatprep.subr.mxu0 0.0
  %1450 = vmatpush2.msra.mxu0 0.0
  %1451 = vmatprep.subr.mxu0 0.0
  %1452 = vmatpush2.msra.mxu0 0.0
  %1453 = vmatprep.subr.mxu0 0.0
  %1454 = vmatpush2.msra.mxu0 0.0
  %1455 = vmatprep.subr.mxu0 0.0
  %1456 = vmatpush2.msra.mxu0 0.0
  %1457 = vmatprep.subr.mxu0 0.0
  %1458 = vmatpush2.msra.mxu0 0.0
  %1459 = vmatprep.subr.mxu0 0.0
  %1460 = vmatpush2.msra.mxu0 0.0
  %1461 = vmatprep.subr.mxu0 0.0
  %1462 = vmatpush2.msra.mxu0 0.0
  %1463 = vmatprep.subr.mxu0 0.0
  %1464 = vmatpush2.msra.mxu0 0.0
  %1465 = vmatprep.subr.mxu0 0.0
  %1466 = vmatpush2.msra.mxu0 0.0
  %1467 = vmatprep.subr.mxu0 0.0
  %1468 = vmatpush2.msra.mxu0 0.0
  %1469 = vmatprep.subr.mxu0 0.0
  %1470 = vmatpush2.msra.mxu0 0.0
  %1471 = vmatprep.subr.mxu0 0.0
  %1472 = vmatpush2.msra.mxu0 0.0
  %1473 = vmatprep.subr.mxu0 0.0
  %1474 = vmatpush2.msra.mxu0 0.0
  %1475 = vmatprep.subr.mxu0 0.0
  %1476 = vmatpush2.msra.mxu0 0.0
  %1477 = vmatprep.mubr.f32.mxu0 0.0
  %1478 = vmatmul.mubr.f32.gmra.mxu0 %v1411
  %v1479 = vpop.f32.mrf.mxu0
  %v1480 = vadd.f32 0.0, %v1479
  %v1481 = vpop.f32.mrf.mxu0
  %v1482 = vadd.f32 0.0, %v1481
  %1483 = vdwg.mxu0
  %v1484 = vadd.f32 %v1399, %v1480
  %v1485 = vadd.f32 %v1400, %v1482
  %s1486 = scalar_lea.vmem %s5, 24
  %v1487 = vld [vmem:[%s1486] sm:$0xff]
  %1489 = vset.pattern.permute.xlu0 0
  %1490 = vperm.xlu0 %1489, %v1487
  %v1491 = vpop.permute.xlu0 %1490
  %v1493 = vadd.f32 %v1484, %v1491
  %v1494 = vadd.f32 %v1485, %v1491
  %v1495 = vmax.f32 %v1493, 0.0
  %v1496 = vmax.f32 %v1494, 0.0
  %v1497 = vmul.f32 %v1495, %v137
  %v1498 = vmul.f32 %v1496, %v137
  %1499 = vrot.lane.b32.xlu0 %v1497, 4
  %v1500 = vpop.permute.xlu0 %1499
  %1501 = vrot.lane.b32.xlu0 %v1498, 4
  %v1502 = vpop.permute.xlu0 %1501
  %v1503 = vsel %vm1078, %v1500, %v1502
  %v1504 = vsel %vm1078, %v1502, %v1500
  %s1505 = scalar_lea.vmem %s4, 128
  %v1506 = vld [vmem:[%s1505] sm:$0xff]
  %1507 = vrot.lane.b32.xlu0 %v1497, 2
  %v1508 = vpop.permute.xlu0 %1507
  %1509 = vrot.lane.b32.xlu0 %v1498, 2
  %v1510 = vpop.permute.xlu0 %1509
  %v1511 = vsel %vm144, %v1508, %v1510
  %v1512 = vsel %vm144, %v1510, %v1508
  %s1513 = scalar_lea.vmem %s4, 136
  %v1514 = vld [vmem:[%s1513] sm:$0xff]
  %v1516 = vsel %vm157, %v1514, 0
  %1518 = vmatprep.subr.mxu0 0.0
  %1519 = vmatpush1.msra.mxu0 0.0
  %1520 = vmatprep.subr.mxu0 0.0
  %1521 = vmatpush1.msra.mxu0 0.0
  %1522 = vmatprep.subr.mxu0 0.0
  %1523 = vmatpush1.msra.mxu0 0.0
  %1524 = vmatprep.subr.mxu0 0.0
  %1525 = vmatpush1.msra.mxu0 0.0
  %1526 = vmatprep.subr.mxu0 0.0
  %1527 = vmatpush1.msra.mxu0 0.0
  %1528 = vmatprep.subr.mxu0 0.0
  %1529 = vmatpush1.msra.mxu0 0.0
  %1530 = vmatprep.subr.mxu0 0.0
  %1531 = vmatpush1.msra.mxu0 0.0
  %1532 = vmatprep.subr.mxu0 0.0
  %1533 = vmatpush1.msra.mxu0 0.0
  %1534 = vmatprep.subr.mxu0 0.0
  %1535 = vmatpush1.msra.mxu0 0.0
  %1536 = vmatprep.subr.mxu0 0.0
  %1537 = vmatpush1.msra.mxu0 0.0
  %1538 = vmatprep.subr.mxu0 0.0
  %1539 = vmatpush1.msra.mxu0 0.0
  %1540 = vmatprep.subr.mxu0 0.0
  %1541 = vmatpush1.msra.mxu0 0.0
  %1542 = vmatprep.subr.mxu0 0.0
  %1543 = vmatpush1.msra.mxu0 0.0
  %1544 = vmatprep.subr.mxu0 0.0
  %1545 = vmatpush1.msra.mxu0 0.0
  %1546 = vmatprep.subr.mxu0 0.0
  %1547 = vmatpush1.msra.mxu0 0.0
  %1548 = vmatprep.subr.mxu0 %v1511
  %1549 = vmatpush1.msra.mxu0 %v1512
  %1550 = vmatprep.subr.mxu0 0.0
  %1551 = vmatpush2.msra.mxu0 0.0
  %1552 = vmatprep.subr.mxu0 0.0
  %1553 = vmatpush2.msra.mxu0 0.0
  %1554 = vmatprep.subr.mxu0 0.0
  %1555 = vmatpush2.msra.mxu0 0.0
  %1556 = vmatprep.subr.mxu0 0.0
  %1557 = vmatpush2.msra.mxu0 0.0
  %1558 = vmatprep.subr.mxu0 0.0
  %1559 = vmatpush2.msra.mxu0 0.0
  %1560 = vmatprep.subr.mxu0 0.0
  %1561 = vmatpush2.msra.mxu0 0.0
  %1562 = vmatprep.subr.mxu0 0.0
  %1563 = vmatpush2.msra.mxu0 0.0
  %1564 = vmatprep.subr.mxu0 0.0
  %1565 = vmatpush2.msra.mxu0 0.0
  %1566 = vmatprep.subr.mxu0 0.0
  %1567 = vmatpush2.msra.mxu0 0.0
  %1568 = vmatprep.subr.mxu0 0.0
  %1569 = vmatpush2.msra.mxu0 0.0
  %1570 = vmatprep.subr.mxu0 0.0
  %1571 = vmatpush2.msra.mxu0 0.0
  %1572 = vmatprep.subr.mxu0 0.0
  %1573 = vmatpush2.msra.mxu0 0.0
  %1574 = vmatprep.subr.mxu0 0.0
  %1575 = vmatpush2.msra.mxu0 0.0
  %1576 = vmatprep.subr.mxu0 0.0
  %1577 = vmatpush2.msra.mxu0 0.0
  %1578 = vmatprep.subr.mxu0 0.0
  %1579 = vmatpush2.msra.mxu0 0.0
  %1580 = vmatprep.subr.mxu0 0.0
  %1581 = vmatpush2.msra.mxu0 0.0
  %1582 = vmatprep.mubr.f32.mxu0 0.0
  %1583 = vmatmul.mubr.f32.gmra.mxu0 %v1516
  %v1584 = vpop.f32.mrf.mxu0
  %v1585 = vadd.f32 0.0, %v1584
  %v1586 = vpop.f32.mrf.mxu0
  %v1587 = vadd.f32 0.0, %v1586
  %1588 = vdwg.mxu0
  %v1590 = vsel %vm157, %v1506, 0
  %1592 = vmatprep.subr.mxu0 0.0
  %1593 = vmatpush1.msra.mxu0 0.0
  %1594 = vmatprep.subr.mxu0 0.0
  %1595 = vmatpush1.msra.mxu0 0.0
  %1596 = vmatprep.subr.mxu0 0.0
  %1597 = vmatpush1.msra.mxu0 0.0
  %1598 = vmatprep.subr.mxu0 0.0
  %1599 = vmatpush1.msra.mxu0 0.0
  %1600 = vmatprep.subr.mxu0 0.0
  %1601 = vmatpush1.msra.mxu0 0.0
  %1602 = vmatprep.subr.mxu0 0.0
  %1603 = vmatpush1.msra.mxu0 0.0
  %1604 = vmatprep.subr.mxu0 0.0
  %1605 = vmatpush1.msra.mxu0 0.0
  %1606 = vmatprep.subr.mxu0 0.0
  %1607 = vmatpush1.msra.mxu0 0.0
  %1608 = vmatprep.subr.mxu0 0.0
  %1609 = vmatpush1.msra.mxu0 0.0
  %1610 = vmatprep.subr.mxu0 0.0
  %1611 = vmatpush1.msra.mxu0 0.0
  %1612 = vmatprep.subr.mxu0 0.0
  %1613 = vmatpush1.msra.mxu0 0.0
  %1614 = vmatprep.subr.mxu0 0.0
  %1615 = vmatpush1.msra.mxu0 0.0
  %1616 = vmatprep.subr.mxu0 0.0
  %1617 = vmatpush1.msra.mxu0 0.0
  %1618 = vmatprep.subr.mxu0 0.0
  %1619 = vmatpush1.msra.mxu0 0.0
  %1620 = vmatprep.subr.mxu0 0.0
  %1621 = vmatpush1.msra.mxu0 0.0
  %1622 = vmatprep.subr.mxu0 %v1503
  %1623 = vmatpush1.msra.mxu0 %v1504
  %1624 = vmatprep.subr.mxu0 0.0
  %1625 = vmatpush2.msra.mxu0 0.0
  %1626 = vmatprep.subr.mxu0 0.0
  %1627 = vmatpush2.msra.mxu0 0.0
  %1628 = vmatprep.subr.mxu0 0.0
  %1629 = vmatpush2.msra.mxu0 0.0
  %1630 = vmatprep.subr.mxu0 0.0
  %1631 = vmatpush2.msra.mxu0 0.0
  %1632 = vmatprep.subr.mxu0 0.0
  %1633 = vmatpush2.msra.mxu0 0.0
  %1634 = vmatprep.subr.mxu0 0.0
  %1635 = vmatpush2.msra.mxu0 0.0
  %1636 = vmatprep.subr.mxu0 0.0
  %1637 = vmatpush2.msra.mxu0 0.0
  %1638 = vmatprep.subr.mxu0 0.0
  %1639 = vmatpush2.msra.mxu0 0.0
  %1640 = vmatprep.subr.mxu0 0.0
  %1641 = vmatpush2.msra.mxu0 0.0
  %1642 = vmatprep.subr.mxu0 0.0
  %1643 = vmatpush2.msra.mxu0 0.0
  %1644 = vmatprep.subr.mxu0 0.0
  %1645 = vmatpush2.msra.mxu0 0.0
  %1646 = vmatprep.subr.mxu0 0.0
  %1647 = vmatpush2.msra.mxu0 0.0
  %1648 = vmatprep.subr.mxu0 0.0
  %1649 = vmatpush2.msra.mxu0 0.0
  %1650 = vmatprep.subr.mxu0 0.0
  %1651 = vmatpush2.msra.mxu0 0.0
  %1652 = vmatprep.subr.mxu0 0.0
  %1653 = vmatpush2.msra.mxu0 0.0
  %1654 = vmatprep.subr.mxu0 0.0
  %1655 = vmatpush2.msra.mxu0 0.0
  %1656 = vmatprep.mubr.f32.mxu0 0.0
  %1657 = vmatmul.mubr.f32.gmra.mxu0 %v1590
  %v1658 = vpop.f32.mrf.mxu0
  %v1659 = vadd.f32 %v1585, %v1658
  %v1660 = vpop.f32.mrf.mxu0
  %v1661 = vadd.f32 %v1587, %v1660
  %1662 = vdwg.mxu0
  %s1663 = scalar_lea.vmem %s4, 144
  %v1664 = vld [vmem:[%s1663] sm:$0xff]
  %v1666 = vsel %vm157, %v1664, 0
  %1668 = vmatprep.subr.mxu0 0.0
  %1669 = vmatpush1.msra.mxu0 0.0
  %1670 = vmatprep.subr.mxu0 0.0
  %1671 = vmatpush1.msra.mxu0 0.0
  %1672 = vmatprep.subr.mxu0 0.0
  %1673 = vmatpush1.msra.mxu0 0.0
  %1674 = vmatprep.subr.mxu0 0.0
  %1675 = vmatpush1.msra.mxu0 0.0
  %1676 = vmatprep.subr.mxu0 0.0
  %1677 = vmatpush1.msra.mxu0 0.0
  %1678 = vmatprep.subr.mxu0 0.0
  %1679 = vmatpush1.msra.mxu0 0.0
  %1680 = vmatprep.subr.mxu0 0.0
  %1681 = vmatpush1.msra.mxu0 0.0
  %1682 = vmatprep.subr.mxu0 0.0
  %1683 = vmatpush1.msra.mxu0 0.0
  %1684 = vmatprep.subr.mxu0 0.0
  %1685 = vmatpush1.msra.mxu0 0.0
  %1686 = vmatprep.subr.mxu0 0.0
  %1687 = vmatpush1.msra.mxu0 0.0
  %1688 = vmatprep.subr.mxu0 0.0
  %1689 = vmatpush1.msra.mxu0 0.0
  %1690 = vmatprep.subr.mxu0 0.0
  %1691 = vmatpush1.msra.mxu0 0.0
  %1692 = vmatprep.subr.mxu0 0.0
  %1693 = vmatpush1.msra.mxu0 0.0
  %1694 = vmatprep.subr.mxu0 0.0
  %1695 = vmatpush1.msra.mxu0 0.0
  %1696 = vmatprep.subr.mxu0 0.0
  %1697 = vmatpush1.msra.mxu0 0.0
  %1698 = vmatprep.subr.mxu0 %v1498
  %1699 = vmatpush1.msra.mxu0 %v1497
  %1700 = vmatprep.subr.mxu0 0.0
  %1701 = vmatpush2.msra.mxu0 0.0
  %1702 = vmatprep.subr.mxu0 0.0
  %1703 = vmatpush2.msra.mxu0 0.0
  %1704 = vmatprep.subr.mxu0 0.0
  %1705 = vmatpush2.msra.mxu0 0.0
  %1706 = vmatprep.subr.mxu0 0.0
  %1707 = vmatpush2.msra.mxu0 0.0
  %1708 = vmatprep.subr.mxu0 0.0
  %1709 = vmatpush2.msra.mxu0 0.0
  %1710 = vmatprep.subr.mxu0 0.0
  %1711 = vmatpush2.msra.mxu0 0.0
  %1712 = vmatprep.subr.mxu0 0.0
  %1713 = vmatpush2.msra.mxu0 0.0
  %1714 = vmatprep.subr.mxu0 0.0
  %1715 = vmatpush2.msra.mxu0 0.0
  %1716 = vmatprep.subr.mxu0 0.0
  %1717 = vmatpush2.msra.mxu0 0.0
  %1718 = vmatprep.subr.mxu0 0.0
  %1719 = vmatpush2.msra.mxu0 0.0
  %1720 = vmatprep.subr.mxu0 0.0
  %1721 = vmatpush2.msra.mxu0 0.0
  %1722 = vmatprep.subr.mxu0 0.0
  %1723 = vmatpush2.msra.mxu0 0.0
  %1724 = vmatprep.subr.mxu0 0.0
  %1725 = vmatpush2.msra.mxu0 0.0
  %1726 = vmatprep.subr.mxu0 0.0
  %1727 = vmatpush2.msra.mxu0 0.0
  %1728 = vmatprep.subr.mxu0 0.0
  %1729 = vmatpush2.msra.mxu0 0.0
  %1730 = vmatprep.subr.mxu0 0.0
  %1731 = vmatpush2.msra.mxu0 0.0
  %1732 = vmatprep.mubr.f32.mxu0 0.0
  %1733 = vmatmul.mubr.f32.gmra.mxu0 %v1666
  %v1734 = vpop.f32.mrf.mxu0
  %v1735 = vadd.f32 0.0, %v1734
  %v1736 = vpop.f32.mrf.mxu0
  %v1737 = vadd.f32 0.0, %v1736
  %1738 = vdwg.mxu0
  %v1739 = vadd.f32 %v1659, %v1735
  %v1740 = vadd.f32 %v1661, %v1737
  %1741 = vrot.lane.b32.xlu0 %v1497, 126
  %v1742 = vpop.permute.xlu0 %1741
  %1743 = vrot.lane.b32.xlu0 %v1498, 126
  %v1744 = vpop.permute.xlu0 %1743
  %v1745 = vsel %vm473, %v1742, %v1744
  %v1746 = vsel %vm473, %v1744, %v1742
  %s1747 = scalar_lea.vmem %s4, 152
  %v1748 = vld [vmem:[%s1747] sm:$0xff]
  %v1750 = vsel %vm157, %v1748, 0
  %1752 = vmatprep.subr.mxu0 0.0
  %1753 = vmatpush1.msra.mxu0 0.0
  %1754 = vmatprep.subr.mxu0 0.0
  %1755 = vmatpush1.msra.mxu0 0.0
  %1756 = vmatprep.subr.mxu0 0.0
  %1757 = vmatpush1.msra.mxu0 0.0
  %1758 = vmatprep.subr.mxu0 0.0
  %1759 = vmatpush1.msra.mxu0 0.0
  %1760 = vmatprep.subr.mxu0 0.0
  %1761 = vmatpush1.msra.mxu0 0.0
  %1762 = vmatprep.subr.mxu0 0.0
  %1763 = vmatpush1.msra.mxu0 0.0
  %1764 = vmatprep.subr.mxu0 0.0
  %1765 = vmatpush1.msra.mxu0 0.0
  %1766 = vmatprep.subr.mxu0 0.0
  %1767 = vmatpush1.msra.mxu0 0.0
  %1768 = vmatprep.subr.mxu0 0.0
  %1769 = vmatpush1.msra.mxu0 0.0
  %1770 = vmatprep.subr.mxu0 0.0
  %1771 = vmatpush1.msra.mxu0 0.0
  %1772 = vmatprep.subr.mxu0 0.0
  %1773 = vmatpush1.msra.mxu0 0.0
  %1774 = vmatprep.subr.mxu0 0.0
  %1775 = vmatpush1.msra.mxu0 0.0
  %1776 = vmatprep.subr.mxu0 0.0
  %1777 = vmatpush1.msra.mxu0 0.0
  %1778 = vmatprep.subr.mxu0 0.0
  %1779 = vmatpush1.msra.mxu0 0.0
  %1780 = vmatprep.subr.mxu0 0.0
  %1781 = vmatpush1.msra.mxu0 0.0
  %1782 = vmatprep.subr.mxu0 %v1746
  %1783 = vmatpush1.msra.mxu0 %v1745
  %1784 = vmatprep.subr.mxu0 0.0
  %1785 = vmatpush2.msra.mxu0 0.0
  %1786 = vmatprep.subr.mxu0 0.0
  %1787 = vmatpush2.msra.mxu0 0.0
  %1788 = vmatprep.subr.mxu0 0.0
  %1789 = vmatpush2.msra.mxu0 0.0
  %1790 = vmatprep.subr.mxu0 0.0
  %1791 = vmatpush2.msra.mxu0 0.0
  %1792 = vmatprep.subr.mxu0 0.0
  %1793 = vmatpush2.msra.mxu0 0.0
  %1794 = vmatprep.subr.mxu0 0.0
  %1795 = vmatpush2.msra.mxu0 0.0
  %1796 = vmatprep.subr.mxu0 0.0
  %1797 = vmatpush2.msra.mxu0 0.0
  %1798 = vmatprep.subr.mxu0 0.0
  %1799 = vmatpush2.msra.mxu0 0.0
  %1800 = vmatprep.subr.mxu0 0.0
  %1801 = vmatpush2.msra.mxu0 0.0
  %1802 = vmatprep.subr.mxu0 0.0
  %1803 = vmatpush2.msra.mxu0 0.0
  %1804 = vmatprep.subr.mxu0 0.0
  %1805 = vmatpush2.msra.mxu0 0.0
  %1806 = vmatprep.subr.mxu0 0.0
  %1807 = vmatpush2.msra.mxu0 0.0
  %1808 = vmatprep.subr.mxu0 0.0
  %1809 = vmatpush2.msra.mxu0 0.0
  %1810 = vmatprep.subr.mxu0 0.0
  %1811 = vmatpush2.msra.mxu0 0.0
  %1812 = vmatprep.subr.mxu0 0.0
  %1813 = vmatpush2.msra.mxu0 0.0
  %1814 = vmatprep.subr.mxu0 0.0
  %1815 = vmatpush2.msra.mxu0 0.0
  %1816 = vmatprep.mubr.f32.mxu0 0.0
  %1817 = vmatmul.mubr.f32.gmra.mxu0 %v1750
  %v1818 = vpop.f32.mrf.mxu0
  %v1819 = vadd.f32 0.0, %v1818
  %v1820 = vpop.f32.mrf.mxu0
  %v1821 = vadd.f32 0.0, %v1820
  %1822 = vdwg.mxu0
  %v1823 = vadd.f32 %v1739, %v1819
  %v1824 = vadd.f32 %v1740, %v1821
  %1825 = vrot.lane.b32.xlu0 %v1497, 124
  %v1826 = vpop.permute.xlu0 %1825
  %1827 = vrot.lane.b32.xlu0 %v1498, 124
  %v1828 = vpop.permute.xlu0 %1827
  %v1829 = vsel %vm1405, %v1826, %v1828
  %v1830 = vsel %vm1405, %v1828, %v1826
  %s1831 = scalar_lea.vmem %s4, 160
  %v1832 = vld [vmem:[%s1831] sm:$0xff]
  %v1834 = vsel %vm157, %v1832, 0
  %1836 = vmatprep.subr.mxu0 0.0
  %1837 = vmatpush1.msra.mxu0 0.0
  %1838 = vmatprep.subr.mxu0 0.0
  %1839 = vmatpush1.msra.mxu0 0.0
  %1840 = vmatprep.subr.mxu0 0.0
  %1841 = vmatpush1.msra.mxu0 0.0
  %1842 = vmatprep.subr.mxu0 0.0
  %1843 = vmatpush1.msra.mxu0 0.0
  %1844 = vmatprep.subr.mxu0 0.0
  %1845 = vmatpush1.msra.mxu0 0.0
  %1846 = vmatprep.subr.mxu0 0.0
  %1847 = vmatpush1.msra.mxu0 0.0
  %1848 = vmatprep.subr.mxu0 0.0
  %1849 = vmatpush1.msra.mxu0 0.0
  %1850 = vmatprep.subr.mxu0 0.0
  %1851 = vmatpush1.msra.mxu0 0.0
  %1852 = vmatprep.subr.mxu0 0.0
  %1853 = vmatpush1.msra.mxu0 0.0
  %1854 = vmatprep.subr.mxu0 0.0
  %1855 = vmatpush1.msra.mxu0 0.0
  %1856 = vmatprep.subr.mxu0 0.0
  %1857 = vmatpush1.msra.mxu0 0.0
  %1858 = vmatprep.subr.mxu0 0.0
  %1859 = vmatpush1.msra.mxu0 0.0
  %1860 = vmatprep.subr.mxu0 0.0
  %1861 = vmatpush1.msra.mxu0 0.0
  %1862 = vmatprep.subr.mxu0 0.0
  %1863 = vmatpush1.msra.mxu0 0.0
  %1864 = vmatprep.subr.mxu0 0.0
  %1865 = vmatpush1.msra.mxu0 0.0
  %1866 = vmatprep.subr.mxu0 %v1830
  %1867 = vmatpush1.msra.mxu0 %v1829
  %1868 = vmatprep.subr.mxu0 0.0
  %1869 = vmatpush2.msra.mxu0 0.0
  %1870 = vmatprep.subr.mxu0 0.0
  %1871 = vmatpush2.msra.mxu0 0.0
  %1872 = vmatprep.subr.mxu0 0.0
  %1873 = vmatpush2.msra.mxu0 0.0
  %1874 = vmatprep.subr.mxu0 0.0
  %1875 = vmatpush2.msra.mxu0 0.0
  %1876 = vmatprep.subr.mxu0 0.0
  %1877 = vmatpush2.msra.mxu0 0.0
  %1878 = vmatprep.subr.mxu0 0.0
  %1879 = vmatpush2.msra.mxu0 0.0
  %1880 = vmatprep.subr.mxu0 0.0
  %1881 = vmatpush2.msra.mxu0 0.0
  %1882 = vmatprep.subr.mxu0 0.0
  %1883 = vmatpush2.msra.mxu0 0.0
  %1884 = vmatprep.subr.mxu0 0.0
  %1885 = vmatpush2.msra.mxu0 0.0
  %1886 = vmatprep.subr.mxu0 0.0
  %1887 = vmatpush2.msra.mxu0 0.0
  %1888 = vmatprep.subr.mxu0 0.0
  %1889 = vmatpush2.msra.mxu0 0.0
  %1890 = vmatprep.subr.mxu0 0.0
  %1891 = vmatpush2.msra.mxu0 0.0
  %1892 = vmatprep.subr.mxu0 0.0
  %1893 = vmatpush2.msra.mxu0 0.0
  %1894 = vmatprep.subr.mxu0 0.0
  %1895 = vmatpush2.msra.mxu0 0.0
  %1896 = vmatprep.subr.mxu0 0.0
  %1897 = vmatpush2.msra.mxu0 0.0
  %1898 = vmatprep.subr.mxu0 0.0
  %1899 = vmatpush2.msra.mxu0 0.0
  %1900 = vmatprep.mubr.f32.mxu0 0.0
  %1901 = vmatmul.mubr.f32.gmra.mxu0 %v1834
  %v1902 = vpop.f32.mrf.mxu0
  %v1903 = vadd.f32 0.0, %v1902
  %v1904 = vpop.f32.mrf.mxu0
  %v1905 = vadd.f32 0.0, %v1904
  %1906 = vdwg.mxu0
  %v1907 = vadd.f32 %v1823, %v1903
  %v1908 = vadd.f32 %v1824, %v1905
  %s1909 = scalar_lea.vmem %s5, 32
  %v1910 = vld [vmem:[%s1909] sm:$0xff]
  %1912 = vset.pattern.permute.xlu0 0
  %1913 = vperm.xlu0 %1912, %v1910
  %v1914 = vpop.permute.xlu0 %1913
  %v1916 = vadd.f32 %v1907, %v1914
  %v1917 = vadd.f32 %v1908, %v1914
  %v1918 = vmax.f32 %v1916, 0.0
  %v1919 = vmax.f32 %v1917, 0.0
  %s1920 = scalar_lea.vmem %s4, 168
  %v1921 = vld [vmem:[%s1920] sm:$0xff]
  %s1922 = scalar_lea.vmem %s5, 40
  %v1923 = vld [vmem:[%s1922] sm:$0xff]
  %1925 = vset.pattern.permute.xlu0 0
  %1926 = vperm.xlu0 %1925, %v1923
  %v1927 = vpop.permute.xlu0 %1926
  %v1930 = vsel %vm157, %v1921, 0
  %1932 = vmatprep.subr.mxu0 0.0
  %1933 = vmatpush1.msra.mxu0 0.0
  %1934 = vmatprep.subr.mxu0 0.0
  %1935 = vmatpush1.msra.mxu0 0.0
  %1936 = vmatprep.subr.mxu0 0.0
  %1937 = vmatpush1.msra.mxu0 0.0
  %1938 = vmatprep.subr.mxu0 0.0
  %1939 = vmatpush1.msra.mxu0 0.0
  %1940 = vmatprep.subr.mxu0 0.0
  %1941 = vmatpush1.msra.mxu0 0.0
  %1942 = vmatprep.subr.mxu0 0.0
  %1943 = vmatpush1.msra.mxu0 0.0
  %1944 = vmatprep.subr.mxu0 0.0
  %1945 = vmatpush1.msra.mxu0 0.0
  %1946 = vmatprep.subr.mxu0 0.0
  %1947 = vmatpush1.msra.mxu0 0.0
  %1948 = vmatprep.subr.mxu0 0.0
  %1949 = vmatpush1.msra.mxu0 0.0
  %1950 = vmatprep.subr.mxu0 0.0
  %1951 = vmatpush1.msra.mxu0 0.0
  %1952 = vmatprep.subr.mxu0 0.0
  %1953 = vmatpush1.msra.mxu0 0.0
  %1954 = vmatprep.subr.mxu0 0.0
  %1955 = vmatpush1.msra.mxu0 0.0
  %1956 = vmatprep.subr.mxu0 0.0
  %1957 = vmatpush1.msra.mxu0 0.0
  %1958 = vmatprep.subr.mxu0 0.0
  %1959 = vmatpush1.msra.mxu0 0.0
  %1960 = vmatprep.subr.mxu0 0.0
  %1961 = vmatpush1.msra.mxu0 0.0
  %1962 = vmatprep.subr.mxu0 %v1071
  %1963 = vmatpush1.msra.mxu0 %v1070
  %1964 = vmatprep.subr.mxu0 0.0
  %1965 = vmatpush2.msra.mxu0 0.0
  %1966 = vmatprep.subr.mxu0 0.0
  %1967 = vmatpush2.msra.mxu0 0.0
  %1968 = vmatprep.subr.mxu0 0.0
  %1969 = vmatpush2.msra.mxu0 0.0
  %1970 = vmatprep.subr.mxu0 0.0
  %1971 = vmatpush2.msra.mxu0 0.0
  %1972 = vmatprep.subr.mxu0 0.0
  %1973 = vmatpush2.msra.mxu0 0.0
  %1974 = vmatprep.subr.mxu0 0.0
  %1975 = vmatpush2.msra.mxu0 0.0
  %1976 = vmatprep.subr.mxu0 0.0
  %1977 = vmatpush2.msra.mxu0 0.0
  %1978 = vmatprep.subr.mxu0 0.0
  %1979 = vmatpush2.msra.mxu0 0.0
  %1980 = vmatprep.subr.mxu0 0.0
  %1981 = vmatpush2.msra.mxu0 0.0
  %1982 = vmatprep.subr.mxu0 0.0
  %1983 = vmatpush2.msra.mxu0 0.0
  %1984 = vmatprep.subr.mxu0 0.0
  %1985 = vmatpush2.msra.mxu0 0.0
  %1986 = vmatprep.subr.mxu0 0.0
  %1987 = vmatpush2.msra.mxu0 0.0
  %1988 = vmatprep.subr.mxu0 0.0
  %1989 = vmatpush2.msra.mxu0 0.0
  %1990 = vmatprep.subr.mxu0 0.0
  %1991 = vmatpush2.msra.mxu0 0.0
  %1992 = vmatprep.subr.mxu0 0.0
  %1993 = vmatpush2.msra.mxu0 0.0
  %1994 = vmatprep.subr.mxu0 0.0
  %1995 = vmatpush2.msra.mxu0 0.0
  %1996 = vmatprep.mubr.f32.mxu0 0.0
  %1997 = vmatmul.mubr.f32.gmra.mxu0 %v1930
  %v1998 = vpop.f32.mrf.mxu0
  %v1999 = vadd.f32 %v1927, %v1998
  %v2000 = vpop.f32.mrf.mxu0
  %v2001 = vadd.f32 %v1927, %v2000
  %2002 = vdwg.mxu0
  %v2003 = vadd.f32 %v1918, %v1999
  %v2004 = vadd.f32 %v1919, %v2001
  %v2005 = vld [vmem:[%s3] sm:$0xff]
  %v2006 = vld [vmem:[%s3 + $0x8] sm:$0xff]
  %v2007 = vld [vmem:[%s3 + $0x10] sm:$0xff]
  %v2008 = vld [vmem:[%s3 + $0x18] sm:$0xff]
  %v2009 = vld [vmem:[%s3 + $0x20] sm:$0xff]
  %v2010 = vld [vmem:[%s3 + $0x28] sm:$0xff]
  %v2011 = vld [vmem:[%s3 + $0x30] sm:$0xff]
  %v2012 = vld [vmem:[%s3 + $0x38] sm:$0xff]
  %v2013 = vld [vmem:[%s3 + $0x40] sm:$0xff]
  %v2014 = vld [vmem:[%s3 + $0x48] sm:$0xff]
  %v2015 = vld [vmem:[%s3 + $0x50] sm:$0xff]
  %v2016 = vld [vmem:[%s3 + $0x58] sm:$0xff]
  %v2017 = vld [vmem:[%s3 + $0x60] sm:$0xff]
  %v2018 = vld [vmem:[%s3 + $0x68] sm:$0xff]
  %v2019 = vld [vmem:[%s3 + $0x70] sm:$0xff]
  %v2020 = vld [vmem:[%s3 + $0x78] sm:$0xff]
  %2021 = vmatprep.subr.mxu0 0.0
  %2022 = vmatpush1.msra.mxu0 %v2020
  %2023 = vmatprep.subr.mxu0 0.0
  %2024 = vmatpush1.msra.mxu0 %v2019
  %2025 = vmatprep.subr.mxu0 0.0
  %2026 = vmatpush1.msra.mxu0 %v2018
  %2027 = vmatprep.subr.mxu0 0.0
  %2028 = vmatpush1.msra.mxu0 %v2017
  %2029 = vmatprep.subr.mxu0 0.0
  %2030 = vmatpush1.msra.mxu0 %v2016
  %2031 = vmatprep.subr.mxu0 0.0
  %2032 = vmatpush1.msra.mxu0 %v2015
  %2033 = vmatprep.subr.mxu0 0.0
  %2034 = vmatpush1.msra.mxu0 %v2014
  %2035 = vmatprep.subr.mxu0 0.0
  %2036 = vmatpush1.msra.mxu0 %v2013
  %2037 = vmatprep.subr.mxu0 0.0
  %2038 = vmatpush1.msra.mxu0 %v2012
  %2039 = vmatprep.subr.mxu0 0.0
  %2040 = vmatpush1.msra.mxu0 %v2011
  %2041 = vmatprep.subr.mxu0 0.0
  %2042 = vmatpush1.msra.mxu0 %v2010
  %2043 = vmatprep.subr.mxu0 0.0
  %2044 = vmatpush1.msra.mxu0 %v2009
  %2045 = vmatprep.subr.mxu0 0.0
  %2046 = vmatpush1.msra.mxu0 %v2008
  %2047 = vmatprep.subr.mxu0 0.0
  %2048 = vmatpush1.msra.mxu0 %v2007
  %2049 = vmatprep.subr.mxu0 0.0
  %2050 = vmatpush1.msra.mxu0 %v2006
  %2051 = vmatprep.subr.mxu0 0.0
  %2052 = vmatpush1.msra.mxu0 %v2005
  %2053 = vmatprep.subr.mxu0 0.0
  %2054 = vmatpush2.msra.mxu0 0.0
  %2055 = vmatprep.subr.mxu0 0.0
  %2056 = vmatpush2.msra.mxu0 0.0
  %2057 = vmatprep.subr.mxu0 0.0
  %2058 = vmatpush2.msra.mxu0 0.0
  %2059 = vmatprep.subr.mxu0 0.0
  %2060 = vmatpush2.msra.mxu0 0.0
  %2061 = vmatprep.subr.mxu0 0.0
  %2062 = vmatpush2.msra.mxu0 0.0
  %2063 = vmatprep.subr.mxu0 0.0
  %2064 = vmatpush2.msra.mxu0 0.0
  %2065 = vmatprep.subr.mxu0 0.0
  %2066 = vmatpush2.msra.mxu0 0.0
  %2067 = vmatprep.subr.mxu0 0.0
  %2068 = vmatpush2.msra.mxu0 0.0
  %2069 = vmatprep.subr.mxu0 0.0
  %2070 = vmatpush2.msra.mxu0 0.0
  %2071 = vmatprep.subr.mxu0 0.0
  %2072 = vmatpush2.msra.mxu0 0.0
  %2073 = vmatprep.subr.mxu0 0.0
  %2074 = vmatpush2.msra.mxu0 0.0
  %2075 = vmatprep.subr.mxu0 0.0
  %2076 = vmatpush2.msra.mxu0 0.0
  %2077 = vmatprep.subr.mxu0 0.0
  %2078 = vmatpush2.msra.mxu0 0.0
  %2079 = vmatprep.subr.mxu0 0.0
  %2080 = vmatpush2.msra.mxu0 0.0
  %2081 = vmatprep.subr.mxu0 0.0
  %2082 = vmatpush2.msra.mxu0 0.0
  %2083 = vmatprep.subr.mxu0 0.0
  %2084 = vmatpush2.msra.mxu0 0.0
  %2085 = vmatprep.mubr.f32.mxu0 0.0
  %2086 = vmatmul.mubr.f32.gmra.mxu0 %v2003
  %v2087 = vpop.f32.mrf.mxu0
  %v2088 = vadd.f32 0.0, %v2087
  %v2089 = vpop.f32.mrf.mxu0
  %2090 = vdwg.mxu0
  %2091 = vmatprep.subr.mxu0 0.0
  %2092 = vmatpush1.msra.mxu0 %v2020
  %2093 = vmatprep.subr.mxu0 0.0
  %2094 = vmatpush1.msra.mxu0 %v2019
  %2095 = vmatprep.subr.mxu0 0.0
  %2096 = vmatpush1.msra.mxu0 %v2018
  %2097 = vmatprep.subr.mxu0 0.0
  %2098 = vmatpush1.msra.mxu0 %v2017
  %2099 = vmatprep.subr.mxu0 0.0
  %2100 = vmatpush1.msra.mxu0 %v2016
  %2101 = vmatprep.subr.mxu0 0.0
  %2102 = vmatpush1.msra.mxu0 %v2015
  %2103 = vmatprep.subr.mxu0 0.0
  %2104 = vmatpush1.msra.mxu0 %v2014
  %2105 = vmatprep.subr.mxu0 0.0
  %2106 = vmatpush1.msra.mxu0 %v2013
  %2107 = vmatprep.subr.mxu0 0.0
  %2108 = vmatpush1.msra.mxu0 %v2012
  %2109 = vmatprep.subr.mxu0 0.0
  %2110 = vmatpush1.msra.mxu0 %v2011
  %2111 = vmatprep.subr.mxu0 0.0
  %2112 = vmatpush1.msra.mxu0 %v2010
  %2113 = vmatprep.subr.mxu0 0.0
  %2114 = vmatpush1.msra.mxu0 %v2009
  %2115 = vmatprep.subr.mxu0 0.0
  %2116 = vmatpush1.msra.mxu0 %v2008
  %2117 = vmatprep.subr.mxu0 0.0
  %2118 = vmatpush1.msra.mxu0 %v2007
  %2119 = vmatprep.subr.mxu0 0.0
  %2120 = vmatpush1.msra.mxu0 %v2006
  %2121 = vmatprep.subr.mxu0 0.0
  %2122 = vmatpush1.msra.mxu0 %v2005
  %2123 = vmatprep.subr.mxu0 0.0
  %2124 = vmatpush2.msra.mxu0 0.0
  %2125 = vmatprep.subr.mxu0 0.0
  %2126 = vmatpush2.msra.mxu0 0.0
  %2127 = vmatprep.subr.mxu0 0.0
  %2128 = vmatpush2.msra.mxu0 0.0
  %2129 = vmatprep.subr.mxu0 0.0
  %2130 = vmatpush2.msra.mxu0 0.0
  %2131 = vmatprep.subr.mxu0 0.0
  %2132 = vmatpush2.msra.mxu0 0.0
  %2133 = vmatprep.subr.mxu0 0.0
  %2134 = vmatpush2.msra.mxu0 0.0
  %2135 = vmatprep.subr.mxu0 0.0
  %2136 = vmatpush2.msra.mxu0 0.0
  %2137 = vmatprep.subr.mxu0 0.0
  %2138 = vmatpush2.msra.mxu0 0.0
  %2139 = vmatprep.subr.mxu0 0.0
  %2140 = vmatpush2.msra.mxu0 0.0
  %2141 = vmatprep.subr.mxu0 0.0
  %2142 = vmatpush2.msra.mxu0 0.0
  %2143 = vmatprep.subr.mxu0 0.0
  %2144 = vmatpush2.msra.mxu0 0.0
  %2145 = vmatprep.subr.mxu0 0.0
  %2146 = vmatpush2.msra.mxu0 0.0
  %2147 = vmatprep.subr.mxu0 0.0
  %2148 = vmatpush2.msra.mxu0 0.0
  %2149 = vmatprep.subr.mxu0 0.0
  %2150 = vmatpush2.msra.mxu0 0.0
  %2151 = vmatprep.subr.mxu0 0.0
  %2152 = vmatpush2.msra.mxu0 0.0
  %2153 = vmatprep.subr.mxu0 0.0
  %2154 = vmatpush2.msra.mxu0 0.0
  %2155 = vmatprep.mubr.f32.mxu0 0.0
  %2156 = vmatmul.mubr.f32.gmra.mxu0 %v2004
  %v2157 = vpop.f32.mrf.mxu0
  %v2158 = vadd.f32 0.0, %v2157
  %v2159 = vpop.f32.mrf.mxu0
  %2160 = vdwg.mxu0
  %v2161 = vlaneseq
  %v2162 = vshrl.u32 %v2161, 7
  %v2163 = vsub.s32 0, %v2162
  %v2164 = vrot.slane %v30, %v2163
  %v2165 = vmul.f32 %v2088, %v2164
  %v2166 = vmul.f32 %v2158, %v2164
  %2167 = vrot.lane.b32.xlu0 %v2165, 2
  %v2168 = vpop.permute.xlu0 %2167
  %2169 = vrot.lane.b32.xlu0 %v2166, 2
  %v2170 = vpop.permute.xlu0 %2169
  %v2171 = vsel %vm144, %v2168, %v2170
  %v2172 = vsel %vm144, %v2170, %v2168
  %s2173 = scalar_lea.vmem %s4, 176
  %v2174 = vld [vmem:[%s2173] sm:$0xff]
  %2175 = vrot.lane.b32.xlu0 %v2165, 1
  %v2176 = vpop.permute.xlu0 %2175
  %2177 = vrot.lane.b32.xlu0 %v2166, 1
  %v2178 = vpop.permute.xlu0 %2177
  %v2179 = vsel %vm152, %v2176, %v2178
  %v2180 = vsel %vm152, %v2178, %v2176
  %s2181 = scalar_lea.vmem %s4, 184
  %v2182 = vld [vmem:[%s2181] sm:$0xff]
  %v2184 = vsel %vm157, %v2182, 0
  %2186 = vmatprep.subr.mxu0 0.0
  %2187 = vmatpush1.msra.mxu0 0.0
  %2188 = vmatprep.subr.mxu0 0.0
  %2189 = vmatpush1.msra.mxu0 0.0
  %2190 = vmatprep.subr.mxu0 0.0
  %2191 = vmatpush1.msra.mxu0 0.0
  %2192 = vmatprep.subr.mxu0 0.0
  %2193 = vmatpush1.msra.mxu0 0.0
  %2194 = vmatprep.subr.mxu0 0.0
  %2195 = vmatpush1.msra.mxu0 0.0
  %2196 = vmatprep.subr.mxu0 0.0
  %2197 = vmatpush1.msra.mxu0 0.0
  %2198 = vmatprep.subr.mxu0 0.0
  %2199 = vmatpush1.msra.mxu0 0.0
  %2200 = vmatprep.subr.mxu0 0.0
  %2201 = vmatpush1.msra.mxu0 0.0
  %2202 = vmatprep.subr.mxu0 0.0
  %2203 = vmatpush1.msra.mxu0 0.0
  %2204 = vmatprep.subr.mxu0 0.0
  %2205 = vmatpush1.msra.mxu0 0.0
  %2206 = vmatprep.subr.mxu0 0.0
  %2207 = vmatpush1.msra.mxu0 0.0
  %2208 = vmatprep.subr.mxu0 0.0
  %2209 = vmatpush1.msra.mxu0 0.0
  %2210 = vmatprep.subr.mxu0 0.0
  %2211 = vmatpush1.msra.mxu0 0.0
  %2212 = vmatprep.subr.mxu0 0.0
  %2213 = vmatpush1.msra.mxu0 0.0
  %2214 = vmatprep.subr.mxu0 0.0
  %2215 = vmatpush1.msra.mxu0 0.0
  %2216 = vmatprep.subr.mxu0 %v2179
  %2217 = vmatpush1.msra.mxu0 %v2180
  %2218 = vmatprep.subr.mxu0 0.0
  %2219 = vmatpush2.msra.mxu0 0.0
  %2220 = vmatprep.subr.mxu0 0.0
  %2221 = vmatpush2.msra.mxu0 0.0
  %2222 = vmatprep.subr.mxu0 0.0
  %2223 = vmatpush2.msra.mxu0 0.0
  %2224 = vmatprep.subr.mxu0 0.0
  %2225 = vmatpush2.msra.mxu0 0.0
  %2226 = vmatprep.subr.mxu0 0.0
  %2227 = vmatpush2.msra.mxu0 0.0
  %2228 = vmatprep.subr.mxu0 0.0
  %2229 = vmatpush2.msra.mxu0 0.0
  %2230 = vmatprep.subr.mxu0 0.0
  %2231 = vmatpush2.msra.mxu0 0.0
  %2232 = vmatprep.subr.mxu0 0.0
  %2233 = vmatpush2.msra.mxu0 0.0
  %2234 = vmatprep.subr.mxu0 0.0
  %2235 = vmatpush2.msra.mxu0 0.0
  %2236 = vmatprep.subr.mxu0 0.0
  %2237 = vmatpush2.msra.mxu0 0.0
  %2238 = vmatprep.subr.mxu0 0.0
  %2239 = vmatpush2.msra.mxu0 0.0
  %2240 = vmatprep.subr.mxu0 0.0
  %2241 = vmatpush2.msra.mxu0 0.0
  %2242 = vmatprep.subr.mxu0 0.0
  %2243 = vmatpush2.msra.mxu0 0.0
  %2244 = vmatprep.subr.mxu0 0.0
  %2245 = vmatpush2.msra.mxu0 0.0
  %2246 = vmatprep.subr.mxu0 0.0
  %2247 = vmatpush2.msra.mxu0 0.0
  %2248 = vmatprep.subr.mxu0 0.0
  %2249 = vmatpush2.msra.mxu0 0.0
  %2250 = vmatprep.mubr.f32.mxu0 0.0
  %2251 = vmatmul.mubr.f32.gmra.mxu0 %v2184
  %v2252 = vpop.f32.mrf.mxu0
  %v2253 = vadd.f32 0.0, %v2252
  %v2254 = vpop.f32.mrf.mxu0
  %v2255 = vadd.f32 0.0, %v2254
  %2256 = vdwg.mxu0
  %v2258 = vsel %vm157, %v2174, 0
  %2260 = vmatprep.subr.mxu0 0.0
  %2261 = vmatpush1.msra.mxu0 0.0
  %2262 = vmatprep.subr.mxu0 0.0
  %2263 = vmatpush1.msra.mxu0 0.0
  %2264 = vmatprep.subr.mxu0 0.0
  %2265 = vmatpush1.msra.mxu0 0.0
  %2266 = vmatprep.subr.mxu0 0.0
  %2267 = vmatpush1.msra.mxu0 0.0
  %2268 = vmatprep.subr.mxu0 0.0
  %2269 = vmatpush1.msra.mxu0 0.0
  %2270 = vmatprep.subr.mxu0 0.0
  %2271 = vmatpush1.msra.mxu0 0.0
  %2272 = vmatprep.subr.mxu0 0.0
  %2273 = vmatpush1.msra.mxu0 0.0
  %2274 = vmatprep.subr.mxu0 0.0
  %2275 = vmatpush1.msra.mxu0 0.0
  %2276 = vmatprep.subr.mxu0 0.0
  %2277 = vmatpush1.msra.mxu0 0.0
  %2278 = vmatprep.subr.mxu0 0.0
  %2279 = vmatpush1.msra.mxu0 0.0
  %2280 = vmatprep.subr.mxu0 0.0
  %2281 = vmatpush1.msra.mxu0 0.0
  %2282 = vmatprep.subr.mxu0 0.0
  %2283 = vmatpush1.msra.mxu0 0.0
  %2284 = vmatprep.subr.mxu0 0.0
  %2285 = vmatpush1.msra.mxu0 0.0
  %2286 = vmatprep.subr.mxu0 0.0
  %2287 = vmatpush1.msra.mxu0 0.0
  %2288 = vmatprep.subr.mxu0 0.0
  %2289 = vmatpush1.msra.mxu0 0.0
  %2290 = vmatprep.subr.mxu0 %v2171
  %2291 = vmatpush1.msra.mxu0 %v2172
  %2292 = vmatprep.subr.mxu0 0.0
  %2293 = vmatpush2.msra.mxu0 0.0
  %2294 = vmatprep.subr.mxu0 0.0
  %2295 = vmatpush2.msra.mxu0 0.0
  %2296 = vmatprep.subr.mxu0 0.0
  %2297 = vmatpush2.msra.mxu0 0.0
  %2298 = vmatprep.subr.mxu0 0.0
  %2299 = vmatpush2.msra.mxu0 0.0
  %2300 = vmatprep.subr.mxu0 0.0
  %2301 = vmatpush2.msra.mxu0 0.0
  %2302 = vmatprep.subr.mxu0 0.0
  %2303 = vmatpush2.msra.mxu0 0.0
  %2304 = vmatprep.subr.mxu0 0.0
  %2305 = vmatpush2.msra.mxu0 0.0
  %2306 = vmatprep.subr.mxu0 0.0
  %2307 = vmatpush2.msra.mxu0 0.0
  %2308 = vmatprep.subr.mxu0 0.0
  %2309 = vmatpush2.msra.mxu0 0.0
  %2310 = vmatprep.subr.mxu0 0.0
  %2311 = vmatpush2.msra.mxu0 0.0
  %2312 = vmatprep.subr.mxu0 0.0
  %2313 = vmatpush2.msra.mxu0 0.0
  %2314 = vmatprep.subr.mxu0 0.0
  %2315 = vmatpush2.msra.mxu0 0.0
  %2316 = vmatprep.subr.mxu0 0.0
  %2317 = vmatpush2.msra.mxu0 0.0
  %2318 = vmatprep.subr.mxu0 0.0
  %2319 = vmatpush2.msra.mxu0 0.0
  %2320 = vmatprep.subr.mxu0 0.0
  %2321 = vmatpush2.msra.mxu0 0.0
  %2322 = vmatprep.subr.mxu0 0.0
  %2323 = vmatpush2.msra.mxu0 0.0
  %2324 = vmatprep.mubr.f32.mxu0 0.0
  %2325 = vmatmul.mubr.f32.gmra.mxu0 %v2258
  %v2326 = vpop.f32.mrf.mxu0
  %v2327 = vadd.f32 %v2253, %v2326
  %v2328 = vpop.f32.mrf.mxu0
  %v2329 = vadd.f32 %v2255, %v2328
  %2330 = vdwg.mxu0
  %s2331 = scalar_lea.vmem %s4, 192
  %v2332 = vld [vmem:[%s2331] sm:$0xff]
  %v2334 = vsel %vm157, %v2332, 0
  %2336 = vmatprep.subr.mxu0 0.0
  %2337 = vmatpush1.msra.mxu0 0.0
  %2338 = vmatprep.subr.mxu0 0.0
  %2339 = vmatpush1.msra.mxu0 0.0
  %2340 = vmatprep.subr.mxu0 0.0
  %2341 = vmatpush1.msra.mxu0 0.0
  %2342 = vmatprep.subr.mxu0 0.0
  %2343 = vmatpush1.msra.mxu0 0.0
  %2344 = vmatprep.subr.mxu0 0.0
  %2345 = vmatpush1.msra.mxu0 0.0
  %2346 = vmatprep.subr.mxu0 0.0
  %2347 = vmatpush1.msra.mxu0 0.0
  %2348 = vmatprep.subr.mxu0 0.0
  %2349 = vmatpush1.msra.mxu0 0.0
  %2350 = vmatprep.subr.mxu0 0.0
  %2351 = vmatpush1.msra.mxu0 0.0
  %2352 = vmatprep.subr.mxu0 0.0
  %2353 = vmatpush1.msra.mxu0 0.0
  %2354 = vmatprep.subr.mxu0 0.0
  %2355 = vmatpush1.msra.mxu0 0.0
  %2356 = vmatprep.subr.mxu0 0.0
  %2357 = vmatpush1.msra.mxu0 0.0
  %2358 = vmatprep.subr.mxu0 0.0
  %2359 = vmatpush1.msra.mxu0 0.0
  %2360 = vmatprep.subr.mxu0 0.0
  %2361 = vmatpush1.msra.mxu0 0.0
  %2362 = vmatprep.subr.mxu0 0.0
  %2363 = vmatpush1.msra.mxu0 0.0
  %2364 = vmatprep.subr.mxu0 0.0
  %2365 = vmatpush1.msra.mxu0 0.0
  %2366 = vmatprep.subr.mxu0 %v2166
  %2367 = vmatpush1.msra.mxu0 %v2165
  %2368 = vmatprep.subr.mxu0 0.0
  %2369 = vmatpush2.msra.mxu0 0.0
  %2370 = vmatprep.subr.mxu0 0.0
  %2371 = vmatpush2.msra.mxu0 0.0
  %2372 = vmatprep.subr.mxu0 0.0
  %2373 = vmatpush2.msra.mxu0 0.0
  %2374 = vmatprep.subr.mxu0 0.0
  %2375 = vmatpush2.msra.mxu0 0.0
  %2376 = vmatprep.subr.mxu0 0.0
  %2377 = vmatpush2.msra.mxu0 0.0
  %2378 = vmatprep.subr.mxu0 0.0
  %2379 = vmatpush2.msra.mxu0 0.0
  %2380 = vmatprep.subr.mxu0 0.0
  %2381 = vmatpush2.msra.mxu0 0.0
  %2382 = vmatprep.subr.mxu0 0.0
  %2383 = vmatpush2.msra.mxu0 0.0
  %2384 = vmatprep.subr.mxu0 0.0
  %2385 = vmatpush2.msra.mxu0 0.0
  %2386 = vmatprep.subr.mxu0 0.0
  %2387 = vmatpush2.msra.mxu0 0.0
  %2388 = vmatprep.subr.mxu0 0.0
  %2389 = vmatpush2.msra.mxu0 0.0
  %2390 = vmatprep.subr.mxu0 0.0
  %2391 = vmatpush2.msra.mxu0 0.0
  %2392 = vmatprep.subr.mxu0 0.0
  %2393 = vmatpush2.msra.mxu0 0.0
  %2394 = vmatprep.subr.mxu0 0.0
  %2395 = vmatpush2.msra.mxu0 0.0
  %2396 = vmatprep.subr.mxu0 0.0
  %2397 = vmatpush2.msra.mxu0 0.0
  %2398 = vmatprep.subr.mxu0 0.0
  %2399 = vmatpush2.msra.mxu0 0.0
  %2400 = vmatprep.mubr.f32.mxu0 0.0
  %2401 = vmatmul.mubr.f32.gmra.mxu0 %v2334
  %v2402 = vpop.f32.mrf.mxu0
  %v2403 = vadd.f32 0.0, %v2402
  %v2404 = vpop.f32.mrf.mxu0
  %v2405 = vadd.f32 0.0, %v2404
  %2406 = vdwg.mxu0
  %v2407 = vadd.f32 %v2327, %v2403
  %v2408 = vadd.f32 %v2329, %v2405
  %2409 = vrot.lane.b32.xlu0 %v2165, 127
  %v2410 = vpop.permute.xlu0 %2409
  %2411 = vrot.lane.b32.xlu0 %v2166, 127
  %v2412 = vpop.permute.xlu0 %2411
  %v2413 = vsel %vm388, %v2410, %v2412
  %v2414 = vsel %vm388, %v2412, %v2410
  %s2415 = scalar_lea.vmem %s4, 200
  %v2416 = vld [vmem:[%s2415] sm:$0xff]
  %v2418 = vsel %vm157, %v2416, 0
  %2420 = vmatprep.subr.mxu0 0.0
  %2421 = vmatpush1.msra.mxu0 0.0
  %2422 = vmatprep.subr.mxu0 0.0
  %2423 = vmatpush1.msra.mxu0 0.0
  %2424 = vmatprep.subr.mxu0 0.0
  %2425 = vmatpush1.msra.mxu0 0.0
  %2426 = vmatprep.subr.mxu0 0.0
  %2427 = vmatpush1.msra.mxu0 0.0
  %2428 = vmatprep.subr.mxu0 0.0
  %2429 = vmatpush1.msra.mxu0 0.0
  %2430 = vmatprep.subr.mxu0 0.0
  %2431 = vmatpush1.msra.mxu0 0.0
  %2432 = vmatprep.subr.mxu0 0.0
  %2433 = vmatpush1.msra.mxu0 0.0
  %2434 = vmatprep.subr.mxu0 0.0
  %2435 = vmatpush1.msra.mxu0 0.0
  %2436 = vmatprep.subr.mxu0 0.0
  %2437 = vmatpush1.msra.mxu0 0.0
  %2438 = vmatprep.subr.mxu0 0.0
  %2439 = vmatpush1.msra.mxu0 0.0
  %2440 = vmatprep.subr.mxu0 0.0
  %2441 = vmatpush1.msra.mxu0 0.0
  %2442 = vmatprep.subr.mxu0 0.0
  %2443 = vmatpush1.msra.mxu0 0.0
  %2444 = vmatprep.subr.mxu0 0.0
  %2445 = vmatpush1.msra.mxu0 0.0
  %2446 = vmatprep.subr.mxu0 0.0
  %2447 = vmatpush1.msra.mxu0 0.0
  %2448 = vmatprep.subr.mxu0 0.0
  %2449 = vmatpush1.msra.mxu0 0.0
  %2450 = vmatprep.subr.mxu0 %v2414
  %2451 = vmatpush1.msra.mxu0 %v2413
  %2452 = vmatprep.subr.mxu0 0.0
  %2453 = vmatpush2.msra.mxu0 0.0
  %2454 = vmatprep.subr.mxu0 0.0
  %2455 = vmatpush2.msra.mxu0 0.0
  %2456 = vmatprep.subr.mxu0 0.0
  %2457 = vmatpush2.msra.mxu0 0.0
  %2458 = vmatprep.subr.mxu0 0.0
  %2459 = vmatpush2.msra.mxu0 0.0
  %2460 = vmatprep.subr.mxu0 0.0
  %2461 = vmatpush2.msra.mxu0 0.0
  %2462 = vmatprep.subr.mxu0 0.0
  %2463 = vmatpush2.msra.mxu0 0.0
  %2464 = vmatprep.subr.mxu0 0.0
  %2465 = vmatpush2.msra.mxu0 0.0
  %2466 = vmatprep.subr.mxu0 0.0
  %2467 = vmatpush2.msra.mxu0 0.0
  %2468 = vmatprep.subr.mxu0 0.0
  %2469 = vmatpush2.msra.mxu0 0.0
  %2470 = vmatprep.subr.mxu0 0.0
  %2471 = vmatpush2.msra.mxu0 0.0
  %2472 = vmatprep.subr.mxu0 0.0
  %2473 = vmatpush2.msra.mxu0 0.0
  %2474 = vmatprep.subr.mxu0 0.0
  %2475 = vmatpush2.msra.mxu0 0.0
  %2476 = vmatprep.subr.mxu0 0.0
  %2477 = vmatpush2.msra.mxu0 0.0
  %2478 = vmatprep.subr.mxu0 0.0
  %2479 = vmatpush2.msra.mxu0 0.0
  %2480 = vmatprep.subr.mxu0 0.0
  %2481 = vmatpush2.msra.mxu0 0.0
  %2482 = vmatprep.subr.mxu0 0.0
  %2483 = vmatpush2.msra.mxu0 0.0
  %2484 = vmatprep.mubr.f32.mxu0 0.0
  %2485 = vmatmul.mubr.f32.gmra.mxu0 %v2418
  %v2486 = vpop.f32.mrf.mxu0
  %v2487 = vadd.f32 0.0, %v2486
  %v2488 = vpop.f32.mrf.mxu0
  %v2489 = vadd.f32 0.0, %v2488
  %2490 = vdwg.mxu0
  %v2491 = vadd.f32 %v2407, %v2487
  %v2492 = vadd.f32 %v2408, %v2489
  %2493 = vrot.lane.b32.xlu0 %v2165, 126
  %v2494 = vpop.permute.xlu0 %2493
  %2495 = vrot.lane.b32.xlu0 %v2166, 126
  %v2496 = vpop.permute.xlu0 %2495
  %v2497 = vsel %vm473, %v2494, %v2496
  %v2498 = vsel %vm473, %v2496, %v2494
  %s2499 = scalar_lea.vmem %s4, 208
  %v2500 = vld [vmem:[%s2499] sm:$0xff]
  %v2502 = vsel %vm157, %v2500, 0
  %2504 = vmatprep.subr.mxu0 0.0
  %2505 = vmatpush1.msra.mxu0 0.0
  %2506 = vmatprep.subr.mxu0 0.0
  %2507 = vmatpush1.msra.mxu0 0.0
  %2508 = vmatprep.subr.mxu0 0.0
  %2509 = vmatpush1.msra.mxu0 0.0
  %2510 = vmatprep.subr.mxu0 0.0
  %2511 = vmatpush1.msra.mxu0 0.0
  %2512 = vmatprep.subr.mxu0 0.0
  %2513 = vmatpush1.msra.mxu0 0.0
  %2514 = vmatprep.subr.mxu0 0.0
  %2515 = vmatpush1.msra.mxu0 0.0
  %2516 = vmatprep.subr.mxu0 0.0
  %2517 = vmatpush1.msra.mxu0 0.0
  %2518 = vmatprep.subr.mxu0 0.0
  %2519 = vmatpush1.msra.mxu0 0.0
  %2520 = vmatprep.subr.mxu0 0.0
  %2521 = vmatpush1.msra.mxu0 0.0
  %2522 = vmatprep.subr.mxu0 0.0
  %2523 = vmatpush1.msra.mxu0 0.0
  %2524 = vmatprep.subr.mxu0 0.0
  %2525 = vmatpush1.msra.mxu0 0.0
  %2526 = vmatprep.subr.mxu0 0.0
  %2527 = vmatpush1.msra.mxu0 0.0
  %2528 = vmatprep.subr.mxu0 0.0
  %2529 = vmatpush1.msra.mxu0 0.0
  %2530 = vmatprep.subr.mxu0 0.0
  %2531 = vmatpush1.msra.mxu0 0.0
  %2532 = vmatprep.subr.mxu0 0.0
  %2533 = vmatpush1.msra.mxu0 0.0
  %2534 = vmatprep.subr.mxu0 %v2498
  %2535 = vmatpush1.msra.mxu0 %v2497
  %2536 = vmatprep.subr.mxu0 0.0
  %2537 = vmatpush2.msra.mxu0 0.0
  %2538 = vmatprep.subr.mxu0 0.0
  %2539 = vmatpush2.msra.mxu0 0.0
  %2540 = vmatprep.subr.mxu0 0.0
  %2541 = vmatpush2.msra.mxu0 0.0
  %2542 = vmatprep.subr.mxu0 0.0
  %2543 = vmatpush2.msra.mxu0 0.0
  %2544 = vmatprep.subr.mxu0 0.0
  %2545 = vmatpush2.msra.mxu0 0.0
  %2546 = vmatprep.subr.mxu0 0.0
  %2547 = vmatpush2.msra.mxu0 0.0
  %2548 = vmatprep.subr.mxu0 0.0
  %2549 = vmatpush2.msra.mxu0 0.0
  %2550 = vmatprep.subr.mxu0 0.0
  %2551 = vmatpush2.msra.mxu0 0.0
  %2552 = vmatprep.subr.mxu0 0.0
  %2553 = vmatpush2.msra.mxu0 0.0
  %2554 = vmatprep.subr.mxu0 0.0
  %2555 = vmatpush2.msra.mxu0 0.0
  %2556 = vmatprep.subr.mxu0 0.0
  %2557 = vmatpush2.msra.mxu0 0.0
  %2558 = vmatprep.subr.mxu0 0.0
  %2559 = vmatpush2.msra.mxu0 0.0
  %2560 = vmatprep.subr.mxu0 0.0
  %2561 = vmatpush2.msra.mxu0 0.0
  %2562 = vmatprep.subr.mxu0 0.0
  %2563 = vmatpush2.msra.mxu0 0.0
  %2564 = vmatprep.subr.mxu0 0.0
  %2565 = vmatpush2.msra.mxu0 0.0
  %2566 = vmatprep.subr.mxu0 0.0
  %2567 = vmatpush2.msra.mxu0 0.0
  %2568 = vmatprep.mubr.f32.mxu0 0.0
  %2569 = vmatmul.mubr.f32.gmra.mxu0 %v2502
  %v2570 = vpop.f32.mrf.mxu0
  %v2571 = vadd.f32 0.0, %v2570
  %v2572 = vpop.f32.mrf.mxu0
  %v2573 = vadd.f32 0.0, %v2572
  %2574 = vdwg.mxu0
  %v2575 = vadd.f32 %v2491, %v2571
  %v2576 = vadd.f32 %v2492, %v2573
  %s2577 = scalar_lea.vmem %s5, 48
  %v2578 = vld [vmem:[%s2577] sm:$0xff]
  %2580 = vset.pattern.permute.xlu0 0
  %2581 = vperm.xlu0 %2580, %v2578
  %v2582 = vpop.permute.xlu0 %2581
  %v2584 = vadd.f32 %v2575, %v2582
  %v2585 = vadd.f32 %v2576, %v2582
  %v2586 = vmax.f32 %v2584, 0.0
  %v2587 = vmax.f32 %v2585, 0.0
  %v2588 = vmul.f32 %v2586, %v2164
  %v2589 = vmul.f32 %v2587, %v2164
  %2590 = vrot.lane.b32.xlu0 %v2588, 2
  %v2591 = vpop.permute.xlu0 %2590
  %2592 = vrot.lane.b32.xlu0 %v2589, 2
  %v2593 = vpop.permute.xlu0 %2592
  %v2594 = vsel %vm144, %v2591, %v2593
  %v2595 = vsel %vm144, %v2593, %v2591
  %s2596 = scalar_lea.vmem %s4, 216
  %v2597 = vld [vmem:[%s2596] sm:$0xff]
  %2598 = vrot.lane.b32.xlu0 %v2588, 1
  %v2599 = vpop.permute.xlu0 %2598
  %2600 = vrot.lane.b32.xlu0 %v2589, 1
  %v2601 = vpop.permute.xlu0 %2600
  %v2602 = vsel %vm152, %v2599, %v2601
  %v2603 = vsel %vm152, %v2601, %v2599
  %s2604 = scalar_lea.vmem %s4, 224
  %v2605 = vld [vmem:[%s2604] sm:$0xff]
  %v2607 = vsel %vm157, %v2605, 0
  %2609 = vmatprep.subr.mxu0 0.0
  %2610 = vmatpush1.msra.mxu0 0.0
  %2611 = vmatprep.subr.mxu0 0.0
  %2612 = vmatpush1.msra.mxu0 0.0
  %2613 = vmatprep.subr.mxu0 0.0
  %2614 = vmatpush1.msra.mxu0 0.0
  %2615 = vmatprep.subr.mxu0 0.0
  %2616 = vmatpush1.msra.mxu0 0.0
  %2617 = vmatprep.subr.mxu0 0.0
  %2618 = vmatpush1.msra.mxu0 0.0
  %2619 = vmatprep.subr.mxu0 0.0
  %2620 = vmatpush1.msra.mxu0 0.0
  %2621 = vmatprep.subr.mxu0 0.0
  %2622 = vmatpush1.msra.mxu0 0.0
  %2623 = vmatprep.subr.mxu0 0.0
  %2624 = vmatpush1.msra.mxu0 0.0
  %2625 = vmatprep.subr.mxu0 0.0
  %2626 = vmatpush1.msra.mxu0 0.0
  %2627 = vmatprep.subr.mxu0 0.0
  %2628 = vmatpush1.msra.mxu0 0.0
  %2629 = vmatprep.subr.mxu0 0.0
  %2630 = vmatpush1.msra.mxu0 0.0
  %2631 = vmatprep.subr.mxu0 0.0
  %2632 = vmatpush1.msra.mxu0 0.0
  %2633 = vmatprep.subr.mxu0 0.0
  %2634 = vmatpush1.msra.mxu0 0.0
  %2635 = vmatprep.subr.mxu0 0.0
  %2636 = vmatpush1.msra.mxu0 0.0
  %2637 = vmatprep.subr.mxu0 0.0
  %2638 = vmatpush1.msra.mxu0 0.0
  %2639 = vmatprep.subr.mxu0 %v2602
  %2640 = vmatpush1.msra.mxu0 %v2603
  %2641 = vmatprep.subr.mxu0 0.0
  %2642 = vmatpush2.msra.mxu0 0.0
  %2643 = vmatprep.subr.mxu0 0.0
  %2644 = vmatpush2.msra.mxu0 0.0
  %2645 = vmatprep.subr.mxu0 0.0
  %2646 = vmatpush2.msra.mxu0 0.0
  %2647 = vmatprep.subr.mxu0 0.0
  %2648 = vmatpush2.msra.mxu0 0.0
  %2649 = vmatprep.subr.mxu0 0.0
  %2650 = vmatpush2.msra.mxu0 0.0
  %2651 = vmatprep.subr.mxu0 0.0
  %2652 = vmatpush2.msra.mxu0 0.0
  %2653 = vmatprep.subr.mxu0 0.0
  %2654 = vmatpush2.msra.mxu0 0.0
  %2655 = vmatprep.subr.mxu0 0.0
  %2656 = vmatpush2.msra.mxu0 0.0
  %2657 = vmatprep.subr.mxu0 0.0
  %2658 = vmatpush2.msra.mxu0 0.0
  %2659 = vmatprep.subr.mxu0 0.0
  %2660 = vmatpush2.msra.mxu0 0.0
  %2661 = vmatprep.subr.mxu0 0.0
  %2662 = vmatpush2.msra.mxu0 0.0
  %2663 = vmatprep.subr.mxu0 0.0
  %2664 = vmatpush2.msra.mxu0 0.0
  %2665 = vmatprep.subr.mxu0 0.0
  %2666 = vmatpush2.msra.mxu0 0.0
  %2667 = vmatprep.subr.mxu0 0.0
  %2668 = vmatpush2.msra.mxu0 0.0
  %2669 = vmatprep.subr.mxu0 0.0
  %2670 = vmatpush2.msra.mxu0 0.0
  %2671 = vmatprep.subr.mxu0 0.0
  %2672 = vmatpush2.msra.mxu0 0.0
  %2673 = vmatprep.mubr.f32.mxu0 0.0
  %2674 = vmatmul.mubr.f32.gmra.mxu0 %v2607
  %v2675 = vpop.f32.mrf.mxu0
  %v2676 = vadd.f32 0.0, %v2675
  %v2677 = vpop.f32.mrf.mxu0
  %v2678 = vadd.f32 0.0, %v2677
  %2679 = vdwg.mxu0
  %v2681 = vsel %vm157, %v2597, 0
  %2683 = vmatprep.subr.mxu0 0.0
  %2684 = vmatpush1.msra.mxu0 0.0
  %2685 = vmatprep.subr.mxu0 0.0
  %2686 = vmatpush1.msra.mxu0 0.0
  %2687 = vmatprep.subr.mxu0 0.0
  %2688 = vmatpush1.msra.mxu0 0.0
  %2689 = vmatprep.subr.mxu0 0.0
  %2690 = vmatpush1.msra.mxu0 0.0
  %2691 = vmatprep.subr.mxu0 0.0
  %2692 = vmatpush1.msra.mxu0 0.0
  %2693 = vmatprep.subr.mxu0 0.0
  %2694 = vmatpush1.msra.mxu0 0.0
  %2695 = vmatprep.subr.mxu0 0.0
  %2696 = vmatpush1.msra.mxu0 0.0
  %2697 = vmatprep.subr.mxu0 0.0
  %2698 = vmatpush1.msra.mxu0 0.0
  %2699 = vmatprep.subr.mxu0 0.0
  %2700 = vmatpush1.msra.mxu0 0.0
  %2701 = vmatprep.subr.mxu0 0.0
  %2702 = vmatpush1.msra.mxu0 0.0
  %2703 = vmatprep.subr.mxu0 0.0
  %2704 = vmatpush1.msra.mxu0 0.0
  %2705 = vmatprep.subr.mxu0 0.0
  %2706 = vmatpush1.msra.mxu0 0.0
  %2707 = vmatprep.subr.mxu0 0.0
  %2708 = vmatpush1.msra.mxu0 0.0
  %2709 = vmatprep.subr.mxu0 0.0
  %2710 = vmatpush1.msra.mxu0 0.0
  %2711 = vmatprep.subr.mxu0 0.0
  %2712 = vmatpush1.msra.mxu0 0.0
  %2713 = vmatprep.subr.mxu0 %v2594
  %2714 = vmatpush1.msra.mxu0 %v2595
  %2715 = vmatprep.subr.mxu0 0.0
  %2716 = vmatpush2.msra.mxu0 0.0
  %2717 = vmatprep.subr.mxu0 0.0
  %2718 = vmatpush2.msra.mxu0 0.0
  %2719 = vmatprep.subr.mxu0 0.0
  %2720 = vmatpush2.msra.mxu0 0.0
  %2721 = vmatprep.subr.mxu0 0.0
  %2722 = vmatpush2.msra.mxu0 0.0
  %2723 = vmatprep.subr.mxu0 0.0
  %2724 = vmatpush2.msra.mxu0 0.0
  %2725 = vmatprep.subr.mxu0 0.0
  %2726 = vmatpush2.msra.mxu0 0.0
  %2727 = vmatprep.subr.mxu0 0.0
  %2728 = vmatpush2.msra.mxu0 0.0
  %2729 = vmatprep.subr.mxu0 0.0
  %2730 = vmatpush2.msra.mxu0 0.0
  %2731 = vmatprep.subr.mxu0 0.0
  %2732 = vmatpush2.msra.mxu0 0.0
  %2733 = vmatprep.subr.mxu0 0.0
  %2734 = vmatpush2.msra.mxu0 0.0
  %2735 = vmatprep.subr.mxu0 0.0
  %2736 = vmatpush2.msra.mxu0 0.0
  %2737 = vmatprep.subr.mxu0 0.0
  %2738 = vmatpush2.msra.mxu0 0.0
  %2739 = vmatprep.subr.mxu0 0.0
  %2740 = vmatpush2.msra.mxu0 0.0
  %2741 = vmatprep.subr.mxu0 0.0
  %2742 = vmatpush2.msra.mxu0 0.0
  %2743 = vmatprep.subr.mxu0 0.0
  %2744 = vmatpush2.msra.mxu0 0.0
  %2745 = vmatprep.subr.mxu0 0.0
  %2746 = vmatpush2.msra.mxu0 0.0
  %2747 = vmatprep.mubr.f32.mxu0 0.0
  %2748 = vmatmul.mubr.f32.gmra.mxu0 %v2681
  %v2749 = vpop.f32.mrf.mxu0
  %v2750 = vadd.f32 %v2676, %v2749
  %v2751 = vpop.f32.mrf.mxu0
  %v2752 = vadd.f32 %v2678, %v2751
  %2753 = vdwg.mxu0
  %s2754 = scalar_lea.vmem %s4, 232
  %v2755 = vld [vmem:[%s2754] sm:$0xff]
  %v2757 = vsel %vm157, %v2755, 0
  %2759 = vmatprep.subr.mxu0 0.0
  %2760 = vmatpush1.msra.mxu0 0.0
  %2761 = vmatprep.subr.mxu0 0.0
  %2762 = vmatpush1.msra.mxu0 0.0
  %2763 = vmatprep.subr.mxu0 0.0
  %2764 = vmatpush1.msra.mxu0 0.0
  %2765 = vmatprep.subr.mxu0 0.0
  %2766 = vmatpush1.msra.mxu0 0.0
  %2767 = vmatprep.subr.mxu0 0.0
  %2768 = vmatpush1.msra.mxu0 0.0
  %2769 = vmatprep.subr.mxu0 0.0
  %2770 = vmatpush1.msra.mxu0 0.0
  %2771 = vmatprep.subr.mxu0 0.0
  %2772 = vmatpush1.msra.mxu0 0.0
  %2773 = vmatprep.subr.mxu0 0.0
  %2774 = vmatpush1.msra.mxu0 0.0
  %2775 = vmatprep.subr.mxu0 0.0
  %2776 = vmatpush1.msra.mxu0 0.0
  %2777 = vmatprep.subr.mxu0 0.0
  %2778 = vmatpush1.msra.mxu0 0.0
  %2779 = vmatprep.subr.mxu0 0.0
  %2780 = vmatpush1.msra.mxu0 0.0
  %2781 = vmatprep.subr.mxu0 0.0
  %2782 = vmatpush1.msra.mxu0 0.0
  %2783 = vmatprep.subr.mxu0 0.0
  %2784 = vmatpush1.msra.mxu0 0.0
  %2785 = vmatprep.subr.mxu0 0.0
  %2786 = vmatpush1.msra.mxu0 0.0
  %2787 = vmatprep.subr.mxu0 0.0
  %2788 = vmatpush1.msra.mxu0 0.0
  %2789 = vmatprep.subr.mxu0 %v2589
  %2790 = vmatpush1.msra.mxu0 %v2588
  %2791 = vmatprep.subr.mxu0 0.0
  %2792 = vmatpush2.msra.mxu0 0.0
  %2793 = vmatprep.subr.mxu0 0.0
  %2794 = vmatpush2.msra.mxu0 0.0
  %2795 = vmatprep.subr.mxu0 0.0
  %2796 = vmatpush2.msra.mxu0 0.0
  %2797 = vmatprep.subr.mxu0 0.0
  %2798 = vmatpush2.msra.mxu0 0.0
  %2799 = vmatprep.subr.mxu0 0.0
  %2800 = vmatpush2.msra.mxu0 0.0
  %2801 = vmatprep.subr.mxu0 0.0
  %2802 = vmatpush2.msra.mxu0 0.0
  %2803 = vmatprep.subr.mxu0 0.0
  %2804 = vmatpush2.msra.mxu0 0.0
  %2805 = vmatprep.subr.mxu0 0.0
  %2806 = vmatpush2.msra.mxu0 0.0
  %2807 = vmatprep.subr.mxu0 0.0
  %2808 = vmatpush2.msra.mxu0 0.0
  %2809 = vmatprep.subr.mxu0 0.0
  %2810 = vmatpush2.msra.mxu0 0.0
  %2811 = vmatprep.subr.mxu0 0.0
  %2812 = vmatpush2.msra.mxu0 0.0
  %2813 = vmatprep.subr.mxu0 0.0
  %2814 = vmatpush2.msra.mxu0 0.0
  %2815 = vmatprep.subr.mxu0 0.0
  %2816 = vmatpush2.msra.mxu0 0.0
  %2817 = vmatprep.subr.mxu0 0.0
  %2818 = vmatpush2.msra.mxu0 0.0
  %2819 = vmatprep.subr.mxu0 0.0
  %2820 = vmatpush2.msra.mxu0 0.0
  %2821 = vmatprep.subr.mxu0 0.0
  %2822 = vmatpush2.msra.mxu0 0.0
  %2823 = vmatprep.mubr.f32.mxu0 0.0
  %2824 = vmatmul.mubr.f32.gmra.mxu0 %v2757
  %v2825 = vpop.f32.mrf.mxu0
  %v2826 = vadd.f32 0.0, %v2825
  %v2827 = vpop.f32.mrf.mxu0
  %v2828 = vadd.f32 0.0, %v2827
  %2829 = vdwg.mxu0
  %v2830 = vadd.f32 %v2750, %v2826
  %v2831 = vadd.f32 %v2752, %v2828
  %2832 = vrot.lane.b32.xlu0 %v2588, 127
  %v2833 = vpop.permute.xlu0 %2832
  %2834 = vrot.lane.b32.xlu0 %v2589, 127
  %v2835 = vpop.permute.xlu0 %2834
  %v2836 = vsel %vm388, %v2833, %v2835
  %v2837 = vsel %vm388, %v2835, %v2833
  %s2838 = scalar_lea.vmem %s4, 240
  %v2839 = vld [vmem:[%s2838] sm:$0xff]
  %v2841 = vsel %vm157, %v2839, 0
  %2843 = vmatprep.subr.mxu0 0.0
  %2844 = vmatpush1.msra.mxu0 0.0
  %2845 = vmatprep.subr.mxu0 0.0
  %2846 = vmatpush1.msra.mxu0 0.0
  %2847 = vmatprep.subr.mxu0 0.0
  %2848 = vmatpush1.msra.mxu0 0.0
  %2849 = vmatprep.subr.mxu0 0.0
  %2850 = vmatpush1.msra.mxu0 0.0
  %2851 = vmatprep.subr.mxu0 0.0
  %2852 = vmatpush1.msra.mxu0 0.0
  %2853 = vmatprep.subr.mxu0 0.0
  %2854 = vmatpush1.msra.mxu0 0.0
  %2855 = vmatprep.subr.mxu0 0.0
  %2856 = vmatpush1.msra.mxu0 0.0
  %2857 = vmatprep.subr.mxu0 0.0
  %2858 = vmatpush1.msra.mxu0 0.0
  %2859 = vmatprep.subr.mxu0 0.0
  %2860 = vmatpush1.msra.mxu0 0.0
  %2861 = vmatprep.subr.mxu0 0.0
  %2862 = vmatpush1.msra.mxu0 0.0
  %2863 = vmatprep.subr.mxu0 0.0
  %2864 = vmatpush1.msra.mxu0 0.0
  %2865 = vmatprep.subr.mxu0 0.0
  %2866 = vmatpush1.msra.mxu0 0.0
  %2867 = vmatprep.subr.mxu0 0.0
  %2868 = vmatpush1.msra.mxu0 0.0
  %2869 = vmatprep.subr.mxu0 0.0
  %2870 = vmatpush1.msra.mxu0 0.0
  %2871 = vmatprep.subr.mxu0 0.0
  %2872 = vmatpush1.msra.mxu0 0.0
  %2873 = vmatprep.subr.mxu0 %v2837
  %2874 = vmatpush1.msra.mxu0 %v2836
  %2875 = vmatprep.subr.mxu0 0.0
  %2876 = vmatpush2.msra.mxu0 0.0
  %2877 = vmatprep.subr.mxu0 0.0
  %2878 = vmatpush2.msra.mxu0 0.0
  %2879 = vmatprep.subr.mxu0 0.0
  %2880 = vmatpush2.msra.mxu0 0.0
  %2881 = vmatprep.subr.mxu0 0.0
  %2882 = vmatpush2.msra.mxu0 0.0
  %2883 = vmatprep.subr.mxu0 0.0
  %2884 = vmatpush2.msra.mxu0 0.0
  %2885 = vmatprep.subr.mxu0 0.0
  %2886 = vmatpush2.msra.mxu0 0.0
  %2887 = vmatprep.subr.mxu0 0.0
  %2888 = vmatpush2.msra.mxu0 0.0
  %2889 = vmatprep.subr.mxu0 0.0
  %2890 = vmatpush2.msra.mxu0 0.0
  %2891 = vmatprep.subr.mxu0 0.0
  %2892 = vmatpush2.msra.mxu0 0.0
  %2893 = vmatprep.subr.mxu0 0.0
  %2894 = vmatpush2.msra.mxu0 0.0
  %2895 = vmatprep.subr.mxu0 0.0
  %2896 = vmatpush2.msra.mxu0 0.0
  %2897 = vmatprep.subr.mxu0 0.0
  %2898 = vmatpush2.msra.mxu0 0.0
  %2899 = vmatprep.subr.mxu0 0.0
  %2900 = vmatpush2.msra.mxu0 0.0
  %2901 = vmatprep.subr.mxu0 0.0
  %2902 = vmatpush2.msra.mxu0 0.0
  %2903 = vmatprep.subr.mxu0 0.0
  %2904 = vmatpush2.msra.mxu0 0.0
  %2905 = vmatprep.subr.mxu0 0.0
  %2906 = vmatpush2.msra.mxu0 0.0
  %2907 = vmatprep.mubr.f32.mxu0 0.0
  %2908 = vmatmul.mubr.f32.gmra.mxu0 %v2841
  %v2909 = vpop.f32.mrf.mxu0
  %v2910 = vadd.f32 0.0, %v2909
  %v2911 = vpop.f32.mrf.mxu0
  %v2912 = vadd.f32 0.0, %v2911
  %2913 = vdwg.mxu0
  %v2914 = vadd.f32 %v2830, %v2910
  %v2915 = vadd.f32 %v2831, %v2912
  %2916 = vrot.lane.b32.xlu0 %v2588, 126
  %v2917 = vpop.permute.xlu0 %2916
  %2918 = vrot.lane.b32.xlu0 %v2589, 126
  %v2919 = vpop.permute.xlu0 %2918
  %v2920 = vsel %vm473, %v2917, %v2919
  %v2921 = vsel %vm473, %v2919, %v2917
  %s2922 = scalar_lea.vmem %s4, 248
  %v2923 = vld [vmem:[%s2922] sm:$0xff]
  %v2925 = vsel %vm157, %v2923, 0
  %2927 = vmatprep.subr.mxu0 0.0
  %2928 = vmatpush1.msra.mxu0 0.0
  %2929 = vmatprep.subr.mxu0 0.0
  %2930 = vmatpush1.msra.mxu0 0.0
  %2931 = vmatprep.subr.mxu0 0.0
  %2932 = vmatpush1.msra.mxu0 0.0
  %2933 = vmatprep.subr.mxu0 0.0
  %2934 = vmatpush1.msra.mxu0 0.0
  %2935 = vmatprep.subr.mxu0 0.0
  %2936 = vmatpush1.msra.mxu0 0.0
  %2937 = vmatprep.subr.mxu0 0.0
  %2938 = vmatpush1.msra.mxu0 0.0
  %2939 = vmatprep.subr.mxu0 0.0
  %2940 = vmatpush1.msra.mxu0 0.0
  %2941 = vmatprep.subr.mxu0 0.0
  %2942 = vmatpush1.msra.mxu0 0.0
  %2943 = vmatprep.subr.mxu0 0.0
  %2944 = vmatpush1.msra.mxu0 0.0
  %2945 = vmatprep.subr.mxu0 0.0
  %2946 = vmatpush1.msra.mxu0 0.0
  %2947 = vmatprep.subr.mxu0 0.0
  %2948 = vmatpush1.msra.mxu0 0.0
  %2949 = vmatprep.subr.mxu0 0.0
  %2950 = vmatpush1.msra.mxu0 0.0
  %2951 = vmatprep.subr.mxu0 0.0
  %2952 = vmatpush1.msra.mxu0 0.0
  %2953 = vmatprep.subr.mxu0 0.0
  %2954 = vmatpush1.msra.mxu0 0.0
  %2955 = vmatprep.subr.mxu0 0.0
  %2956 = vmatpush1.msra.mxu0 0.0
  %2957 = vmatprep.subr.mxu0 %v2921
  %2958 = vmatpush1.msra.mxu0 %v2920
  %2959 = vmatprep.subr.mxu0 0.0
  %2960 = vmatpush2.msra.mxu0 0.0
  %2961 = vmatprep.subr.mxu0 0.0
  %2962 = vmatpush2.msra.mxu0 0.0
  %2963 = vmatprep.subr.mxu0 0.0
  %2964 = vmatpush2.msra.mxu0 0.0
  %2965 = vmatprep.subr.mxu0 0.0
  %2966 = vmatpush2.msra.mxu0 0.0
  %2967 = vmatprep.subr.mxu0 0.0
  %2968 = vmatpush2.msra.mxu0 0.0
  %2969 = vmatprep.subr.mxu0 0.0
  %2970 = vmatpush2.msra.mxu0 0.0
  %2971 = vmatprep.subr.mxu0 0.0
  %2972 = vmatpush2.msra.mxu0 0.0
  %2973 = vmatprep.subr.mxu0 0.0
  %2974 = vmatpush2.msra.mxu0 0.0
  %2975 = vmatprep.subr.mxu0 0.0
  %2976 = vmatpush2.msra.mxu0 0.0
  %2977 = vmatprep.subr.mxu0 0.0
  %2978 = vmatpush2.msra.mxu0 0.0
  %2979 = vmatprep.subr.mxu0 0.0
  %2980 = vmatpush2.msra.mxu0 0.0
  %2981 = vmatprep.subr.mxu0 0.0
  %2982 = vmatpush2.msra.mxu0 0.0
  %2983 = vmatprep.subr.mxu0 0.0
  %2984 = vmatpush2.msra.mxu0 0.0
  %2985 = vmatprep.subr.mxu0 0.0
  %2986 = vmatpush2.msra.mxu0 0.0
  %2987 = vmatprep.subr.mxu0 0.0
  %2988 = vmatpush2.msra.mxu0 0.0
  %2989 = vmatprep.subr.mxu0 0.0
  %2990 = vmatpush2.msra.mxu0 0.0
  %2991 = vmatprep.mubr.f32.mxu0 0.0
  %2992 = vmatmul.mubr.f32.gmra.mxu0 %v2925
  %v2993 = vpop.f32.mrf.mxu0
  %v2994 = vadd.f32 0.0, %v2993
  %v2995 = vpop.f32.mrf.mxu0
  %v2996 = vadd.f32 0.0, %v2995
  %2997 = vdwg.mxu0
  %v2998 = vadd.f32 %v2914, %v2994
  %v2999 = vadd.f32 %v2915, %v2996
  %s3000 = scalar_lea.vmem %s5, 56
  %v3001 = vld [vmem:[%s3000] sm:$0xff]
  %3003 = vset.pattern.permute.xlu0 0
  %3004 = vperm.xlu0 %3003, %v3001
  %v3005 = vpop.permute.xlu0 %3004
  %v3007 = vadd.f32 %v2998, %v3005
  %v3008 = vadd.f32 %v2999, %v3005
  %v3009 = vmax.f32 %v3007, 0.0
  %v3010 = vmax.f32 %v3008, 0.0
  %s3011 = scalar_lea.vmem %s4, 256
  %v3012 = vld [vmem:[%s3011] sm:$0xff]
  %s3013 = scalar_lea.vmem %s5, 64
  %v3014 = vld [vmem:[%s3013] sm:$0xff]
  %3016 = vset.pattern.permute.xlu0 0
  %3017 = vperm.xlu0 %3016, %v3014
  %v3018 = vpop.permute.xlu0 %3017
  %v3021 = vsel %vm157, %v3012, 0
  %3023 = vmatprep.subr.mxu0 0.0
  %3024 = vmatpush1.msra.mxu0 0.0
  %3025 = vmatprep.subr.mxu0 0.0
  %3026 = vmatpush1.msra.mxu0 0.0
  %3027 = vmatprep.subr.mxu0 0.0
  %3028 = vmatpush1.msra.mxu0 0.0
  %3029 = vmatprep.subr.mxu0 0.0
  %3030 = vmatpush1.msra.mxu0 0.0
  %3031 = vmatprep.subr.mxu0 0.0
  %3032 = vmatpush1.msra.mxu0 0.0
  %3033 = vmatprep.subr.mxu0 0.0
  %3034 = vmatpush1.msra.mxu0 0.0
  %3035 = vmatprep.subr.mxu0 0.0
  %3036 = vmatpush1.msra.mxu0 0.0
  %3037 = vmatprep.subr.mxu0 0.0
  %3038 = vmatpush1.msra.mxu0 0.0
  %3039 = vmatprep.subr.mxu0 0.0
  %3040 = vmatpush1.msra.mxu0 0.0
  %3041 = vmatprep.subr.mxu0 0.0
  %3042 = vmatpush1.msra.mxu0 0.0
  %3043 = vmatprep.subr.mxu0 0.0
  %3044 = vmatpush1.msra.mxu0 0.0
  %3045 = vmatprep.subr.mxu0 0.0
  %3046 = vmatpush1.msra.mxu0 0.0
  %3047 = vmatprep.subr.mxu0 0.0
  %3048 = vmatpush1.msra.mxu0 0.0
  %3049 = vmatprep.subr.mxu0 0.0
  %3050 = vmatpush1.msra.mxu0 0.0
  %3051 = vmatprep.subr.mxu0 0.0
  %3052 = vmatpush1.msra.mxu0 0.0
  %3053 = vmatprep.subr.mxu0 %v2158
  %3054 = vmatpush1.msra.mxu0 %v2088
  %3055 = vmatprep.subr.mxu0 0.0
  %3056 = vmatpush2.msra.mxu0 0.0
  %3057 = vmatprep.subr.mxu0 0.0
  %3058 = vmatpush2.msra.mxu0 0.0
  %3059 = vmatprep.subr.mxu0 0.0
  %3060 = vmatpush2.msra.mxu0 0.0
  %3061 = vmatprep.subr.mxu0 0.0
  %3062 = vmatpush2.msra.mxu0 0.0
  %3063 = vmatprep.subr.mxu0 0.0
  %3064 = vmatpush2.msra.mxu0 0.0
  %3065 = vmatprep.subr.mxu0 0.0
  %3066 = vmatpush2.msra.mxu0 0.0
  %3067 = vmatprep.subr.mxu0 0.0
  %3068 = vmatpush2.msra.mxu0 0.0
  %3069 = vmatprep.subr.mxu0 0.0
  %3070 = vmatpush2.msra.mxu0 0.0
  %3071 = vmatprep.subr.mxu0 0.0
  %3072 = vmatpush2.msra.mxu0 0.0
  %3073 = vmatprep.subr.mxu0 0.0
  %3074 = vmatpush2.msra.mxu0 0.0
  %3075 = vmatprep.subr.mxu0 0.0
  %3076 = vmatpush2.msra.mxu0 0.0
  %3077 = vmatprep.subr.mxu0 0.0
  %3078 = vmatpush2.msra.mxu0 0.0
  %3079 = vmatprep.subr.mxu0 0.0
  %3080 = vmatpush2.msra.mxu0 0.0
  %3081 = vmatprep.subr.mxu0 0.0
  %3082 = vmatpush2.msra.mxu0 0.0
  %3083 = vmatprep.subr.mxu0 0.0
  %3084 = vmatpush2.msra.mxu0 0.0
  %3085 = vmatprep.subr.mxu0 0.0
  %3086 = vmatpush2.msra.mxu0 0.0
  %3087 = vmatprep.mubr.f32.mxu0 0.0
  %3088 = vmatmul.mubr.f32.gmra.mxu0 %v3021
  %v3089 = vpop.f32.mrf.mxu0
  %v3090 = vadd.f32 %v3018, %v3089
  %v3091 = vpop.f32.mrf.mxu0
  %v3092 = vadd.f32 %v3018, %v3091
  %3093 = vdwg.mxu0
  %v3094 = vadd.f32 %v3009, %v3090
  %v3095 = vadd.f32 %v3010, %v3092
  %v3096 = vmul.f32 %v3094, %v2164
  %v3097 = vmul.f32 %v3095, %v2164
  %3098 = vrot.lane.b32.xlu0 %v3096, 4
  %v3099 = vpop.permute.xlu0 %3098
  %3100 = vrot.lane.b32.xlu0 %v3097, 4
  %v3101 = vpop.permute.xlu0 %3100
  %v3102 = vsel %vm1078, %v3099, %v3101
  %v3103 = vsel %vm1078, %v3101, %v3099
  %s3104 = scalar_lea.vmem %s4, 264
  %v3105 = vld [vmem:[%s3104] sm:$0xff]
  %3106 = vrot.lane.b32.xlu0 %v3096, 2
  %v3107 = vpop.permute.xlu0 %3106
  %3108 = vrot.lane.b32.xlu0 %v3097, 2
  %v3109 = vpop.permute.xlu0 %3108
  %v3110 = vsel %vm144, %v3107, %v3109
  %v3111 = vsel %vm144, %v3109, %v3107
  %s3112 = scalar_lea.vmem %s4, 272
  %v3113 = vld [vmem:[%s3112] sm:$0xff]
  %v3115 = vsel %vm157, %v3113, 0
  %3117 = vmatprep.subr.mxu0 0.0
  %3118 = vmatpush1.msra.mxu0 0.0
  %3119 = vmatprep.subr.mxu0 0.0
  %3120 = vmatpush1.msra.mxu0 0.0
  %3121 = vmatprep.subr.mxu0 0.0
  %3122 = vmatpush1.msra.mxu0 0.0
  %3123 = vmatprep.subr.mxu0 0.0
  %3124 = vmatpush1.msra.mxu0 0.0
  %3125 = vmatprep.subr.mxu0 0.0
  %3126 = vmatpush1.msra.mxu0 0.0
  %3127 = vmatprep.subr.mxu0 0.0
  %3128 = vmatpush1.msra.mxu0 0.0
  %3129 = vmatprep.subr.mxu0 0.0
  %3130 = vmatpush1.msra.mxu0 0.0
  %3131 = vmatprep.subr.mxu0 0.0
  %3132 = vmatpush1.msra.mxu0 0.0
  %3133 = vmatprep.subr.mxu0 0.0
  %3134 = vmatpush1.msra.mxu0 0.0
  %3135 = vmatprep.subr.mxu0 0.0
  %3136 = vmatpush1.msra.mxu0 0.0
  %3137 = vmatprep.subr.mxu0 0.0
  %3138 = vmatpush1.msra.mxu0 0.0
  %3139 = vmatprep.subr.mxu0 0.0
  %3140 = vmatpush1.msra.mxu0 0.0
  %3141 = vmatprep.subr.mxu0 0.0
  %3142 = vmatpush1.msra.mxu0 0.0
  %3143 = vmatprep.subr.mxu0 0.0
  %3144 = vmatpush1.msra.mxu0 0.0
  %3145 = vmatprep.subr.mxu0 0.0
  %3146 = vmatpush1.msra.mxu0 0.0
  %3147 = vmatprep.subr.mxu0 %v3110
  %3148 = vmatpush1.msra.mxu0 %v3111
  %3149 = vmatprep.subr.mxu0 0.0
  %3150 = vmatpush2.msra.mxu0 0.0
  %3151 = vmatprep.subr.mxu0 0.0
  %3152 = vmatpush2.msra.mxu0 0.0
  %3153 = vmatprep.subr.mxu0 0.0
  %3154 = vmatpush2.msra.mxu0 0.0
  %3155 = vmatprep.subr.mxu0 0.0
  %3156 = vmatpush2.msra.mxu0 0.0
  %3157 = vmatprep.subr.mxu0 0.0
  %3158 = vmatpush2.msra.mxu0 0.0
  %3159 = vmatprep.subr.mxu0 0.0
  %3160 = vmatpush2.msra.mxu0 0.0
  %3161 = vmatprep.subr.mxu0 0.0
  %3162 = vmatpush2.msra.mxu0 0.0
  %3163 = vmatprep.subr.mxu0 0.0
  %3164 = vmatpush2.msra.mxu0 0.0
  %3165 = vmatprep.subr.mxu0 0.0
  %3166 = vmatpush2.msra.mxu0 0.0
  %3167 = vmatprep.subr.mxu0 0.0
  %3168 = vmatpush2.msra.mxu0 0.0
  %3169 = vmatprep.subr.mxu0 0.0
  %3170 = vmatpush2.msra.mxu0 0.0
  %3171 = vmatprep.subr.mxu0 0.0
  %3172 = vmatpush2.msra.mxu0 0.0
  %3173 = vmatprep.subr.mxu0 0.0
  %3174 = vmatpush2.msra.mxu0 0.0
  %3175 = vmatprep.subr.mxu0 0.0
  %3176 = vmatpush2.msra.mxu0 0.0
  %3177 = vmatprep.subr.mxu0 0.0
  %3178 = vmatpush2.msra.mxu0 0.0
  %3179 = vmatprep.subr.mxu0 0.0
  %3180 = vmatpush2.msra.mxu0 0.0
  %3181 = vmatprep.mubr.f32.mxu0 0.0
  %3182 = vmatmul.mubr.f32.gmra.mxu0 %v3115
  %v3183 = vpop.f32.mrf.mxu0
  %v3184 = vadd.f32 0.0, %v3183
  %v3185 = vpop.f32.mrf.mxu0
  %v3186 = vadd.f32 0.0, %v3185
  %3187 = vdwg.mxu0
  %v3189 = vsel %vm157, %v3105, 0
  %3191 = vmatprep.subr.mxu0 0.0
  %3192 = vmatpush1.msra.mxu0 0.0
  %3193 = vmatprep.subr.mxu0 0.0
  %3194 = vmatpush1.msra.mxu0 0.0
  %3195 = vmatprep.subr.mxu0 0.0
  %3196 = vmatpush1.msra.mxu0 0.0
  %3197 = vmatprep.subr.mxu0 0.0
  %3198 = vmatpush1.msra.mxu0 0.0
  %3199 = vmatprep.subr.mxu0 0.0
  %3200 = vmatpush1.msra.mxu0 0.0
  %3201 = vmatprep.subr.mxu0 0.0
  %3202 = vmatpush1.msra.mxu0 0.0
  %3203 = vmatprep.subr.mxu0 0.0
  %3204 = vmatpush1.msra.mxu0 0.0
  %3205 = vmatprep.subr.mxu0 0.0
  %3206 = vmatpush1.msra.mxu0 0.0
  %3207 = vmatprep.subr.mxu0 0.0
  %3208 = vmatpush1.msra.mxu0 0.0
  %3209 = vmatprep.subr.mxu0 0.0
  %3210 = vmatpush1.msra.mxu0 0.0
  %3211 = vmatprep.subr.mxu0 0.0
  %3212 = vmatpush1.msra.mxu0 0.0
  %3213 = vmatprep.subr.mxu0 0.0
  %3214 = vmatpush1.msra.mxu0 0.0
  %3215 = vmatprep.subr.mxu0 0.0
  %3216 = vmatpush1.msra.mxu0 0.0
  %3217 = vmatprep.subr.mxu0 0.0
  %3218 = vmatpush1.msra.mxu0 0.0
  %3219 = vmatprep.subr.mxu0 0.0
  %3220 = vmatpush1.msra.mxu0 0.0
  %3221 = vmatprep.subr.mxu0 %v3102
  %3222 = vmatpush1.msra.mxu0 %v3103
  %3223 = vmatprep.subr.mxu0 0.0
  %3224 = vmatpush2.msra.mxu0 0.0
  %3225 = vmatprep.subr.mxu0 0.0
  %3226 = vmatpush2.msra.mxu0 0.0
  %3227 = vmatprep.subr.mxu0 0.0
  %3228 = vmatpush2.msra.mxu0 0.0
  %3229 = vmatprep.subr.mxu0 0.0
  %3230 = vmatpush2.msra.mxu0 0.0
  %3231 = vmatprep.subr.mxu0 0.0
  %3232 = vmatpush2.msra.mxu0 0.0
  %3233 = vmatprep.subr.mxu0 0.0
  %3234 = vmatpush2.msra.mxu0 0.0
  %3235 = vmatprep.subr.mxu0 0.0
  %3236 = vmatpush2.msra.mxu0 0.0
  %3237 = vmatprep.subr.mxu0 0.0
  %3238 = vmatpush2.msra.mxu0 0.0
  %3239 = vmatprep.subr.mxu0 0.0
  %3240 = vmatpush2.msra.mxu0 0.0
  %3241 = vmatprep.subr.mxu0 0.0
  %3242 = vmatpush2.msra.mxu0 0.0
  %3243 = vmatprep.subr.mxu0 0.0
  %3244 = vmatpush2.msra.mxu0 0.0
  %3245 = vmatprep.subr.mxu0 0.0
  %3246 = vmatpush2.msra.mxu0 0.0
  %3247 = vmatprep.subr.mxu0 0.0
  %3248 = vmatpush2.msra.mxu0 0.0
  %3249 = vmatprep.subr.mxu0 0.0
  %3250 = vmatpush2.msra.mxu0 0.0
  %3251 = vmatprep.subr.mxu0 0.0
  %3252 = vmatpush2.msra.mxu0 0.0
  %3253 = vmatprep.subr.mxu0 0.0
  %3254 = vmatpush2.msra.mxu0 0.0
  %3255 = vmatprep.mubr.f32.mxu0 0.0
  %3256 = vmatmul.mubr.f32.gmra.mxu0 %v3189
  %v3257 = vpop.f32.mrf.mxu0
  %v3258 = vadd.f32 %v3184, %v3257
  %v3259 = vpop.f32.mrf.mxu0
  %v3260 = vadd.f32 %v3186, %v3259
  %3261 = vdwg.mxu0
  %s3262 = scalar_lea.vmem %s4, 280
  %v3263 = vld [vmem:[%s3262] sm:$0xff]
  %v3265 = vsel %vm157, %v3263, 0
  %3267 = vmatprep.subr.mxu0 0.0
  %3268 = vmatpush1.msra.mxu0 0.0
  %3269 = vmatprep.subr.mxu0 0.0
  %3270 = vmatpush1.msra.mxu0 0.0
  %3271 = vmatprep.subr.mxu0 0.0
  %3272 = vmatpush1.msra.mxu0 0.0
  %3273 = vmatprep.subr.mxu0 0.0
  %3274 = vmatpush1.msra.mxu0 0.0
  %3275 = vmatprep.subr.mxu0 0.0
  %3276 = vmatpush1.msra.mxu0 0.0
  %3277 = vmatprep.subr.mxu0 0.0
  %3278 = vmatpush1.msra.mxu0 0.0
  %3279 = vmatprep.subr.mxu0 0.0
  %3280 = vmatpush1.msra.mxu0 0.0
  %3281 = vmatprep.subr.mxu0 0.0
  %3282 = vmatpush1.msra.mxu0 0.0
  %3283 = vmatprep.subr.mxu0 0.0
  %3284 = vmatpush1.msra.mxu0 0.0
  %3285 = vmatprep.subr.mxu0 0.0
  %3286 = vmatpush1.msra.mxu0 0.0
  %3287 = vmatprep.subr.mxu0 0.0
  %3288 = vmatpush1.msra.mxu0 0.0
  %3289 = vmatprep.subr.mxu0 0.0
  %3290 = vmatpush1.msra.mxu0 0.0
  %3291 = vmatprep.subr.mxu0 0.0
  %3292 = vmatpush1.msra.mxu0 0.0
  %3293 = vmatprep.subr.mxu0 0.0
  %3294 = vmatpush1.msra.mxu0 0.0
  %3295 = vmatprep.subr.mxu0 0.0
  %3296 = vmatpush1.msra.mxu0 0.0
  %3297 = vmatprep.subr.mxu0 %v3097
  %3298 = vmatpush1.msra.mxu0 %v3096
  %3299 = vmatprep.subr.mxu0 0.0
  %3300 = vmatpush2.msra.mxu0 0.0
  %3301 = vmatprep.subr.mxu0 0.0
  %3302 = vmatpush2.msra.mxu0 0.0
  %3303 = vmatprep.subr.mxu0 0.0
  %3304 = vmatpush2.msra.mxu0 0.0
  %3305 = vmatprep.subr.mxu0 0.0
  %3306 = vmatpush2.msra.mxu0 0.0
  %3307 = vmatprep.subr.mxu0 0.0
  %3308 = vmatpush2.msra.mxu0 0.0
  %3309 = vmatprep.subr.mxu0 0.0
  %3310 = vmatpush2.msra.mxu0 0.0
  %3311 = vmatprep.subr.mxu0 0.0
  %3312 = vmatpush2.msra.mxu0 0.0
  %3313 = vmatprep.subr.mxu0 0.0
  %3314 = vmatpush2.msra.mxu0 0.0
  %3315 = vmatprep.subr.mxu0 0.0
  %3316 = vmatpush2.msra.mxu0 0.0
  %3317 = vmatprep.subr.mxu0 0.0
  %3318 = vmatpush2.msra.mxu0 0.0
  %3319 = vmatprep.subr.mxu0 0.0
  %3320 = vmatpush2.msra.mxu0 0.0
  %3321 = vmatprep.subr.mxu0 0.0
  %3322 = vmatpush2.msra.mxu0 0.0
  %3323 = vmatprep.subr.mxu0 0.0
  %3324 = vmatpush2.msra.mxu0 0.0
  %3325 = vmatprep.subr.mxu0 0.0
  %3326 = vmatpush2.msra.mxu0 0.0
  %3327 = vmatprep.subr.mxu0 0.0
  %3328 = vmatpush2.msra.mxu0 0.0
  %3329 = vmatprep.subr.mxu0 0.0
  %3330 = vmatpush2.msra.mxu0 0.0
  %3331 = vmatprep.mubr.f32.mxu0 0.0
  %3332 = vmatmul.mubr.f32.gmra.mxu0 %v3265
  %v3333 = vpop.f32.mrf.mxu0
  %v3334 = vadd.f32 0.0, %v3333
  %v3335 = vpop.f32.mrf.mxu0
  %v3336 = vadd.f32 0.0, %v3335
  %3337 = vdwg.mxu0
  %v3338 = vadd.f32 %v3258, %v3334
  %v3339 = vadd.f32 %v3260, %v3336
  %3340 = vrot.lane.b32.xlu0 %v3096, 126
  %v3341 = vpop.permute.xlu0 %3340
  %3342 = vrot.lane.b32.xlu0 %v3097, 126
  %v3343 = vpop.permute.xlu0 %3342
  %v3344 = vsel %vm473, %v3341, %v3343
  %v3345 = vsel %vm473, %v3343, %v3341
  %s3346 = scalar_lea.vmem %s4, 288
  %v3347 = vld [vmem:[%s3346] sm:$0xff]
  %v3349 = vsel %vm157, %v3347, 0
  %3351 = vmatprep.subr.mxu0 0.0
  %3352 = vmatpush1.msra.mxu0 0.0
  %3353 = vmatprep.subr.mxu0 0.0
  %3354 = vmatpush1.msra.mxu0 0.0
  %3355 = vmatprep.subr.mxu0 0.0
  %3356 = vmatpush1.msra.mxu0 0.0
  %3357 = vmatprep.subr.mxu0 0.0
  %3358 = vmatpush1.msra.mxu0 0.0
  %3359 = vmatprep.subr.mxu0 0.0
  %3360 = vmatpush1.msra.mxu0 0.0
  %3361 = vmatprep.subr.mxu0 0.0
  %3362 = vmatpush1.msra.mxu0 0.0
  %3363 = vmatprep.subr.mxu0 0.0
  %3364 = vmatpush1.msra.mxu0 0.0
  %3365 = vmatprep.subr.mxu0 0.0
  %3366 = vmatpush1.msra.mxu0 0.0
  %3367 = vmatprep.subr.mxu0 0.0
  %3368 = vmatpush1.msra.mxu0 0.0
  %3369 = vmatprep.subr.mxu0 0.0
  %3370 = vmatpush1.msra.mxu0 0.0
  %3371 = vmatprep.subr.mxu0 0.0
  %3372 = vmatpush1.msra.mxu0 0.0
  %3373 = vmatprep.subr.mxu0 0.0
  %3374 = vmatpush1.msra.mxu0 0.0
  %3375 = vmatprep.subr.mxu0 0.0
  %3376 = vmatpush1.msra.mxu0 0.0
  %3377 = vmatprep.subr.mxu0 0.0
  %3378 = vmatpush1.msra.mxu0 0.0
  %3379 = vmatprep.subr.mxu0 0.0
  %3380 = vmatpush1.msra.mxu0 0.0
  %3381 = vmatprep.subr.mxu0 %v3345
  %3382 = vmatpush1.msra.mxu0 %v3344
  %3383 = vmatprep.subr.mxu0 0.0
  %3384 = vmatpush2.msra.mxu0 0.0
  %3385 = vmatprep.subr.mxu0 0.0
  %3386 = vmatpush2.msra.mxu0 0.0
  %3387 = vmatprep.subr.mxu0 0.0
  %3388 = vmatpush2.msra.mxu0 0.0
  %3389 = vmatprep.subr.mxu0 0.0
  %3390 = vmatpush2.msra.mxu0 0.0
  %3391 = vmatprep.subr.mxu0 0.0
  %3392 = vmatpush2.msra.mxu0 0.0
  %3393 = vmatprep.subr.mxu0 0.0
  %3394 = vmatpush2.msra.mxu0 0.0
  %3395 = vmatprep.subr.mxu0 0.0
  %3396 = vmatpush2.msra.mxu0 0.0
  %3397 = vmatprep.subr.mxu0 0.0
  %3398 = vmatpush2.msra.mxu0 0.0
  %3399 = vmatprep.subr.mxu0 0.0
  %3400 = vmatpush2.msra.mxu0 0.0
  %3401 = vmatprep.subr.mxu0 0.0
  %3402 = vmatpush2.msra.mxu0 0.0
  %3403 = vmatprep.subr.mxu0 0.0
  %3404 = vmatpush2.msra.mxu0 0.0
  %3405 = vmatprep.subr.mxu0 0.0
  %3406 = vmatpush2.msra.mxu0 0.0
  %3407 = vmatprep.subr.mxu0 0.0
  %3408 = vmatpush2.msra.mxu0 0.0
  %3409 = vmatprep.subr.mxu0 0.0
  %3410 = vmatpush2.msra.mxu0 0.0
  %3411 = vmatprep.subr.mxu0 0.0
  %3412 = vmatpush2.msra.mxu0 0.0
  %3413 = vmatprep.subr.mxu0 0.0
  %3414 = vmatpush2.msra.mxu0 0.0
  %3415 = vmatprep.mubr.f32.mxu0 0.0
  %3416 = vmatmul.mubr.f32.gmra.mxu0 %v3349
  %v3417 = vpop.f32.mrf.mxu0
  %v3418 = vadd.f32 0.0, %v3417
  %v3419 = vpop.f32.mrf.mxu0
  %v3420 = vadd.f32 0.0, %v3419
  %3421 = vdwg.mxu0
  %v3422 = vadd.f32 %v3338, %v3418
  %v3423 = vadd.f32 %v3339, %v3420
  %3424 = vrot.lane.b32.xlu0 %v3096, 124
  %v3425 = vpop.permute.xlu0 %3424
  %3426 = vrot.lane.b32.xlu0 %v3097, 124
  %v3427 = vpop.permute.xlu0 %3426
  %v3428 = vsel %vm1405, %v3425, %v3427
  %v3429 = vsel %vm1405, %v3427, %v3425
  %s3430 = scalar_lea.vmem %s4, 296
  %v3431 = vld [vmem:[%s3430] sm:$0xff]
  %v3433 = vsel %vm157, %v3431, 0
  %3435 = vmatprep.subr.mxu0 0.0
  %3436 = vmatpush1.msra.mxu0 0.0
  %3437 = vmatprep.subr.mxu0 0.0
  %3438 = vmatpush1.msra.mxu0 0.0
  %3439 = vmatprep.subr.mxu0 0.0
  %3440 = vmatpush1.msra.mxu0 0.0
  %3441 = vmatprep.subr.mxu0 0.0
  %3442 = vmatpush1.msra.mxu0 0.0
  %3443 = vmatprep.subr.mxu0 0.0
  %3444 = vmatpush1.msra.mxu0 0.0
  %3445 = vmatprep.subr.mxu0 0.0
  %3446 = vmatpush1.msra.mxu0 0.0
  %3447 = vmatprep.subr.mxu0 0.0
  %3448 = vmatpush1.msra.mxu0 0.0
  %3449 = vmatprep.subr.mxu0 0.0
  %3450 = vmatpush1.msra.mxu0 0.0
  %3451 = vmatprep.subr.mxu0 0.0
  %3452 = vmatpush1.msra.mxu0 0.0
  %3453 = vmatprep.subr.mxu0 0.0
  %3454 = vmatpush1.msra.mxu0 0.0
  %3455 = vmatprep.subr.mxu0 0.0
  %3456 = vmatpush1.msra.mxu0 0.0
  %3457 = vmatprep.subr.mxu0 0.0
  %3458 = vmatpush1.msra.mxu0 0.0
  %3459 = vmatprep.subr.mxu0 0.0
  %3460 = vmatpush1.msra.mxu0 0.0
  %3461 = vmatprep.subr.mxu0 0.0
  %3462 = vmatpush1.msra.mxu0 0.0
  %3463 = vmatprep.subr.mxu0 0.0
  %3464 = vmatpush1.msra.mxu0 0.0
  %3465 = vmatprep.subr.mxu0 %v3429
  %3466 = vmatpush1.msra.mxu0 %v3428
  %3467 = vmatprep.subr.mxu0 0.0
  %3468 = vmatpush2.msra.mxu0 0.0
  %3469 = vmatprep.subr.mxu0 0.0
  %3470 = vmatpush2.msra.mxu0 0.0
  %3471 = vmatprep.subr.mxu0 0.0
  %3472 = vmatpush2.msra.mxu0 0.0
  %3473 = vmatprep.subr.mxu0 0.0
  %3474 = vmatpush2.msra.mxu0 0.0
  %3475 = vmatprep.subr.mxu0 0.0
  %3476 = vmatpush2.msra.mxu0 0.0
  %3477 = vmatprep.subr.mxu0 0.0
  %3478 = vmatpush2.msra.mxu0 0.0
  %3479 = vmatprep.subr.mxu0 0.0
  %3480 = vmatpush2.msra.mxu0 0.0
  %3481 = vmatprep.subr.mxu0 0.0
  %3482 = vmatpush2.msra.mxu0 0.0
  %3483 = vmatprep.subr.mxu0 0.0
  %3484 = vmatpush2.msra.mxu0 0.0
  %3485 = vmatprep.subr.mxu0 0.0
  %3486 = vmatpush2.msra.mxu0 0.0
  %3487 = vmatprep.subr.mxu0 0.0
  %3488 = vmatpush2.msra.mxu0 0.0
  %3489 = vmatprep.subr.mxu0 0.0
  %3490 = vmatpush2.msra.mxu0 0.0
  %3491 = vmatprep.subr.mxu0 0.0
  %3492 = vmatpush2.msra.mxu0 0.0
  %3493 = vmatprep.subr.mxu0 0.0
  %3494 = vmatpush2.msra.mxu0 0.0
  %3495 = vmatprep.subr.mxu0 0.0
  %3496 = vmatpush2.msra.mxu0 0.0
  %3497 = vmatprep.subr.mxu0 0.0
  %3498 = vmatpush2.msra.mxu0 0.0
  %3499 = vmatprep.mubr.f32.mxu0 0.0
  %3500 = vmatmul.mubr.f32.gmra.mxu0 %v3433
  %v3501 = vpop.f32.mrf.mxu0
  %v3502 = vadd.f32 0.0, %v3501
  %v3503 = vpop.f32.mrf.mxu0
  %v3504 = vadd.f32 0.0, %v3503
  %3505 = vdwg.mxu0
  %v3506 = vadd.f32 %v3422, %v3502
  %v3507 = vadd.f32 %v3423, %v3504
  %s3508 = scalar_lea.vmem %s5, 72
  %v3509 = vld [vmem:[%s3508] sm:$0xff]
  %3511 = vset.pattern.permute.xlu0 0
  %3512 = vperm.xlu0 %3511, %v3509
  %v3513 = vpop.permute.xlu0 %3512
  %v3515 = vadd.f32 %v3506, %v3513
  %v3516 = vadd.f32 %v3507, %v3513
  %v3517 = vmax.f32 %v3515, 0.0
  %v3518 = vmax.f32 %v3516, 0.0
  %v3519 = vmul.f32 %v3517, %v2164
  %v3520 = vmul.f32 %v3518, %v2164
  %3521 = vrot.lane.b32.xlu0 %v3519, 4
  %v3522 = vpop.permute.xlu0 %3521
  %3523 = vrot.lane.b32.xlu0 %v3520, 4
  %v3524 = vpop.permute.xlu0 %3523
  %v3525 = vsel %vm1078, %v3522, %v3524
  %v3526 = vsel %vm1078, %v3524, %v3522
  %s3527 = scalar_lea.vmem %s4, 304
  %v3528 = vld [vmem:[%s3527] sm:$0xff]
  %3529 = vrot.lane.b32.xlu0 %v3519, 2
  %v3530 = vpop.permute.xlu0 %3529
  %3531 = vrot.lane.b32.xlu0 %v3520, 2
  %v3532 = vpop.permute.xlu0 %3531
  %v3533 = vsel %vm144, %v3530, %v3532
  %v3534 = vsel %vm144, %v3532, %v3530
  %s3535 = scalar_lea.vmem %s4, 312
  %v3536 = vld [vmem:[%s3535] sm:$0xff]
  %v3538 = vsel %vm157, %v3536, 0
  %3540 = vmatprep.subr.mxu0 0.0
  %3541 = vmatpush1.msra.mxu0 0.0
  %3542 = vmatprep.subr.mxu0 0.0
  %3543 = vmatpush1.msra.mxu0 0.0
  %3544 = vmatprep.subr.mxu0 0.0
  %3545 = vmatpush1.msra.mxu0 0.0
  %3546 = vmatprep.subr.mxu0 0.0
  %3547 = vmatpush1.msra.mxu0 0.0
  %3548 = vmatprep.subr.mxu0 0.0
  %3549 = vmatpush1.msra.mxu0 0.0
  %3550 = vmatprep.subr.mxu0 0.0
  %3551 = vmatpush1.msra.mxu0 0.0
  %3552 = vmatprep.subr.mxu0 0.0
  %3553 = vmatpush1.msra.mxu0 0.0
  %3554 = vmatprep.subr.mxu0 0.0
  %3555 = vmatpush1.msra.mxu0 0.0
  %3556 = vmatprep.subr.mxu0 0.0
  %3557 = vmatpush1.msra.mxu0 0.0
  %3558 = vmatprep.subr.mxu0 0.0
  %3559 = vmatpush1.msra.mxu0 0.0
  %3560 = vmatprep.subr.mxu0 0.0
  %3561 = vmatpush1.msra.mxu0 0.0
  %3562 = vmatprep.subr.mxu0 0.0
  %3563 = vmatpush1.msra.mxu0 0.0
  %3564 = vmatprep.subr.mxu0 0.0
  %3565 = vmatpush1.msra.mxu0 0.0
  %3566 = vmatprep.subr.mxu0 0.0
  %3567 = vmatpush1.msra.mxu0 0.0
  %3568 = vmatprep.subr.mxu0 0.0
  %3569 = vmatpush1.msra.mxu0 0.0
  %3570 = vmatprep.subr.mxu0 %v3533
  %3571 = vmatpush1.msra.mxu0 %v3534
  %3572 = vmatprep.subr.mxu0 0.0
  %3573 = vmatpush2.msra.mxu0 0.0
  %3574 = vmatprep.subr.mxu0 0.0
  %3575 = vmatpush2.msra.mxu0 0.0
  %3576 = vmatprep.subr.mxu0 0.0
  %3577 = vmatpush2.msra.mxu0 0.0
  %3578 = vmatprep.subr.mxu0 0.0
  %3579 = vmatpush2.msra.mxu0 0.0
  %3580 = vmatprep.subr.mxu0 0.0
  %3581 = vmatpush2.msra.mxu0 0.0
  %3582 = vmatprep.subr.mxu0 0.0
  %3583 = vmatpush2.msra.mxu0 0.0
  %3584 = vmatprep.subr.mxu0 0.0
  %3585 = vmatpush2.msra.mxu0 0.0
  %3586 = vmatprep.subr.mxu0 0.0
  %3587 = vmatpush2.msra.mxu0 0.0
  %3588 = vmatprep.subr.mxu0 0.0
  %3589 = vmatpush2.msra.mxu0 0.0
  %3590 = vmatprep.subr.mxu0 0.0
  %3591 = vmatpush2.msra.mxu0 0.0
  %3592 = vmatprep.subr.mxu0 0.0
  %3593 = vmatpush2.msra.mxu0 0.0
  %3594 = vmatprep.subr.mxu0 0.0
  %3595 = vmatpush2.msra.mxu0 0.0
  %3596 = vmatprep.subr.mxu0 0.0
  %3597 = vmatpush2.msra.mxu0 0.0
  %3598 = vmatprep.subr.mxu0 0.0
  %3599 = vmatpush2.msra.mxu0 0.0
  %3600 = vmatprep.subr.mxu0 0.0
  %3601 = vmatpush2.msra.mxu0 0.0
  %3602 = vmatprep.subr.mxu0 0.0
  %3603 = vmatpush2.msra.mxu0 0.0
  %3604 = vmatprep.mubr.f32.mxu0 0.0
  %3605 = vmatmul.mubr.f32.gmra.mxu0 %v3538
  %v3606 = vpop.f32.mrf.mxu0
  %v3607 = vadd.f32 0.0, %v3606
  %v3608 = vpop.f32.mrf.mxu0
  %v3609 = vadd.f32 0.0, %v3608
  %3610 = vdwg.mxu0
  %v3612 = vsel %vm157, %v3528, 0
  %3614 = vmatprep.subr.mxu0 0.0
  %3615 = vmatpush1.msra.mxu0 0.0
  %3616 = vmatprep.subr.mxu0 0.0
  %3617 = vmatpush1.msra.mxu0 0.0
  %3618 = vmatprep.subr.mxu0 0.0
  %3619 = vmatpush1.msra.mxu0 0.0
  %3620 = vmatprep.subr.mxu0 0.0
  %3621 = vmatpush1.msra.mxu0 0.0
  %3622 = vmatprep.subr.mxu0 0.0
  %3623 = vmatpush1.msra.mxu0 0.0
  %3624 = vmatprep.subr.mxu0 0.0
  %3625 = vmatpush1.msra.mxu0 0.0
  %3626 = vmatprep.subr.mxu0 0.0
  %3627 = vmatpush1.msra.mxu0 0.0
  %3628 = vmatprep.subr.mxu0 0.0
  %3629 = vmatpush1.msra.mxu0 0.0
  %3630 = vmatprep.subr.mxu0 0.0
  %3631 = vmatpush1.msra.mxu0 0.0
  %3632 = vmatprep.subr.mxu0 0.0
  %3633 = vmatpush1.msra.mxu0 0.0
  %3634 = vmatprep.subr.mxu0 0.0
  %3635 = vmatpush1.msra.mxu0 0.0
  %3636 = vmatprep.subr.mxu0 0.0
  %3637 = vmatpush1.msra.mxu0 0.0
  %3638 = vmatprep.subr.mxu0 0.0
  %3639 = vmatpush1.msra.mxu0 0.0
  %3640 = vmatprep.subr.mxu0 0.0
  %3641 = vmatpush1.msra.mxu0 0.0
  %3642 = vmatprep.subr.mxu0 0.0
  %3643 = vmatpush1.msra.mxu0 0.0
  %3644 = vmatprep.subr.mxu0 %v3525
  %3645 = vmatpush1.msra.mxu0 %v3526
  %3646 = vmatprep.subr.mxu0 0.0
  %3647 = vmatpush2.msra.mxu0 0.0
  %3648 = vmatprep.subr.mxu0 0.0
  %3649 = vmatpush2.msra.mxu0 0.0
  %3650 = vmatprep.subr.mxu0 0.0
  %3651 = vmatpush2.msra.mxu0 0.0
  %3652 = vmatprep.subr.mxu0 0.0
  %3653 = vmatpush2.msra.mxu0 0.0
  %3654 = vmatprep.subr.mxu0 0.0
  %3655 = vmatpush2.msra.mxu0 0.0
  %3656 = vmatprep.subr.mxu0 0.0
  %3657 = vmatpush2.msra.mxu0 0.0
  %3658 = vmatprep.subr.mxu0 0.0
  %3659 = vmatpush2.msra.mxu0 0.0
  %3660 = vmatprep.subr.mxu0 0.0
  %3661 = vmatpush2.msra.mxu0 0.0
  %3662 = vmatprep.subr.mxu0 0.0
  %3663 = vmatpush2.msra.mxu0 0.0
  %3664 = vmatprep.subr.mxu0 0.0
  %3665 = vmatpush2.msra.mxu0 0.0
  %3666 = vmatprep.subr.mxu0 0.0
  %3667 = vmatpush2.msra.mxu0 0.0
  %3668 = vmatprep.subr.mxu0 0.0
  %3669 = vmatpush2.msra.mxu0 0.0
  %3670 = vmatprep.subr.mxu0 0.0
  %3671 = vmatpush2.msra.mxu0 0.0
  %3672 = vmatprep.subr.mxu0 0.0
  %3673 = vmatpush2.msra.mxu0 0.0
  %3674 = vmatprep.subr.mxu0 0.0
  %3675 = vmatpush2.msra.mxu0 0.0
  %3676 = vmatprep.subr.mxu0 0.0
  %3677 = vmatpush2.msra.mxu0 0.0
  %3678 = vmatprep.mubr.f32.mxu0 0.0
  %3679 = vmatmul.mubr.f32.gmra.mxu0 %v3612
  %v3680 = vpop.f32.mrf.mxu0
  %v3681 = vadd.f32 %v3607, %v3680
  %v3682 = vpop.f32.mrf.mxu0
  %v3683 = vadd.f32 %v3609, %v3682
  %3684 = vdwg.mxu0
  %s3685 = scalar_lea.vmem %s4, 320
  %v3686 = vld [vmem:[%s3685] sm:$0xff]
  %v3688 = vsel %vm157, %v3686, 0
  %3690 = vmatprep.subr.mxu0 0.0
  %3691 = vmatpush1.msra.mxu0 0.0
  %3692 = vmatprep.subr.mxu0 0.0
  %3693 = vmatpush1.msra.mxu0 0.0
  %3694 = vmatprep.subr.mxu0 0.0
  %3695 = vmatpush1.msra.mxu0 0.0
  %3696 = vmatprep.subr.mxu0 0.0
  %3697 = vmatpush1.msra.mxu0 0.0
  %3698 = vmatprep.subr.mxu0 0.0
  %3699 = vmatpush1.msra.mxu0 0.0
  %3700 = vmatprep.subr.mxu0 0.0
  %3701 = vmatpush1.msra.mxu0 0.0
  %3702 = vmatprep.subr.mxu0 0.0
  %3703 = vmatpush1.msra.mxu0 0.0
  %3704 = vmatprep.subr.mxu0 0.0
  %3705 = vmatpush1.msra.mxu0 0.0
  %3706 = vmatprep.subr.mxu0 0.0
  %3707 = vmatpush1.msra.mxu0 0.0
  %3708 = vmatprep.subr.mxu0 0.0
  %3709 = vmatpush1.msra.mxu0 0.0
  %3710 = vmatprep.subr.mxu0 0.0
  %3711 = vmatpush1.msra.mxu0 0.0
  %3712 = vmatprep.subr.mxu0 0.0
  %3713 = vmatpush1.msra.mxu0 0.0
  %3714 = vmatprep.subr.mxu0 0.0
  %3715 = vmatpush1.msra.mxu0 0.0
  %3716 = vmatprep.subr.mxu0 0.0
  %3717 = vmatpush1.msra.mxu0 0.0
  %3718 = vmatprep.subr.mxu0 0.0
  %3719 = vmatpush1.msra.mxu0 0.0
  %3720 = vmatprep.subr.mxu0 %v3520
  %3721 = vmatpush1.msra.mxu0 %v3519
  %3722 = vmatprep.subr.mxu0 0.0
  %3723 = vmatpush2.msra.mxu0 0.0
  %3724 = vmatprep.subr.mxu0 0.0
  %3725 = vmatpush2.msra.mxu0 0.0
  %3726 = vmatprep.subr.mxu0 0.0
  %3727 = vmatpush2.msra.mxu0 0.0
  %3728 = vmatprep.subr.mxu0 0.0
  %3729 = vmatpush2.msra.mxu0 0.0
  %3730 = vmatprep.subr.mxu0 0.0
  %3731 = vmatpush2.msra.mxu0 0.0
  %3732 = vmatprep.subr.mxu0 0.0
  %3733 = vmatpush2.msra.mxu0 0.0
  %3734 = vmatprep.subr.mxu0 0.0
  %3735 = vmatpush2.msra.mxu0 0.0
  %3736 = vmatprep.subr.mxu0 0.0
  %3737 = vmatpush2.msra.mxu0 0.0
  %3738 = vmatprep.subr.mxu0 0.0
  %3739 = vmatpush2.msra.mxu0 0.0
  %3740 = vmatprep.subr.mxu0 0.0
  %3741 = vmatpush2.msra.mxu0 0.0
  %3742 = vmatprep.subr.mxu0 0.0
  %3743 = vmatpush2.msra.mxu0 0.0
  %3744 = vmatprep.subr.mxu0 0.0
  %3745 = vmatpush2.msra.mxu0 0.0
  %3746 = vmatprep.subr.mxu0 0.0
  %3747 = vmatpush2.msra.mxu0 0.0
  %3748 = vmatprep.subr.mxu0 0.0
  %3749 = vmatpush2.msra.mxu0 0.0
  %3750 = vmatprep.subr.mxu0 0.0
  %3751 = vmatpush2.msra.mxu0 0.0
  %3752 = vmatprep.subr.mxu0 0.0
  %3753 = vmatpush2.msra.mxu0 0.0
  %3754 = vmatprep.mubr.f32.mxu0 0.0
  %3755 = vmatmul.mubr.f32.gmra.mxu0 %v3688
  %v3756 = vpop.f32.mrf.mxu0
  %v3757 = vadd.f32 0.0, %v3756
  %v3758 = vpop.f32.mrf.mxu0
  %v3759 = vadd.f32 0.0, %v3758
  %3760 = vdwg.mxu0
  %v3761 = vadd.f32 %v3681, %v3757
  %v3762 = vadd.f32 %v3683, %v3759
  %3763 = vrot.lane.b32.xlu0 %v3519, 126
  %v3764 = vpop.permute.xlu0 %3763
  %3765 = vrot.lane.b32.xlu0 %v3520, 126
  %v3766 = vpop.permute.xlu0 %3765
  %v3767 = vsel %vm473, %v3764, %v3766
  %v3768 = vsel %vm473, %v3766, %v3764
  %s3769 = scalar_lea.vmem %s4, 328
  %v3770 = vld [vmem:[%s3769] sm:$0xff]
  %v3772 = vsel %vm157, %v3770, 0
  %3774 = vmatprep.subr.mxu0 0.0
  %3775 = vmatpush1.msra.mxu0 0.0
  %3776 = vmatprep.subr.mxu0 0.0
  %3777 = vmatpush1.msra.mxu0 0.0
  %3778 = vmatprep.subr.mxu0 0.0
  %3779 = vmatpush1.msra.mxu0 0.0
  %3780 = vmatprep.subr.mxu0 0.0
  %3781 = vmatpush1.msra.mxu0 0.0
  %3782 = vmatprep.subr.mxu0 0.0
  %3783 = vmatpush1.msra.mxu0 0.0
  %3784 = vmatprep.subr.mxu0 0.0
  %3785 = vmatpush1.msra.mxu0 0.0
  %3786 = vmatprep.subr.mxu0 0.0
  %3787 = vmatpush1.msra.mxu0 0.0
  %3788 = vmatprep.subr.mxu0 0.0
  %3789 = vmatpush1.msra.mxu0 0.0
  %3790 = vmatprep.subr.mxu0 0.0
  %3791 = vmatpush1.msra.mxu0 0.0
  %3792 = vmatprep.subr.mxu0 0.0
  %3793 = vmatpush1.msra.mxu0 0.0
  %3794 = vmatprep.subr.mxu0 0.0
  %3795 = vmatpush1.msra.mxu0 0.0
  %3796 = vmatprep.subr.mxu0 0.0
  %3797 = vmatpush1.msra.mxu0 0.0
  %3798 = vmatprep.subr.mxu0 0.0
  %3799 = vmatpush1.msra.mxu0 0.0
  %3800 = vmatprep.subr.mxu0 0.0
  %3801 = vmatpush1.msra.mxu0 0.0
  %3802 = vmatprep.subr.mxu0 0.0
  %3803 = vmatpush1.msra.mxu0 0.0
  %3804 = vmatprep.subr.mxu0 %v3768
  %3805 = vmatpush1.msra.mxu0 %v3767
  %3806 = vmatprep.subr.mxu0 0.0
  %3807 = vmatpush2.msra.mxu0 0.0
  %3808 = vmatprep.subr.mxu0 0.0
  %3809 = vmatpush2.msra.mxu0 0.0
  %3810 = vmatprep.subr.mxu0 0.0
  %3811 = vmatpush2.msra.mxu0 0.0
  %3812 = vmatprep.subr.mxu0 0.0
  %3813 = vmatpush2.msra.mxu0 0.0
  %3814 = vmatprep.subr.mxu0 0.0
  %3815 = vmatpush2.msra.mxu0 0.0
  %3816 = vmatprep.subr.mxu0 0.0
  %3817 = vmatpush2.msra.mxu0 0.0
  %3818 = vmatprep.subr.mxu0 0.0
  %3819 = vmatpush2.msra.mxu0 0.0
  %3820 = vmatprep.subr.mxu0 0.0
  %3821 = vmatpush2.msra.mxu0 0.0
  %3822 = vmatprep.subr.mxu0 0.0
  %3823 = vmatpush2.msra.mxu0 0.0
  %3824 = vmatprep.subr.mxu0 0.0
  %3825 = vmatpush2.msra.mxu0 0.0
  %3826 = vmatprep.subr.mxu0 0.0
  %3827 = vmatpush2.msra.mxu0 0.0
  %3828 = vmatprep.subr.mxu0 0.0
  %3829 = vmatpush2.msra.mxu0 0.0
  %3830 = vmatprep.subr.mxu0 0.0
  %3831 = vmatpush2.msra.mxu0 0.0
  %3832 = vmatprep.subr.mxu0 0.0
  %3833 = vmatpush2.msra.mxu0 0.0
  %3834 = vmatprep.subr.mxu0 0.0
  %3835 = vmatpush2.msra.mxu0 0.0
  %3836 = vmatprep.subr.mxu0 0.0
  %3837 = vmatpush2.msra.mxu0 0.0
  %3838 = vmatprep.mubr.f32.mxu0 0.0
  %3839 = vmatmul.mubr.f32.gmra.mxu0 %v3772
  %v3840 = vpop.f32.mrf.mxu0
  %v3841 = vadd.f32 0.0, %v3840
  %v3842 = vpop.f32.mrf.mxu0
  %v3843 = vadd.f32 0.0, %v3842
  %3844 = vdwg.mxu0
  %v3845 = vadd.f32 %v3761, %v3841
  %v3846 = vadd.f32 %v3762, %v3843
  %3847 = vrot.lane.b32.xlu0 %v3519, 124
  %v3848 = vpop.permute.xlu0 %3847
  %3849 = vrot.lane.b32.xlu0 %v3520, 124
  %v3850 = vpop.permute.xlu0 %3849
  %v3851 = vsel %vm1405, %v3848, %v3850
  %v3852 = vsel %vm1405, %v3850, %v3848
  %s3853 = scalar_lea.vmem %s4, 336
  %v3854 = vld [vmem:[%s3853] sm:$0xff]
  %v3856 = vsel %vm157, %v3854, 0
  %3858 = vmatprep.subr.mxu0 0.0
  %3859 = vmatpush1.msra.mxu0 0.0
  %3860 = vmatprep.subr.mxu0 0.0
  %3861 = vmatpush1.msra.mxu0 0.0
  %3862 = vmatprep.subr.mxu0 0.0
  %3863 = vmatpush1.msra.mxu0 0.0
  %3864 = vmatprep.subr.mxu0 0.0
  %3865 = vmatpush1.msra.mxu0 0.0
  %3866 = vmatprep.subr.mxu0 0.0
  %3867 = vmatpush1.msra.mxu0 0.0
  %3868 = vmatprep.subr.mxu0 0.0
  %3869 = vmatpush1.msra.mxu0 0.0
  %3870 = vmatprep.subr.mxu0 0.0
  %3871 = vmatpush1.msra.mxu0 0.0
  %3872 = vmatprep.subr.mxu0 0.0
  %3873 = vmatpush1.msra.mxu0 0.0
  %3874 = vmatprep.subr.mxu0 0.0
  %3875 = vmatpush1.msra.mxu0 0.0
  %3876 = vmatprep.subr.mxu0 0.0
  %3877 = vmatpush1.msra.mxu0 0.0
  %3878 = vmatprep.subr.mxu0 0.0
  %3879 = vmatpush1.msra.mxu0 0.0
  %3880 = vmatprep.subr.mxu0 0.0
  %3881 = vmatpush1.msra.mxu0 0.0
  %3882 = vmatprep.subr.mxu0 0.0
  %3883 = vmatpush1.msra.mxu0 0.0
  %3884 = vmatprep.subr.mxu0 0.0
  %3885 = vmatpush1.msra.mxu0 0.0
  %3886 = vmatprep.subr.mxu0 0.0
  %3887 = vmatpush1.msra.mxu0 0.0
  %3888 = vmatprep.subr.mxu0 %v3852
  %3889 = vmatpush1.msra.mxu0 %v3851
  %3890 = vmatprep.subr.mxu0 0.0
  %3891 = vmatpush2.msra.mxu0 0.0
  %3892 = vmatprep.subr.mxu0 0.0
  %3893 = vmatpush2.msra.mxu0 0.0
  %3894 = vmatprep.subr.mxu0 0.0
  %3895 = vmatpush2.msra.mxu0 0.0
  %3896 = vmatprep.subr.mxu0 0.0
  %3897 = vmatpush2.msra.mxu0 0.0
  %3898 = vmatprep.subr.mxu0 0.0
  %3899 = vmatpush2.msra.mxu0 0.0
  %3900 = vmatprep.subr.mxu0 0.0
  %3901 = vmatpush2.msra.mxu0 0.0
  %3902 = vmatprep.subr.mxu0 0.0
  %3903 = vmatpush2.msra.mxu0 0.0
  %3904 = vmatprep.subr.mxu0 0.0
  %3905 = vmatpush2.msra.mxu0 0.0
  %3906 = vmatprep.subr.mxu0 0.0
  %3907 = vmatpush2.msra.mxu0 0.0
  %3908 = vmatprep.subr.mxu0 0.0
  %3909 = vmatpush2.msra.mxu0 0.0
  %3910 = vmatprep.subr.mxu0 0.0
  %3911 = vmatpush2.msra.mxu0 0.0
  %3912 = vmatprep.subr.mxu0 0.0
  %3913 = vmatpush2.msra.mxu0 0.0
  %3914 = vmatprep.subr.mxu0 0.0
  %3915 = vmatpush2.msra.mxu0 0.0
  %3916 = vmatprep.subr.mxu0 0.0
  %3917 = vmatpush2.msra.mxu0 0.0
  %3918 = vmatprep.subr.mxu0 0.0
  %3919 = vmatpush2.msra.mxu0 0.0
  %3920 = vmatprep.subr.mxu0 0.0
  %3921 = vmatpush2.msra.mxu0 0.0
  %3922 = vmatprep.mubr.f32.mxu0 0.0
  %3923 = vmatmul.mubr.f32.gmra.mxu0 %v3856
  %v3924 = vpop.f32.mrf.mxu0
  %v3925 = vadd.f32 0.0, %v3924
  %v3926 = vpop.f32.mrf.mxu0
  %v3927 = vadd.f32 0.0, %v3926
  %3928 = vdwg.mxu0
  %v3929 = vadd.f32 %v3845, %v3925
  %v3930 = vadd.f32 %v3846, %v3927
  %s3931 = scalar_lea.vmem %s5, 80
  %v3932 = vld [vmem:[%s3931] sm:$0xff]
  %3934 = vset.pattern.permute.xlu0 0
  %3935 = vperm.xlu0 %3934, %v3932
  %v3936 = vpop.permute.xlu0 %3935
  %v3938 = vadd.f32 %v3929, %v3936
  %v3939 = vadd.f32 %v3930, %v3936
  %v3940 = vmax.f32 %v3938, 0.0
  %v3941 = vmax.f32 %v3939, 0.0
  %s3942 = scalar_lea.vmem %s4, 344
  %v3943 = vld [vmem:[%s3942] sm:$0xff]
  %s3944 = scalar_lea.vmem %s5, 88
  %v3945 = vld [vmem:[%s3944] sm:$0xff]
  %3947 = vset.pattern.permute.xlu0 0
  %3948 = vperm.xlu0 %3947, %v3945
  %v3949 = vpop.permute.xlu0 %3948
  %v3952 = vsel %vm157, %v3943, 0
  %3954 = vmatprep.subr.mxu0 0.0
  %3955 = vmatpush1.msra.mxu0 0.0
  %3956 = vmatprep.subr.mxu0 0.0
  %3957 = vmatpush1.msra.mxu0 0.0
  %3958 = vmatprep.subr.mxu0 0.0
  %3959 = vmatpush1.msra.mxu0 0.0
  %3960 = vmatprep.subr.mxu0 0.0
  %3961 = vmatpush1.msra.mxu0 0.0
  %3962 = vmatprep.subr.mxu0 0.0
  %3963 = vmatpush1.msra.mxu0 0.0
  %3964 = vmatprep.subr.mxu0 0.0
  %3965 = vmatpush1.msra.mxu0 0.0
  %3966 = vmatprep.subr.mxu0 0.0
  %3967 = vmatpush1.msra.mxu0 0.0
  %3968 = vmatprep.subr.mxu0 0.0
  %3969 = vmatpush1.msra.mxu0 0.0
  %3970 = vmatprep.subr.mxu0 0.0
  %3971 = vmatpush1.msra.mxu0 0.0
  %3972 = vmatprep.subr.mxu0 0.0
  %3973 = vmatpush1.msra.mxu0 0.0
  %3974 = vmatprep.subr.mxu0 0.0
  %3975 = vmatpush1.msra.mxu0 0.0
  %3976 = vmatprep.subr.mxu0 0.0
  %3977 = vmatpush1.msra.mxu0 0.0
  %3978 = vmatprep.subr.mxu0 0.0
  %3979 = vmatpush1.msra.mxu0 0.0
  %3980 = vmatprep.subr.mxu0 0.0
  %3981 = vmatpush1.msra.mxu0 0.0
  %3982 = vmatprep.subr.mxu0 0.0
  %3983 = vmatpush1.msra.mxu0 0.0
  %3984 = vmatprep.subr.mxu0 %v3095
  %3985 = vmatpush1.msra.mxu0 %v3094
  %3986 = vmatprep.subr.mxu0 0.0
  %3987 = vmatpush2.msra.mxu0 0.0
  %3988 = vmatprep.subr.mxu0 0.0
  %3989 = vmatpush2.msra.mxu0 0.0
  %3990 = vmatprep.subr.mxu0 0.0
  %3991 = vmatpush2.msra.mxu0 0.0
  %3992 = vmatprep.subr.mxu0 0.0
  %3993 = vmatpush2.msra.mxu0 0.0
  %3994 = vmatprep.subr.mxu0 0.0
  %3995 = vmatpush2.msra.mxu0 0.0
  %3996 = vmatprep.subr.mxu0 0.0
  %3997 = vmatpush2.msra.mxu0 0.0
  %3998 = vmatprep.subr.mxu0 0.0
  %3999 = vmatpush2.msra.mxu0 0.0
  %4000 = vmatprep.subr.mxu0 0.0
  %4001 = vmatpush2.msra.mxu0 0.0
  %4002 = vmatprep.subr.mxu0 0.0
  %4003 = vmatpush2.msra.mxu0 0.0
  %4004 = vmatprep.subr.mxu0 0.0
  %4005 = vmatpush2.msra.mxu0 0.0
  %4006 = vmatprep.subr.mxu0 0.0
  %4007 = vmatpush2.msra.mxu0 0.0
  %4008 = vmatprep.subr.mxu0 0.0
  %4009 = vmatpush2.msra.mxu0 0.0
  %4010 = vmatprep.subr.mxu0 0.0
  %4011 = vmatpush2.msra.mxu0 0.0
  %4012 = vmatprep.subr.mxu0 0.0
  %4013 = vmatpush2.msra.mxu0 0.0
  %4014 = vmatprep.subr.mxu0 0.0
  %4015 = vmatpush2.msra.mxu0 0.0
  %4016 = vmatprep.subr.mxu0 0.0
  %4017 = vmatpush2.msra.mxu0 0.0
  %4018 = vmatprep.mubr.f32.mxu0 0.0
  %4019 = vmatmul.mubr.f32.gmra.mxu0 %v3952
  %v4020 = vpop.f32.mrf.mxu0
  %v4021 = vadd.f32 %v3949, %v4020
  %v4022 = vpop.f32.mrf.mxu0
  %v4023 = vadd.f32 %v3949, %v4022
  %4024 = vdwg.mxu0
  %v4025 = vadd.f32 %v3940, %v4021
  %v4026 = vadd.f32 %v3941, %v4023
  %4027 = vst [vmem:[%s6] sm:$0xff] %v4025
  %4028 = vst [vmem:[%s6 + $0x8] sm:$0xff] %v4026
  // Predicated region
  $region26: #{decoder_forward.1} parent=0 // pred_check
    _
  $region27: #{decoder_forward.1} parent=0 // pred_check_branch
    %4030 = sbr.rel (0) target = $region29
  $region28: #{decoder_forward.1} parent=0 // pred_region
    _
  $region29: #{decoder_forward.1} parent=0 // pred_fallthru
    _
  // Predicated region
  $region30: #{decoder_forward.1} parent=0 // pred_check
    _
  $region31: #{decoder_forward.1} parent=0 // pred_check_branch
    %4032 = sbr.rel (0) target = $region33
  $region32: #{decoder_forward.1} parent=0 // pred_region
    _
  $region33: #{decoder_forward.1} parent=0 // pred_fallthru
    _

</llo_original>
